<compile_context>
chip_gen: v5e
topology: v5e:2x2
jax: 0.10.0
libtpu: 0.0.40
codegen_flags: <defaults>
</compile_context>

<pallas_src>
import functools

import jax
import jax.numpy as jnp
from jax import lax
from jax.experimental import pallas as pl
from jax.experimental.pallas import tpu as pltpu


def _upsample_fused_kernel(x_ref, w_ref, b_ref, s_ref, o_ref, acc_ref, *,
                           rows, w_in, k, c_out):
    """One (batch image, row-tile) step of ConvTranspose2d with kernel==stride.

    x_ref  : (Cin, rows*w_in)        input pixels of `rows` image rows, lane-dense
    w_ref  : (Cout*k*k, Cin)         weight rows ordered (kh, kw, cout)
    b_ref  : (Cout, 1)               bias
    s_ref  : (k, w_in, w_in*k)       selection matrices, S[kw][w, w*k+kw] = 1
    o_ref  : (Cout, rows*k, w_in*k)  block of the FINAL NCHW output
    acc_ref: (Cout*k*k, rows*w_in)   VMEM scratch holding the matmul result
    """
    # Main matmul on the MXU (default precision, f32 accumulation).
    acc_ref[...] = jnp.dot(w_ref[...], x_ref[...],
                           preferred_element_type=jnp.float32)
    bias = b_ref[...]                          # (Cout, 1)
    s_mats = [s_ref[kw] for kw in range(k)]    # k x (w_in, w_in*k)

    # Fused sub-pixel interleave: for input row `th` and kernel row `kh`,
    # build output row th*k+kh (lanes ordered w*k+kw) via tiny 0/1 selection
    # matmuls (exactly lowerable; rides MXU slack on this mem-bound kernel)
    # and store it straight into the final NCHW block.
    # TODO(synk): for very large Cout with tiny W*k the per-row stores are
    # sub-lane-masked; a relayout-based bulk store could shave a bit more.
    for th in range(rows):
        lane_lo = th * w_in
        for kh in range(k):
            row_val = None
            for kw in range(k):
                r0 = (kh * k + kw) * c_out
                sub = acc_ref[r0:r0 + c_out, lane_lo:lane_lo + w_in]  # (Cout, w_in)
                spread = jnp.dot(sub, s_mats[kw],
                                 preferred_element_type=jnp.float32)  # (Cout, w_in*k)
                row_val = spread if row_val is None else row_val + spread
            o_ref[:, th * k + kh, :] = (row_val + bias).astype(o_ref.dtype)


def _vmem_capacity_bytes():
    """Physical VMEM per core; conservative default if the query fails."""
    try:
        info = pltpu.get_tpu_info()
        cap = getattr(info, "vmem_capacity_bytes", None)
    except Exception:
        cap = None
    return int(cap) if cap else (64 << 20)   # assume smallest (v7x) part


def _pick_row_tile(h, w, c_in, c_out, k, n_batch, vmem_budget_bytes,
                   max_unrolled_out_rows=64):
    """Largest divisor of H (in input rows) that fits VMEM/unroll budgets and
    keeps the (8,128)-style block alignment; no padding ever needed."""
    # Per input row: double-buffered x tile + out tile + single acc scratch.
    per_row = 4 * w * (2 * c_in + 3 * c_out * k * k)
    cap = max(1, vmem_budget_bytes // per_row)
    cap = min(cap, max(1, max_unrolled_out_rows // k))

    def aligned(th):
        row_ok = (th * k) % 8 == 0 or th == h        # out block second-minor
        lane_ok = (th * w) % 128 == 0 or th == h     # x block minor
        return row_ok and lane_ok

    divs = [d for d in range(1, h + 1) if h % d == 0]
    good = [d for d in divs if d <= cap and aligned(d)]
    if n_batch == 1:
        smaller = [d for d in good if d < h]
        if smaller:                 # keep >= 2 grid steps for v7x's 2 TCs
            good = smaller
    if good:
        return max(good)
    fallback = [d for d in divs if d <= cap]
    return max(fallback) if fallback else 1


@functools.partial(jax.jit, static_argnames=("kernel", "stride"))
def upsample_forward(x, weight, bias, *, kernel, stride):
    """ConvTranspose2d(x) with kernel_size == stride (no overlap), padding=0.

    x:      (N, C_in, H, W)        float32
    weight: (C_in, C_out, kH, kW)  float32  (PyTorch ConvTranspose2d layout)
    bias:   (C_out,)               float32
    returns (N, C_out, H*stride, W*stride)  float32
    """
    # TODO(synk): general kernel != stride needs overlap-add of sub-pixel taps;
    # this covers the kernel == stride case used by ResUNet++.
    assert kernel == stride, "only kernel == stride (non-overlapping) supported"

    n, c_in, h, w = x.shape
    c_in2, c_out, kh_, kw_ = weight.shape
    assert c_in2 == c_in and kh_ == kernel and kw_ == kernel
    k = kernel
    p = h * w
    k_out = c_out * k * k

    vmem_cap = _vmem_capacity_bytes()
    # Generation-gated tile budget: tight on 64 MiB parts (v7x), roomy on
    # 128 MiB parts (v5e/v6e).
    tile_budget = (20 << 20) if vmem_cap <= (64 << 20) else (48 << 20)
    th = _pick_row_tile(h, w, c_in, c_out, k, n, tile_budget)
    tp = th * w
    n_row_tiles = h // th

    x_r = x.reshape(n, c_in, p)  # metadata-only reshape, stays in NCHW order
    # weight (Cin, Cout, kh, kw) -> rows ordered (kh, kw, cout) over Cin cols.
    w_mat = jnp.transpose(weight, (2, 3, 1, 0)).reshape(k_out, c_in)
    b_col = bias.reshape(c_out, 1)
    # Selection matrices: S[kw, w, w*k + kw] = 1 (lane spread / interleave).
    lane = jnp.arange(w * k)[None, None, :]
    src = jnp.arange(w)[None, :, None] * k + jnp.arange(k)[:, None, None]
    s_sel = (lane == src).astype(jnp.float32)            # (k, w, w*k)

    vmem_est = 4 * (2 * tp * (c_in + c_out * k * k)       # dbl-buffered x/out tiles
                    + k_out * tp                          # accumulator scratch
                    + 2 * (k_out * c_in + c_out + k * w * w * k))
    vmem_hi = (48 << 20) if vmem_cap <= (64 << 20) else (96 << 20)
    vmem_limit = int(min(vmem_hi, max(32 << 20, vmem_est + (8 << 20))))

    kern = functools.partial(_upsample_fused_kernel,
                             rows=th, w_in=w, k=k, c_out=c_out)

    # TODO(synk): optionally emit bf16 output if the downstream layer allows it
    # (halves dominant HBM traffic); kept f32 to match the PyTorch module.
    out = pl.pallas_call(
        kern,
        out_shape=jax.ShapeDtypeStruct((n, c_out, h * k, w * k), jnp.float32),
        grid_spec=pltpu.PrefetchScalarGridSpec(
            num_scalar_prefetch=0,
            grid=(n, n_row_tiles),
            in_specs=[
                pl.BlockSpec((None, c_in, tp), lambda b, i: (b, 0, i)),
                pl.BlockSpec((k_out, c_in), lambda b, i: (0, 0)),
                pl.BlockSpec((c_out, 1), lambda b, i: (0, 0)),
                pl.BlockSpec((k, w, w * k), lambda b, i: (0, 0, 0)),
            ],
            out_specs=pl.BlockSpec((None, c_out, th * k, w * k),
                                   lambda b, i: (b, 0, i, 0)),
            scratch_shapes=[pltpu.VMEM((k_out, tp), jnp.float32)],
        ),
        compiler_params=pltpu.CompilerParams(
            dimension_semantics=("parallel", "parallel"),
            vmem_limit_bytes=vmem_limit),
    )(x_r, w_mat, b_col, s_sel)
    return out


if __name__ == "__main__":
    # Module hyper-params (Upsample(input_dim, output_dim, kernel, stride)).
    input_dim, output_dim, kernel, stride = 4, 8, 2, 2
    n, h, w = 2, 16, 16

    key = jax.random.PRNGKey(0)
    kx, kw_, kb = jax.random.split(key, 3)
    x = jax.random.normal(kx, (n, input_dim, h, w), dtype=jnp.float32)
    # PyTorch ConvTranspose2d parameter shapes:
    #   weight: (in_channels, out_channels, kH, kW), bias: (out_channels,)
    weight = jax.random.normal(
        kw_, (input_dim, output_dim, kernel, kernel), dtype=jnp.float32) * 0.1
    bias = jax.random.normal(kb, (output_dim,), dtype=jnp.float32) * 0.1

    out = upsample_forward(x, weight, bias, kernel=kernel, stride=stride)
    out = jax.block_until_ready(out)

    # Reference: the ConvTranspose2d formula for kernel == stride, padding=0:
    #   out[n, co, h*k+kh, w*k+kw] = bias[co] + sum_ci x[n,ci,h,w]*W[ci,co,kh,kw]
    ref = jnp.einsum("nchw,cokl->nohkwl", x, weight,
                     precision=lax.Precision.HIGHEST)
    ref = ref.reshape(n, output_dim, h * kernel, w * kernel)
    ref = ref + bias[None, :, None, None]

    assert out.shape == (n, output_dim, h * stride, w * stride), out.shape
    max_err = float(jnp.max(jnp.abs(out - ref)))
    # Tolerance covers the MXU's default (reduced-precision input) matmul path.
    assert jnp.allclose(out, ref, atol=1e-2, rtol=1e-2), max_err

    print("KERNEL_OK")
</pallas_src>

<mosaic_0001>
module attributes {stable_mosaic.version = 11 : i64} {
  func.func @_upsample_fused_kernel(%arg0: i32, %arg1: i32, %arg2: memref<1x4x256xf32, #tpu.memory_space<vmem>>, %arg3: memref<32x4xf32, #tpu.memory_space<vmem>>, %arg4: memref<8x1xf32, #tpu.memory_space<vmem>>, %arg5: memref<2x16x32xf32, #tpu.memory_space<vmem>>, %arg6: memref<1x8x32x32xf32, #tpu.memory_space<vmem>>, %arg7: memref<32x256xf32, #tpu.memory_space<vmem>>) attributes {dimension_semantics = [#tpu.dimension_semantics<parallel>, #tpu.dimension_semantics<parallel>], iteration_bounds = array<i64: 2, 1>, scalar_prefetch = 0 : i64, scratch_operands = 1 : i64, tpu.core_type = #tpu.core_type<tc>, window_params = [{transform_indices = @transform_0, window_bounds = array<i64: 1, 4, 256>}, {pipeline_mode = #tpu.pipeline_mode<synchronous>, transform_indices = @transform_1, window_bounds = array<i64: 32, 4>}, {pipeline_mode = #tpu.pipeline_mode<synchronous>, transform_indices = @transform_2, window_bounds = array<i64: 8, 1>}, {pipeline_mode = #tpu.pipeline_mode<synchronous>, transform_indices = @transform_3, window_bounds = array<i64: 2, 16, 32>}, {transform_indices = @transform_4, window_bounds = array<i64: 1, 8, 32, 32>}]} {
    %c0 = arith.constant 0 : index
    %c0_0 = arith.constant 0 : index
    %0 = vector.load %arg3[%c0, %c0_0] : memref<32x4xf32, #tpu.memory_space<vmem>>, vector<32x4xf32>
    %c0_1 = arith.constant 0 : index
    %c0_2 = arith.constant 0 : index
    %c0_3 = arith.constant 0 : index
    %1 = vector.load %arg2[%c0_1, %c0_2, %c0_3] : memref<1x4x256xf32, #tpu.memory_space<vmem>>, vector<1x4x256xf32>
    %2 = vector.shape_cast %1 : vector<1x4x256xf32> to vector<4x256xf32>
    %cst = arith.constant dense<0.000000e+00> : vector<32x256xf32>
    %3 = tpu.matmul %0, %2, %cst {dimension_numbers = #tpu.dot_dimension_numbers<[1], [0], [0], [1], [0, 0, 1, 1], [], []>} : vector<32x4xf32>, vector<4x256xf32>, vector<32x256xf32> -> vector<32x256xf32>
    %c0_4 = arith.constant 0 : index
    %c0_5 = arith.constant 0 : index
    %4 = vector.load %arg7[%c0_4, %c0_5] : memref<32x256xf32, #tpu.memory_space<vmem>>, vector<32x256xf32>
    tpu.vector_store %arg7[%c0_4, %c0_5], %3 {strides = array<i32>} : memref<32x256xf32, #tpu.memory_space<vmem>>, vector<32x256xf32>,
    %c0_6 = arith.constant 0 : index
    %c0_7 = arith.constant 0 : index
    %5 = vector.load %arg4[%c0_6, %c0_7] : memref<8x1xf32, #tpu.memory_space<vmem>>, vector<8x1xf32>
    %c0_8 = arith.constant 0 : index
    %c0_9 = arith.constant 0 : index
    %c0_10 = arith.constant 0 : index
    %6 = vector.load %arg5[%c0_8, %c0_9, %c0_10] : memref<2x16x32xf32, #tpu.memory_space<vmem>>, vector<1x16x32xf32>
    %7 = vector.shape_cast %6 : vector<1x16x32xf32> to vector<16x32xf32>
    %c1 = arith.constant 1 : index
    %c0_11 = arith.constant 0 : index
    %c0_12 = arith.constant 0 : index
    %8 = vector.load %arg5[%c1, %c0_11, %c0_12] : memref<2x16x32xf32, #tpu.memory_space<vmem>>, vector<1x16x32xf32>
    %9 = vector.shape_cast %8 : vector<1x16x32xf32> to vector<16x32xf32>
    %c0_13 = arith.constant 0 : index
    %c0_14 = arith.constant 0 : index
    %10 = vector.load %arg7[%c0_13, %c0_14] : memref<32x256xf32, #tpu.memory_space<vmem>>, vector<8x16xf32>
    %cst_15 = arith.constant dense<0.000000e+00> : vector<8x32xf32>
    %11 = tpu.matmul %10, %7, %cst_15 {dimension_numbers = #tpu.dot_dimension_numbers<[1], [0], [0], [1], [0, 0, 1, 1], [], []>} : vector<8x16xf32>, vector<16x32xf32>, vector<8x32xf32> -> vector<8x32xf32>
    %c8 = arith.constant 8 : index
    %c0_16 = arith.constant 0 : index
    %12 = vector.load %arg7[%c8, %c0_16] : memref<32x256xf32, #tpu.memory_space<vmem>>, vector<8x16xf32>
    %cst_17 = arith.constant dense<0.000000e+00> : vector<8x32xf32>
    %13 = tpu.matmul %12, %9, %cst_17 {dimension_numbers = #tpu.dot_dimension_numbers<[1], [0], [0], [1], [0, 0, 1, 1], [], []>} : vector<8x16xf32>, vector<16x32xf32>, vector<8x32xf32> -> vector<8x32xf32>
    %14 = arith.addf %11, %13 : vector<8x32xf32>
    %15 = vector.broadcast %5 : vector<8x1xf32> to vector<8x32xf32>
    %16 = arith.addf %14, %15 : vector<8x32xf32>
    %c0_18 = arith.constant 0 : index
    %c0_19 = arith.constant 0 : index
    %c0_20 = arith.constant 0 : index
    %c0_21 = arith.constant 0 : index
    %17 = vector.load %arg6[%c0_18, %c0_19, %c0_20, %c0_21] : memref<1x8x32x32xf32, #tpu.memory_space<vmem>>, vector<1x8x1x32xf32>
    %18 = vector.shape_cast %17 : vector<1x8x1x32xf32> to vector<8x32xf32>
    %19 = vector.shape_cast %16 : vector<8x32xf32> to vector<1x8x1x32xf32>
    tpu.vector_store %arg6[%c0_18, %c0_19, %c0_20, %c0_21], %19 {strides = array<i32>} : memref<1x8x32x32xf32, #tpu.memory_space<vmem>>, vector<1x8x1x32xf32>,
    %c16 = arith.constant 16 : index
    %c0_22 = arith.constant 0 : index
    %20 = vector.load %arg7[%c16, %c0_22] : memref<32x256xf32, #tpu.memory_space<vmem>>, vector<8x16xf32>
    %cst_23 = arith.constant dense<0.000000e+00> : vector<8x32xf32>
    %21 = tpu.matmul %20, %7, %cst_23 {dimension_numbers = #tpu.dot_dimension_numbers<[1], [0], [0], [1], [0, 0, 1, 1], [], []>} : vector<8x16xf32>, vector<16x32xf32>, vector<8x32xf32> -> vector<8x32xf32>
    %c24 = arith.constant 24 : index
    %c0_24 = arith.constant 0 : index
    %22 = vector.load %arg7[%c24, %c0_24] : memref<32x256xf32, #tpu.memory_space<vmem>>, vector<8x16xf32>
    %cst_25 = arith.constant dense<0.000000e+00> : vector<8x32xf32>
    %23 = tpu.matmul %22, %9, %cst_25 {dimension_numbers = #tpu.dot_dimension_numbers<[1], [0], [0], [1], [0, 0, 1, 1], [], []>} : vector<8x16xf32>, vector<16x32xf32>, vector<8x32xf32> -> vector<8x32xf32>
    %24 = arith.addf %21, %23 : vector<8x32xf32>
    %25 = vector.broadcast %5 : vector<8x1xf32> to vector<8x32xf32>
    %26 = arith.addf %24, %25 : vector<8x32xf32>
    %c0_26 = arith.constant 0 : index
    %c0_27 = arith.constant 0 : index
    %c1_28 = arith.constant 1 : index
    %c0_29 = arith.constant 0 : index
    %27 = vector.load %arg6[%c0_26, %c0_27, %c1_28, %c0_29] : memref<1x8x32x32xf32, #tpu.memory_space<vmem>>, vector<1x8x1x32xf32>
    %28 = vector.shape_cast %27 : vector<1x8x1x32xf32> to vector<8x32xf32>
    %29 = vector.shape_cast %26 : vector<8x32xf32> to vector<1x8x1x32xf32>
    tpu.vector_store %arg6[%c0_26, %c0_27, %c1_28, %c0_29], %29 {strides = array<i32>} : memref<1x8x32x32xf32, #tpu.memory_space<vmem>>, vector<1x8x1x32xf32>,
    %c0_30 = arith.constant 0 : index
    %c16_31 = arith.constant 16 : index
    %30 = vector.load %arg7[%c0_30, %c16_31] : memref<32x256xf32, #tpu.memory_space<vmem>>, vector<8x16xf32>
    %cst_32 = arith.constant dense<0.000000e+00> : vector<8x32xf32>
    %31 = tpu.matmul %30, %7, %cst_32 {dimension_numbers = #tpu.dot_dimension_numbers<[1], [0], [0], [1], [0, 0, 1, 1], [], []>} : vector<8x16xf32>, vector<16x32xf32>, vector<8x32xf32> -> vector<8x32xf32>
    %c8_33 = arith.constant 8 : index
    %c16_34 = arith.constant 16 : index
    %32 = vector.load %arg7[%c8_33, %c16_34] : memref<32x256xf32, #tpu.memory_space<vmem>>, vector<8x16xf32>
    %cst_35 = arith.constant dense<0.000000e+00> : vector<8x32xf32>
    %33 = tpu.matmul %32, %9, %cst_35 {dimension_numbers = #tpu.dot_dimension_numbers<[1], [0], [0], [1], [0, 0, 1, 1], [], []>} : vector<8x16xf32>, vector<16x32xf32>, vector<8x32xf32> -> vector<8x32xf32>
    %34 = arith.addf %31, %33 : vector<8x32xf32>
    %35 = vector.broadcast %5 : vector<8x1xf32> to vector<8x32xf32>
    %36 = arith.addf %34, %35 : vector<8x32xf32>
    %c0_36 = arith.constant 0 : index
    %c0_37 = arith.constant 0 : index
    %c2 = arith.constant 2 : index
    %c0_38 = arith.constant 0 : index
    %37 = vector.load %arg6[%c0_36, %c0_37, %c2, %c0_38] : memref<1x8x32x32xf32, #tpu.memory_space<vmem>>, vector<1x8x1x32xf32>
    %38 = vector.shape_cast %37 : vector<1x8x1x32xf32> to vector<8x32xf32>
    %39 = vector.shape_cast %36 : vector<8x32xf32> to vector<1x8x1x32xf32>
    tpu.vector_store %arg6[%c0_36, %c0_37, %c2, %c0_38], %39 {strides = array<i32>} : memref<1x8x32x32xf32, #tpu.memory_space<vmem>>, vector<1x8x1x32xf32>,
    %c16_39 = arith.constant 16 : index
    %c16_40 = arith.constant 16 : index
    %40 = vector.load %arg7[%c16_39, %c16_40] : memref<32x256xf32, #tpu.memory_space<vmem>>, vector<8x16xf32>
    %cst_41 = arith.constant dense<0.000000e+00> : vector<8x32xf32>
    %41 = tpu.matmul %40, %7, %cst_41 {dimension_numbers = #tpu.dot_dimension_numbers<[1], [0], [0], [1], [0, 0, 1, 1], [], []>} : vector<8x16xf32>, vector<16x32xf32>, vector<8x32xf32> -> vector<8x32xf32>
    %c24_42 = arith.constant 24 : index
    %c16_43 = arith.constant 16 : index
    %42 = vector.load %arg7[%c24_42, %c16_43] : memref<32x256xf32, #tpu.memory_space<vmem>>, vector<8x16xf32>
    %cst_44 = arith.constant dense<0.000000e+00> : vector<8x32xf32>
    %43 = tpu.matmul %42, %9, %cst_44 {dimension_numbers = #tpu.dot_dimension_numbers<[1], [0], [0], [1], [0, 0, 1, 1], [], []>} : vector<8x16xf32>, vector<16x32xf32>, vector<8x32xf32> -> vector<8x32xf32>
    %44 = arith.addf %41, %43 : vector<8x32xf32>
    %45 = vector.broadcast %5 : vector<8x1xf32> to vector<8x32xf32>
    %46 = arith.addf %44, %45 : vector<8x32xf32>
    %c0_45 = arith.constant 0 : index
    %c0_46 = arith.constant 0 : index
    %c3 = arith.constant 3 : index
    %c0_47 = arith.constant 0 : index
    %47 = vector.load %arg6[%c0_45, %c0_46, %c3, %c0_47] : memref<1x8x32x32xf32, #tpu.memory_space<vmem>>, vector<1x8x1x32xf32>
    %48 = vector.shape_cast %47 : vector<1x8x1x32xf32> to vector<8x32xf32>
    %49 = vector.shape_cast %46 : vector<8x32xf32> to vector<1x8x1x32xf32>
    tpu.vector_store %arg6[%c0_45, %c0_46, %c3, %c0_47], %49 {strides = array<i32>} : memref<1x8x32x32xf32, #tpu.memory_space<vmem>>, vector<1x8x1x32xf32>,
    %c0_48 = arith.constant 0 : index
    %c32 = arith.constant 32 : index
    %50 = vector.load %arg7[%c0_48, %c32] : memref<32x256xf32, #tpu.memory_space<vmem>>, vector<8x16xf32>
    %cst_49 = arith.constant dense<0.000000e+00> : vector<8x32xf32>
    %51 = tpu.matmul %50, %7, %cst_49 {dimension_numbers = #tpu.dot_dimension_numbers<[1], [0], [0], [1], [0, 0, 1, 1], [], []>} : vector<8x16xf32>, vector<16x32xf32>, vector<8x32xf32> -> vector<8x32xf32>
    %c8_50 = arith.constant 8 : index
    %c32_51 = arith.constant 32 : index
    %52 = vector.load %arg7[%c8_50, %c32_51] : memref<32x256xf32, #tpu.memory_space<vmem>>, vector<8x16xf32>
    %cst_52 = arith.constant dense<0.000000e+00> : vector<8x32xf32>
    %53 = tpu.matmul %52, %9, %cst_52 {dimension_numbers = #tpu.dot_dimension_numbers<[1], [0], [0], [1], [0, 0, 1, 1], [], []>} : vector<8x16xf32>, vector<16x32xf32>, vector<8x32xf32> -> vector<8x32xf32>
    %54 = arith.addf %51, %53 : vector<8x32xf32>
    %55 = vector.broadcast %5 : vector<8x1xf32> to vector<8x32xf32>
    %56 = arith.addf %54, %55 : vector<8x32xf32>
    %c0_53 = arith.constant 0 : index
    %c0_54 = arith.constant 0 : index
    %c4 = arith.constant 4 : index
    %c0_55 = arith.constant 0 : index
    %57 = vector.load %arg6[%c0_53, %c0_54, %c4, %c0_55] : memref<1x8x32x32xf32, #tpu.memory_space<vmem>>, vector<1x8x1x32xf32>
    %58 = vector.shape_cast %57 : vector<1x8x1x32xf32> to vector<8x32xf32>
    %59 = vector.shape_cast %56 : vector<8x32xf32> to vector<1x8x1x32xf32>
    tpu.vector_store %arg6[%c0_53, %c0_54, %c4, %c0_55], %59 {strides = array<i32>} : memref<1x8x32x32xf32, #tpu.memory_space<vmem>>, vector<1x8x1x32xf32>,
    %c16_56 = arith.constant 16 : index
    %c32_57 = arith.constant 32 : index
    %60 = vector.load %arg7[%c16_56, %c32_57] : memref<32x256xf32, #tpu.memory_space<vmem>>, vector<8x16xf32>
    %cst_58 = arith.constant dense<0.000000e+00> : vector<8x32xf32>
    %61 = tpu.matmul %60, %7, %cst_58 {dimension_numbers = #tpu.dot_dimension_numbers<[1], [0], [0], [1], [0, 0, 1, 1], [], []>} : vector<8x16xf32>, vector<16x32xf32>, vector<8x32xf32> -> vector<8x32xf32>
    %c24_59 = arith.constant 24 : index
    %c32_60 = arith.constant 32 : index
    %62 = vector.load %arg7[%c24_59, %c32_60] : memref<32x256xf32, #tpu.memory_space<vmem>>, vector<8x16xf32>
    %cst_61 = arith.constant dense<0.000000e+00> : vector<8x32xf32>
    %63 = tpu.matmul %62, %9, %cst_61 {dimension_numbers = #tpu.dot_dimension_numbers<[1], [0], [0], [1], [0, 0, 1, 1], [], []>} : vector<8x16xf32>, vector<16x32xf32>, vector<8x32xf32> -> vector<8x32xf32>
    %64 = arith.addf %61, %63 : vector<8x32xf32>
    %65 = vector.broadcast %5 : vector<8x1xf32> to vector<8x32xf32>
    %66 = arith.addf %64, %65 : vector<8x32xf32>
    %c0_62 = arith.constant 0 : index
    %c0_63 = arith.constant 0 : index
    %c5 = arith.constant 5 : index
    %c0_64 = arith.constant 0 : index
    %67 = vector.load %arg6[%c0_62, %c0_63, %c5, %c0_64] : memref<1x8x32x32xf32, #tpu.memory_space<vmem>>, vector<1x8x1x32xf32>
    %68 = vector.shape_cast %67 : vector<1x8x1x32xf32> to vector<8x32xf32>
    %69 = vector.shape_cast %66 : vector<8x32xf32> to vector<1x8x1x32xf32>
    tpu.vector_store %arg6[%c0_62, %c0_63, %c5, %c0_64], %69 {strides = array<i32>} : memref<1x8x32x32xf32, #tpu.memory_space<vmem>>, vector<1x8x1x32xf32>,
    %c0_65 = arith.constant 0 : index
    %c48 = arith.constant 48 : index
    %70 = vector.load %arg7[%c0_65, %c48] : memref<32x256xf32, #tpu.memory_space<vmem>>, vector<8x16xf32>
    %cst_66 = arith.constant dense<0.000000e+00> : vector<8x32xf32>
    %71 = tpu.matmul %70, %7, %cst_66 {dimension_numbers = #tpu.dot_dimension_numbers<[1], [0], [0], [1], [0, 0, 1, 1], [], []>} : vector<8x16xf32>, vector<16x32xf32>, vector<8x32xf32> -> vector<8x32xf32>
    %c8_67 = arith.constant 8 : index
    %c48_68 = arith.constant 48 : index
    %72 = vector.load %arg7[%c8_67, %c48_68] : memref<32x256xf32, #tpu.memory_space<vmem>>, vector<8x16xf32>
    %cst_69 = arith.constant dense<0.000000e+00> : vector<8x32xf32>
    %73 = tpu.matmul %72, %9, %cst_69 {dimension_numbers = #tpu.dot_dimension_numbers<[1], [0], [0], [1], [0, 0, 1, 1], [], []>} : vector<8x16xf32>, vector<16x32xf32>, vector<8x32xf32> -> vector<8x32xf32>
    %74 = arith.addf %71, %73 : vector<8x32xf32>
    %75 = vector.broadcast %5 : vector<8x1xf32> to vector<8x32xf32>
    %76 = arith.addf %74, %75 : vector<8x32xf32>
    %c0_70 = arith.constant 0 : index
    %c0_71 = arith.constant 0 : index
    %c6 = arith.constant 6 : index
    %c0_72 = arith.constant 0 : index
    %77 = vector.load %arg6[%c0_70, %c0_71, %c6, %c0_72] : memref<1x8x32x32xf32, #tpu.memory_space<vmem>>, vector<1x8x1x32xf32>
    %78 = vector.shape_cast %77 : vector<1x8x1x32xf32> to vector<8x32xf32>
    %79 = vector.shape_cast %76 : vector<8x32xf32> to vector<1x8x1x32xf32>
    tpu.vector_store %arg6[%c0_70, %c0_71, %c6, %c0_72], %79 {strides = array<i32>} : memref<1x8x32x32xf32, #tpu.memory_space<vmem>>, vector<1x8x1x32xf32>,
    %c16_73 = arith.constant 16 : index
    %c48_74 = arith.constant 48 : index
    %80 = vector.load %arg7[%c16_73, %c48_74] : memref<32x256xf32, #tpu.memory_space<vmem>>, vector<8x16xf32>
    %cst_75 = arith.constant dense<0.000000e+00> : vector<8x32xf32>
    %81 = tpu.matmul %80, %7, %cst_75 {dimension_numbers = #tpu.dot_dimension_numbers<[1], [0], [0], [1], [0, 0, 1, 1], [], []>} : vector<8x16xf32>, vector<16x32xf32>, vector<8x32xf32> -> vector<8x32xf32>
    %c24_76 = arith.constant 24 : index
    %c48_77 = arith.constant 48 : index
    %82 = vector.load %arg7[%c24_76, %c48_77] : memref<32x256xf32, #tpu.memory_space<vmem>>, vector<8x16xf32>
    %cst_78 = arith.constant dense<0.000000e+00> : vector<8x32xf32>
    %83 = tpu.matmul %82, %9, %cst_78 {dimension_numbers = #tpu.dot_dimension_numbers<[1], [0], [0], [1], [0, 0, 1, 1], [], []>} : vector<8x16xf32>, vector<16x32xf32>, vector<8x32xf32> -> vector<8x32xf32>
    %84 = arith.addf %81, %83 : vector<8x32xf32>
    %85 = vector.broadcast %5 : vector<8x1xf32> to vector<8x32xf32>
    %86 = arith.addf %84, %85 : vector<8x32xf32>
    %c0_79 = arith.constant 0 : index
    %c0_80 = arith.constant 0 : index
    %c7 = arith.constant 7 : index
    %c0_81 = arith.constant 0 : index
    %87 = vector.load %arg6[%c0_79, %c0_80, %c7, %c0_81] : memref<1x8x32x32xf32, #tpu.memory_space<vmem>>, vector<1x8x1x32xf32>
    %88 = vector.shape_cast %87 : vector<1x8x1x32xf32> to vector<8x32xf32>
    %89 = vector.shape_cast %86 : vector<8x32xf32> to vector<1x8x1x32xf32>
    tpu.vector_store %arg6[%c0_79, %c0_80, %c7, %c0_81], %89 {strides = array<i32>} : memref<1x8x32x32xf32, #tpu.memory_space<vmem>>, vector<1x8x1x32xf32>,
    %c0_82 = arith.constant 0 : index
    %c64 = arith.constant 64 : index
    %90 = vector.load %arg7[%c0_82, %c64] : memref<32x256xf32, #tpu.memory_space<vmem>>, vector<8x16xf32>
    %cst_83 = arith.constant dense<0.000000e+00> : vector<8x32xf32>
    %91 = tpu.matmul %90, %7, %cst_83 {dimension_numbers = #tpu.dot_dimension_numbers<[1], [0], [0], [1], [0, 0, 1, 1], [], []>} : vector<8x16xf32>, vector<16x32xf32>, vector<8x32xf32> -> vector<8x32xf32>
    %c8_84 = arith.constant 8 : index
    %c64_85 = arith.constant 64 : index
    %92 = vector.load %arg7[%c8_84, %c64_85] : memref<32x256xf32, #tpu.memory_space<vmem>>, vector<8x16xf32>
    %cst_86 = arith.constant dense<0.000000e+00> : vector<8x32xf32>
    %93 = tpu.matmul %92, %9, %cst_86 {dimension_numbers = #tpu.dot_dimension_numbers<[1], [0], [0], [1], [0, 0, 1, 1], [], []>} : vector<8x16xf32>, vector<16x32xf32>, vector<8x32xf32> -> vector<8x32xf32>
    %94 = arith.addf %91, %93 : vector<8x32xf32>
    %95 = vector.broadcast %5 : vector<8x1xf32> to vector<8x32xf32>
    %96 = arith.addf %94, %95 : vector<8x32xf32>
    %c0_87 = arith.constant 0 : index
    %c0_88 = arith.constant 0 : index
    %c8_89 = arith.constant 8 : index
    %c0_90 = arith.constant 0 : index
    %97 = vector.load %arg6[%c0_87, %c0_88, %c8_89, %c0_90] : memref<1x8x32x32xf32, #tpu.memory_space<vmem>>, vector<1x8x1x32xf32>
    %98 = vector.shape_cast %97 : vector<1x8x1x32xf32> to vector<8x32xf32>
    %99 = vector.shape_cast %96 : vector<8x32xf32> to vector<1x8x1x32xf32>
    tpu.vector_store %arg6[%c0_87, %c0_88, %c8_89, %c0_90], %99 {strides = array<i32>} : memref<1x8x32x32xf32, #tpu.memory_space<vmem>>, vector<1x8x1x32xf32>,
    %c16_91 = arith.constant 16 : index
    %c64_92 = arith.constant 64 : index
    %100 = vector.load %arg7[%c16_91, %c64_92] : memref<32x256xf32, #tpu.memory_space<vmem>>, vector<8x16xf32>
    %cst_93 = arith.constant dense<0.000000e+00> : vector<8x32xf32>
    %101 = tpu.matmul %100, %7, %cst_93 {dimension_numbers = #tpu.dot_dimension_numbers<[1], [0], [0], [1], [0, 0, 1, 1], [], []>} : vector<8x16xf32>, vector<16x32xf32>, vector<8x32xf32> -> vector<8x32xf32>
    %c24_94 = arith.constant 24 : index
    %c64_95 = arith.constant 64 : index
    %102 = vector.load %arg7[%c24_94, %c64_95] : memref<32x256xf32, #tpu.memory_space<vmem>>, vector<8x16xf32>
    %cst_96 = arith.constant dense<0.000000e+00> : vector<8x32xf32>
    %103 = tpu.matmul %102, %9, %cst_96 {dimension_numbers = #tpu.dot_dimension_numbers<[1], [0], [0], [1], [0, 0, 1, 1], [], []>} : vector<8x16xf32>, vector<16x32xf32>, vector<8x32xf32> -> vector<8x32xf32>
    %104 = arith.addf %101, %103 : vector<8x32xf32>
    %105 = vector.broadcast %5 : vector<8x1xf32> to vector<8x32xf32>
    %106 = arith.addf %104, %105 : vector<8x32xf32>
    %c0_97 = arith.constant 0 : index
    %c0_98 = arith.constant 0 : index
    %c9 = arith.constant 9 : index
    %c0_99 = arith.constant 0 : index
    %107 = vector.load %arg6[%c0_97, %c0_98, %c9, %c0_99] : memref<1x8x32x32xf32, #tpu.memory_space<vmem>>, vector<1x8x1x32xf32>
    %108 = vector.shape_cast %107 : vector<1x8x1x32xf32> to vector<8x32xf32>
    %109 = vector.shape_cast %106 : vector<8x32xf32> to vector<1x8x1x32xf32>
    tpu.vector_store %arg6[%c0_97, %c0_98, %c9, %c0_99], %109 {strides = array<i32>} : memref<1x8x32x32xf32, #tpu.memory_space<vmem>>, vector<1x8x1x32xf32>,
    %c0_100 = arith.constant 0 : index
    %c80 = arith.constant 80 : index
    %110 = vector.load %arg7[%c0_100, %c80] : memref<32x256xf32, #tpu.memory_space<vmem>>, vector<8x16xf32>
    %cst_101 = arith.constant dense<0.000000e+00> : vector<8x32xf32>
    %111 = tpu.matmul %110, %7, %cst_101 {dimension_numbers = #tpu.dot_dimension_numbers<[1], [0], [0], [1], [0, 0, 1, 1], [], []>} : vector<8x16xf32>, vector<16x32xf32>, vector<8x32xf32> -> vector<8x32xf32>
    %c8_102 = arith.constant 8 : index
    %c80_103 = arith.constant 80 : index
    %112 = vector.load %arg7[%c8_102, %c80_103] : memref<32x256xf32, #tpu.memory_space<vmem>>, vector<8x16xf32>
    %cst_104 = arith.constant dense<0.000000e+00> : vector<8x32xf32>
    %113 = tpu.matmul %112, %9, %cst_104 {dimension_numbers = #tpu.dot_dimension_numbers<[1], [0], [0], [1], [0, 0, 1, 1], [], []>} : vector<8x16xf32>, vector<16x32xf32>, vector<8x32xf32> -> vector<8x32xf32>
    %114 = arith.addf %111, %113 : vector<8x32xf32>
    %115 = vector.broadcast %5 : vector<8x1xf32> to vector<8x32xf32>
    %116 = arith.addf %114, %115 : vector<8x32xf32>
    %c0_105 = arith.constant 0 : index
    %c0_106 = arith.constant 0 : index
    %c10 = arith.constant 10 : index
    %c0_107 = arith.constant 0 : index
    %117 = vector.load %arg6[%c0_105, %c0_106, %c10, %c0_107] : memref<1x8x32x32xf32, #tpu.memory_space<vmem>>, vector<1x8x1x32xf32>
    %118 = vector.shape_cast %117 : vector<1x8x1x32xf32> to vector<8x32xf32>
    %119 = vector.shape_cast %116 : vector<8x32xf32> to vector<1x8x1x32xf32>
    tpu.vector_store %arg6[%c0_105, %c0_106, %c10, %c0_107], %119 {strides = array<i32>} : memref<1x8x32x32xf32, #tpu.memory_space<vmem>>, vector<1x8x1x32xf32>,
    %c16_108 = arith.constant 16 : index
    %c80_109 = arith.constant 80 : index
    %120 = vector.load %arg7[%c16_108, %c80_109] : memref<32x256xf32, #tpu.memory_space<vmem>>, vector<8x16xf32>
    %cst_110 = arith.constant dense<0.000000e+00> : vector<8x32xf32>
    %121 = tpu.matmul %120, %7, %cst_110 {dimension_numbers = #tpu.dot_dimension_numbers<[1], [0], [0], [1], [0, 0, 1, 1], [], []>} : vector<8x16xf32>, vector<16x32xf32>, vector<8x32xf32> -> vector<8x32xf32>
    %c24_111 = arith.constant 24 : index
    %c80_112 = arith.constant 80 : index
    %122 = vector.load %arg7[%c24_111, %c80_112] : memref<32x256xf32, #tpu.memory_space<vmem>>, vector<8x16xf32>
    %cst_113 = arith.constant dense<0.000000e+00> : vector<8x32xf32>
    %123 = tpu.matmul %122, %9, %cst_113 {dimension_numbers = #tpu.dot_dimension_numbers<[1], [0], [0], [1], [0, 0, 1, 1], [], []>} : vector<8x16xf32>, vector<16x32xf32>, vector<8x32xf32> -> vector<8x32xf32>
    %124 = arith.addf %121, %123 : vector<8x32xf32>
    %125 = vector.broadcast %5 : vector<8x1xf32> to vector<8x32xf32>
    %126 = arith.addf %124, %125 : vector<8x32xf32>
    %c0_114 = arith.constant 0 : index
    %c0_115 = arith.constant 0 : index
    %c11 = arith.constant 11 : index
    %c0_116 = arith.constant 0 : index
    %127 = vector.load %arg6[%c0_114, %c0_115, %c11, %c0_116] : memref<1x8x32x32xf32, #tpu.memory_space<vmem>>, vector<1x8x1x32xf32>
    %128 = vector.shape_cast %127 : vector<1x8x1x32xf32> to vector<8x32xf32>
    %129 = vector.shape_cast %126 : vector<8x32xf32> to vector<1x8x1x32xf32>
    tpu.vector_store %arg6[%c0_114, %c0_115, %c11, %c0_116], %129 {strides = array<i32>} : memref<1x8x32x32xf32, #tpu.memory_space<vmem>>, vector<1x8x1x32xf32>,
    %c0_117 = arith.constant 0 : index
    %c96 = arith.constant 96 : index
    %130 = vector.load %arg7[%c0_117, %c96] : memref<32x256xf32, #tpu.memory_space<vmem>>, vector<8x16xf32>
    %cst_118 = arith.constant dense<0.000000e+00> : vector<8x32xf32>
    %131 = tpu.matmul %130, %7, %cst_118 {dimension_numbers = #tpu.dot_dimension_numbers<[1], [0], [0], [1], [0, 0, 1, 1], [], []>} : vector<8x16xf32>, vector<16x32xf32>, vector<8x32xf32> -> vector<8x32xf32>
    %c8_119 = arith.constant 8 : index
    %c96_120 = arith.constant 96 : index
    %132 = vector.load %arg7[%c8_119, %c96_120] : memref<32x256xf32, #tpu.memory_space<vmem>>, vector<8x16xf32>
    %cst_121 = arith.constant dense<0.000000e+00> : vector<8x32xf32>
    %133 = tpu.matmul %132, %9, %cst_121 {dimension_numbers = #tpu.dot_dimension_numbers<[1], [0], [0], [1], [0, 0, 1, 1], [], []>} : vector<8x16xf32>, vector<16x32xf32>, vector<8x32xf32> -> vector<8x32xf32>
    %134 = arith.addf %131, %133 : vector<8x32xf32>
    %135 = vector.broadcast %5 : vector<8x1xf32> to vector<8x32xf32>
    %136 = arith.addf %134, %135 : vector<8x32xf32>
    %c0_122 = arith.constant 0 : index
    %c0_123 = arith.constant 0 : index
    %c12 = arith.constant 12 : index
    %c0_124 = arith.constant 0 : index
    %137 = vector.load %arg6[%c0_122, %c0_123, %c12, %c0_124] : memref<1x8x32x32xf32, #tpu.memory_space<vmem>>, vector<1x8x1x32xf32>
    %138 = vector.shape_cast %137 : vector<1x8x1x32xf32> to vector<8x32xf32>
    %139 = vector.shape_cast %136 : vector<8x32xf32> to vector<1x8x1x32xf32>
    tpu.vector_store %arg6[%c0_122, %c0_123, %c12, %c0_124], %139 {strides = array<i32>} : memref<1x8x32x32xf32, #tpu.memory_space<vmem>>, vector<1x8x1x32xf32>,
    %c16_125 = arith.constant 16 : index
    %c96_126 = arith.constant 96 : index
    %140 = vector.load %arg7[%c16_125, %c96_126] : memref<32x256xf32, #tpu.memory_space<vmem>>, vector<8x16xf32>
    %cst_127 = arith.constant dense<0.000000e+00> : vector<8x32xf32>
    %141 = tpu.matmul %140, %7, %cst_127 {dimension_numbers = #tpu.dot_dimension_numbers<[1], [0], [0], [1], [0, 0, 1, 1], [], []>} : vector<8x16xf32>, vector<16x32xf32>, vector<8x32xf32> -> vector<8x32xf32>
    %c24_128 = arith.constant 24 : index
    %c96_129 = arith.constant 96 : index
    %142 = vector.load %arg7[%c24_128, %c96_129] : memref<32x256xf32, #tpu.memory_space<vmem>>, vector<8x16xf32>
    %cst_130 = arith.constant dense<0.000000e+00> : vector<8x32xf32>
    %143 = tpu.matmul %142, %9, %cst_130 {dimension_numbers = #tpu.dot_dimension_numbers<[1], [0], [0], [1], [0, 0, 1, 1], [], []>} : vector<8x16xf32>, vector<16x32xf32>, vector<8x32xf32> -> vector<8x32xf32>
    %144 = arith.addf %141, %143 : vector<8x32xf32>
    %145 = vector.broadcast %5 : vector<8x1xf32> to vector<8x32xf32>
    %146 = arith.addf %144, %145 : vector<8x32xf32>
    %c0_131 = arith.constant 0 : index
    %c0_132 = arith.constant 0 : index
    %c13 = arith.constant 13 : index
    %c0_133 = arith.constant 0 : index
    %147 = vector.load %arg6[%c0_131, %c0_132, %c13, %c0_133] : memref<1x8x32x32xf32, #tpu.memory_space<vmem>>, vector<1x8x1x32xf32>
    %148 = vector.shape_cast %147 : vector<1x8x1x32xf32> to vector<8x32xf32>
    %149 = vector.shape_cast %146 : vector<8x32xf32> to vector<1x8x1x32xf32>
    tpu.vector_store %arg6[%c0_131, %c0_132, %c13, %c0_133], %149 {strides = array<i32>} : memref<1x8x32x32xf32, #tpu.memory_space<vmem>>, vector<1x8x1x32xf32>,
    %c0_134 = arith.constant 0 : index
    %c112 = arith.constant 112 : index
    %150 = vector.load %arg7[%c0_134, %c112] : memref<32x256xf32, #tpu.memory_space<vmem>>, vector<8x16xf32>
    %cst_135 = arith.constant dense<0.000000e+00> : vector<8x32xf32>
    %151 = tpu.matmul %150, %7, %cst_135 {dimension_numbers = #tpu.dot_dimension_numbers<[1], [0], [0], [1], [0, 0, 1, 1], [], []>} : vector<8x16xf32>, vector<16x32xf32>, vector<8x32xf32> -> vector<8x32xf32>
    %c8_136 = arith.constant 8 : index
    %c112_137 = arith.constant 112 : index
    %152 = vector.load %arg7[%c8_136, %c112_137] : memref<32x256xf32, #tpu.memory_space<vmem>>, vector<8x16xf32>
    %cst_138 = arith.constant dense<0.000000e+00> : vector<8x32xf32>
    %153 = tpu.matmul %152, %9, %cst_138 {dimension_numbers = #tpu.dot_dimension_numbers<[1], [0], [0], [1], [0, 0, 1, 1], [], []>} : vector<8x16xf32>, vector<16x32xf32>, vector<8x32xf32> -> vector<8x32xf32>
    %154 = arith.addf %151, %153 : vector<8x32xf32>
    %155 = vector.broadcast %5 : vector<8x1xf32> to vector<8x32xf32>
    %156 = arith.addf %154, %155 : vector<8x32xf32>
    %c0_139 = arith.constant 0 : index
    %c0_140 = arith.constant 0 : index
    %c14 = arith.constant 14 : index
    %c0_141 = arith.constant 0 : index
    %157 = vector.load %arg6[%c0_139, %c0_140, %c14, %c0_141] : memref<1x8x32x32xf32, #tpu.memory_space<vmem>>, vector<1x8x1x32xf32>
    %158 = vector.shape_cast %157 : vector<1x8x1x32xf32> to vector<8x32xf32>
    %159 = vector.shape_cast %156 : vector<8x32xf32> to vector<1x8x1x32xf32>
    tpu.vector_store %arg6[%c0_139, %c0_140, %c14, %c0_141], %159 {strides = array<i32>} : memref<1x8x32x32xf32, #tpu.memory_space<vmem>>, vector<1x8x1x32xf32>,
    %c16_142 = arith.constant 16 : index
    %c112_143 = arith.constant 112 : index
    %160 = vector.load %arg7[%c16_142, %c112_143] : memref<32x256xf32, #tpu.memory_space<vmem>>, vector<8x16xf32>
    %cst_144 = arith.constant dense<0.000000e+00> : vector<8x32xf32>
    %161 = tpu.matmul %160, %7, %cst_144 {dimension_numbers = #tpu.dot_dimension_numbers<[1], [0], [0], [1], [0, 0, 1, 1], [], []>} : vector<8x16xf32>, vector<16x32xf32>, vector<8x32xf32> -> vector<8x32xf32>
    %c24_145 = arith.constant 24 : index
    %c112_146 = arith.constant 112 : index
    %162 = vector.load %arg7[%c24_145, %c112_146] : memref<32x256xf32, #tpu.memory_space<vmem>>, vector<8x16xf32>
    %cst_147 = arith.constant dense<0.000000e+00> : vector<8x32xf32>
    %163 = tpu.matmul %162, %9, %cst_147 {dimension_numbers = #tpu.dot_dimension_numbers<[1], [0], [0], [1], [0, 0, 1, 1], [], []>} : vector<8x16xf32>, vector<16x32xf32>, vector<8x32xf32> -> vector<8x32xf32>
    %164 = arith.addf %161, %163 : vector<8x32xf32>
    %165 = vector.broadcast %5 : vector<8x1xf32> to vector<8x32xf32>
    %166 = arith.addf %164, %165 : vector<8x32xf32>
    %c0_148 = arith.constant 0 : index
    %c0_149 = arith.constant 0 : index
    %c15 = arith.constant 15 : index
    %c0_150 = arith.constant 0 : index
    %167 = vector.load %arg6[%c0_148, %c0_149, %c15, %c0_150] : memref<1x8x32x32xf32, #tpu.memory_space<vmem>>, vector<1x8x1x32xf32>
    %168 = vector.shape_cast %167 : vector<1x8x1x32xf32> to vector<8x32xf32>
    %169 = vector.shape_cast %166 : vector<8x32xf32> to vector<1x8x1x32xf32>
    tpu.vector_store %arg6[%c0_148, %c0_149, %c15, %c0_150], %169 {strides = array<i32>} : memref<1x8x32x32xf32, #tpu.memory_space<vmem>>, vector<1x8x1x32xf32>,
    %c0_151 = arith.constant 0 : index
    %c128 = arith.constant 128 : index
    %170 = vector.load %arg7[%c0_151, %c128] : memref<32x256xf32, #tpu.memory_space<vmem>>, vector<8x16xf32>
    %cst_152 = arith.constant dense<0.000000e+00> : vector<8x32xf32>
    %171 = tpu.matmul %170, %7, %cst_152 {dimension_numbers = #tpu.dot_dimension_numbers<[1], [0], [0], [1], [0, 0, 1, 1], [], []>} : vector<8x16xf32>, vector<16x32xf32>, vector<8x32xf32> -> vector<8x32xf32>
    %c8_153 = arith.constant 8 : index
    %c128_154 = arith.constant 128 : index
    %172 = vector.load %arg7[%c8_153, %c128_154] : memref<32x256xf32, #tpu.memory_space<vmem>>, vector<8x16xf32>
    %cst_155 = arith.constant dense<0.000000e+00> : vector<8x32xf32>
    %173 = tpu.matmul %172, %9, %cst_155 {dimension_numbers = #tpu.dot_dimension_numbers<[1], [0], [0], [1], [0, 0, 1, 1], [], []>} : vector<8x16xf32>, vector<16x32xf32>, vector<8x32xf32> -> vector<8x32xf32>
    %174 = arith.addf %171, %173 : vector<8x32xf32>
    %175 = vector.broadcast %5 : vector<8x1xf32> to vector<8x32xf32>
    %176 = arith.addf %174, %175 : vector<8x32xf32>
    %c0_156 = arith.constant 0 : index
    %c0_157 = arith.constant 0 : index
    %c16_158 = arith.constant 16 : index
    %c0_159 = arith.constant 0 : index
    %177 = vector.load %arg6[%c0_156, %c0_157, %c16_158, %c0_159] : memref<1x8x32x32xf32, #tpu.memory_space<vmem>>, vector<1x8x1x32xf32>
    %178 = vector.shape_cast %177 : vector<1x8x1x32xf32> to vector<8x32xf32>
    %179 = vector.shape_cast %176 : vector<8x32xf32> to vector<1x8x1x32xf32>
    tpu.vector_store %arg6[%c0_156, %c0_157, %c16_158, %c0_159], %179 {strides = array<i32>} : memref<1x8x32x32xf32, #tpu.memory_space<vmem>>, vector<1x8x1x32xf32>,
    %c16_160 = arith.constant 16 : index
    %c128_161 = arith.constant 128 : index
    %180 = vector.load %arg7[%c16_160, %c128_161] : memref<32x256xf32, #tpu.memory_space<vmem>>, vector<8x16xf32>
    %cst_162 = arith.constant dense<0.000000e+00> : vector<8x32xf32>
    %181 = tpu.matmul %180, %7, %cst_162 {dimension_numbers = #tpu.dot_dimension_numbers<[1], [0], [0], [1], [0, 0, 1, 1], [], []>} : vector<8x16xf32>, vector<16x32xf32>, vector<8x32xf32> -> vector<8x32xf32>
    %c24_163 = arith.constant 24 : index
    %c128_164 = arith.constant 128 : index
    %182 = vector.load %arg7[%c24_163, %c128_164] : memref<32x256xf32, #tpu.memory_space<vmem>>, vector<8x16xf32>
    %cst_165 = arith.constant dense<0.000000e+00> : vector<8x32xf32>
    %183 = tpu.matmul %182, %9, %cst_165 {dimension_numbers = #tpu.dot_dimension_numbers<[1], [0], [0], [1], [0, 0, 1, 1], [], []>} : vector<8x16xf32>, vector<16x32xf32>, vector<8x32xf32> -> vector<8x32xf32>
    %184 = arith.addf %181, %183 : vector<8x32xf32>
    %185 = vector.broadcast %5 : vector<8x1xf32> to vector<8x32xf32>
    %186 = arith.addf %184, %185 : vector<8x32xf32>
    %c0_166 = arith.constant 0 : index
    %c0_167 = arith.constant 0 : index
    %c17 = arith.constant 17 : index
    %c0_168 = arith.constant 0 : index
    %187 = vector.load %arg6[%c0_166, %c0_167, %c17, %c0_168] : memref<1x8x32x32xf32, #tpu.memory_space<vmem>>, vector<1x8x1x32xf32>
    %188 = vector.shape_cast %187 : vector<1x8x1x32xf32> to vector<8x32xf32>
    %189 = vector.shape_cast %186 : vector<8x32xf32> to vector<1x8x1x32xf32>
    tpu.vector_store %arg6[%c0_166, %c0_167, %c17, %c0_168], %189 {strides = array<i32>} : memref<1x8x32x32xf32, #tpu.memory_space<vmem>>, vector<1x8x1x32xf32>,
    %c0_169 = arith.constant 0 : index
    %c144 = arith.constant 144 : index
    %190 = vector.load %arg7[%c0_169, %c144] : memref<32x256xf32, #tpu.memory_space<vmem>>, vector<8x16xf32>
    %cst_170 = arith.constant dense<0.000000e+00> : vector<8x32xf32>
    %191 = tpu.matmul %190, %7, %cst_170 {dimension_numbers = #tpu.dot_dimension_numbers<[1], [0], [0], [1], [0, 0, 1, 1], [], []>} : vector<8x16xf32>, vector<16x32xf32>, vector<8x32xf32> -> vector<8x32xf32>
    %c8_171 = arith.constant 8 : index
    %c144_172 = arith.constant 144 : index
    %192 = vector.load %arg7[%c8_171, %c144_172] : memref<32x256xf32, #tpu.memory_space<vmem>>, vector<8x16xf32>
    %cst_173 = arith.constant dense<0.000000e+00> : vector<8x32xf32>
    %193 = tpu.matmul %192, %9, %cst_173 {dimension_numbers = #tpu.dot_dimension_numbers<[1], [0], [0], [1], [0, 0, 1, 1], [], []>} : vector<8x16xf32>, vector<16x32xf32>, vector<8x32xf32> -> vector<8x32xf32>
    %194 = arith.addf %191, %193 : vector<8x32xf32>
    %195 = vector.broadcast %5 : vector<8x1xf32> to vector<8x32xf32>
    %196 = arith.addf %194, %195 : vector<8x32xf32>
    %c0_174 = arith.constant 0 : index
    %c0_175 = arith.constant 0 : index
    %c18 = arith.constant 18 : index
    %c0_176 = arith.constant 0 : index
    %197 = vector.load %arg6[%c0_174, %c0_175, %c18, %c0_176] : memref<1x8x32x32xf32, #tpu.memory_space<vmem>>, vector<1x8x1x32xf32>
    %198 = vector.shape_cast %197 : vector<1x8x1x32xf32> to vector<8x32xf32>
    %199 = vector.shape_cast %196 : vector<8x32xf32> to vector<1x8x1x32xf32>
    tpu.vector_store %arg6[%c0_174, %c0_175, %c18, %c0_176], %199 {strides = array<i32>} : memref<1x8x32x32xf32, #tpu.memory_space<vmem>>, vector<1x8x1x32xf32>,
    %c16_177 = arith.constant 16 : index
    %c144_178 = arith.constant 144 : index
    %200 = vector.load %arg7[%c16_177, %c144_178] : memref<32x256xf32, #tpu.memory_space<vmem>>, vector<8x16xf32>
    %cst_179 = arith.constant dense<0.000000e+00> : vector<8x32xf32>
    %201 = tpu.matmul %200, %7, %cst_179 {dimension_numbers = #tpu.dot_dimension_numbers<[1], [0], [0], [1], [0, 0, 1, 1], [], []>} : vector<8x16xf32>, vector<16x32xf32>, vector<8x32xf32> -> vector<8x32xf32>
    %c24_180 = arith.constant 24 : index
    %c144_181 = arith.constant 144 : index
    %202 = vector.load %arg7[%c24_180, %c144_181] : memref<32x256xf32, #tpu.memory_space<vmem>>, vector<8x16xf32>
    %cst_182 = arith.constant dense<0.000000e+00> : vector<8x32xf32>
    %203 = tpu.matmul %202, %9, %cst_182 {dimension_numbers = #tpu.dot_dimension_numbers<[1], [0], [0], [1], [0, 0, 1, 1], [], []>} : vector<8x16xf32>, vector<16x32xf32>, vector<8x32xf32> -> vector<8x32xf32>
    %204 = arith.addf %201, %203 : vector<8x32xf32>
    %205 = vector.broadcast %5 : vector<8x1xf32> to vector<8x32xf32>
    %206 = arith.addf %204, %205 : vector<8x32xf32>
    %c0_183 = arith.constant 0 : index
    %c0_184 = arith.constant 0 : index
    %c19 = arith.constant 19 : index
    %c0_185 = arith.constant 0 : index
    %207 = vector.load %arg6[%c0_183, %c0_184, %c19, %c0_185] : memref<1x8x32x32xf32, #tpu.memory_space<vmem>>, vector<1x8x1x32xf32>
    %208 = vector.shape_cast %207 : vector<1x8x1x32xf32> to vector<8x32xf32>
    %209 = vector.shape_cast %206 : vector<8x32xf32> to vector<1x8x1x32xf32>
    tpu.vector_store %arg6[%c0_183, %c0_184, %c19, %c0_185], %209 {strides = array<i32>} : memref<1x8x32x32xf32, #tpu.memory_space<vmem>>, vector<1x8x1x32xf32>,
    %c0_186 = arith.constant 0 : index
    %c160 = arith.constant 160 : index
    %210 = vector.load %arg7[%c0_186, %c160] : memref<32x256xf32, #tpu.memory_space<vmem>>, vector<8x16xf32>
    %cst_187 = arith.constant dense<0.000000e+00> : vector<8x32xf32>
    %211 = tpu.matmul %210, %7, %cst_187 {dimension_numbers = #tpu.dot_dimension_numbers<[1], [0], [0], [1], [0, 0, 1, 1], [], []>} : vector<8x16xf32>, vector<16x32xf32>, vector<8x32xf32> -> vector<8x32xf32>
    %c8_188 = arith.constant 8 : index
    %c160_189 = arith.constant 160 : index
    %212 = vector.load %arg7[%c8_188, %c160_189] : memref<32x256xf32, #tpu.memory_space<vmem>>, vector<8x16xf32>
    %cst_190 = arith.constant dense<0.000000e+00> : vector<8x32xf32>
    %213 = tpu.matmul %212, %9, %cst_190 {dimension_numbers = #tpu.dot_dimension_numbers<[1], [0], [0], [1], [0, 0, 1, 1], [], []>} : vector<8x16xf32>, vector<16x32xf32>, vector<8x32xf32> -> vector<8x32xf32>
    %214 = arith.addf %211, %213 : vector<8x32xf32>
    %215 = vector.broadcast %5 : vector<8x1xf32> to vector<8x32xf32>
    %216 = arith.addf %214, %215 : vector<8x32xf32>
    %c0_191 = arith.constant 0 : index
    %c0_192 = arith.constant 0 : index
    %c20 = arith.constant 20 : index
    %c0_193 = arith.constant 0 : index
    %217 = vector.load %arg6[%c0_191, %c0_192, %c20, %c0_193] : memref<1x8x32x32xf32, #tpu.memory_space<vmem>>, vector<1x8x1x32xf32>
    %218 = vector.shape_cast %217 : vector<1x8x1x32xf32> to vector<8x32xf32>
    %219 = vector.shape_cast %216 : vector<8x32xf32> to vector<1x8x1x32xf32>
    tpu.vector_store %arg6[%c0_191, %c0_192, %c20, %c0_193], %219 {strides = array<i32>} : memref<1x8x32x32xf32, #tpu.memory_space<vmem>>, vector<1x8x1x32xf32>,
    %c16_194 = arith.constant 16 : index
    %c160_195 = arith.constant 160 : index
    %220 = vector.load %arg7[%c16_194, %c160_195] : memref<32x256xf32, #tpu.memory_space<vmem>>, vector<8x16xf32>
    %cst_196 = arith.constant dense<0.000000e+00> : vector<8x32xf32>
    %221 = tpu.matmul %220, %7, %cst_196 {dimension_numbers = #tpu.dot_dimension_numbers<[1], [0], [0], [1], [0, 0, 1, 1], [], []>} : vector<8x16xf32>, vector<16x32xf32>, vector<8x32xf32> -> vector<8x32xf32>
    %c24_197 = arith.constant 24 : index
    %c160_198 = arith.constant 160 : index
    %222 = vector.load %arg7[%c24_197, %c160_198] : memref<32x256xf32, #tpu.memory_space<vmem>>, vector<8x16xf32>
    %cst_199 = arith.constant dense<0.000000e+00> : vector<8x32xf32>
    %223 = tpu.matmul %222, %9, %cst_199 {dimension_numbers = #tpu.dot_dimension_numbers<[1], [0], [0], [1], [0, 0, 1, 1], [], []>} : vector<8x16xf32>, vector<16x32xf32>, vector<8x32xf32> -> vector<8x32xf32>
    %224 = arith.addf %221, %223 : vector<8x32xf32>
    %225 = vector.broadcast %5 : vector<8x1xf32> to vector<8x32xf32>
    %226 = arith.addf %224, %225 : vector<8x32xf32>
    %c0_200 = arith.constant 0 : index
    %c0_201 = arith.constant 0 : index
    %c21 = arith.constant 21 : index
    %c0_202 = arith.constant 0 : index
    %227 = vector.load %arg6[%c0_200, %c0_201, %c21, %c0_202] : memref<1x8x32x32xf32, #tpu.memory_space<vmem>>, vector<1x8x1x32xf32>
    %228 = vector.shape_cast %227 : vector<1x8x1x32xf32> to vector<8x32xf32>
    %229 = vector.shape_cast %226 : vector<8x32xf32> to vector<1x8x1x32xf32>
    tpu.vector_store %arg6[%c0_200, %c0_201, %c21, %c0_202], %229 {strides = array<i32>} : memref<1x8x32x32xf32, #tpu.memory_space<vmem>>, vector<1x8x1x32xf32>,
    %c0_203 = arith.constant 0 : index
    %c176 = arith.constant 176 : index
    %230 = vector.load %arg7[%c0_203, %c176] : memref<32x256xf32, #tpu.memory_space<vmem>>, vector<8x16xf32>
    %cst_204 = arith.constant dense<0.000000e+00> : vector<8x32xf32>
    %231 = tpu.matmul %230, %7, %cst_204 {dimension_numbers = #tpu.dot_dimension_numbers<[1], [0], [0], [1], [0, 0, 1, 1], [], []>} : vector<8x16xf32>, vector<16x32xf32>, vector<8x32xf32> -> vector<8x32xf32>
    %c8_205 = arith.constant 8 : index
    %c176_206 = arith.constant 176 : index
    %232 = vector.load %arg7[%c8_205, %c176_206] : memref<32x256xf32, #tpu.memory_space<vmem>>, vector<8x16xf32>
    %cst_207 = arith.constant dense<0.000000e+00> : vector<8x32xf32>
    %233 = tpu.matmul %232, %9, %cst_207 {dimension_numbers = #tpu.dot_dimension_numbers<[1], [0], [0], [1], [0, 0, 1, 1], [], []>} : vector<8x16xf32>, vector<16x32xf32>, vector<8x32xf32> -> vector<8x32xf32>
    %234 = arith.addf %231, %233 : vector<8x32xf32>
    %235 = vector.broadcast %5 : vector<8x1xf32> to vector<8x32xf32>
    %236 = arith.addf %234, %235 : vector<8x32xf32>
    %c0_208 = arith.constant 0 : index
    %c0_209 = arith.constant 0 : index
    %c22 = arith.constant 22 : index
    %c0_210 = arith.constant 0 : index
    %237 = vector.load %arg6[%c0_208, %c0_209, %c22, %c0_210] : memref<1x8x32x32xf32, #tpu.memory_space<vmem>>, vector<1x8x1x32xf32>
    %238 = vector.shape_cast %237 : vector<1x8x1x32xf32> to vector<8x32xf32>
    %239 = vector.shape_cast %236 : vector<8x32xf32> to vector<1x8x1x32xf32>
    tpu.vector_store %arg6[%c0_208, %c0_209, %c22, %c0_210], %239 {strides = array<i32>} : memref<1x8x32x32xf32, #tpu.memory_space<vmem>>, vector<1x8x1x32xf32>,
    %c16_211 = arith.constant 16 : index
    %c176_212 = arith.constant 176 : index
    %240 = vector.load %arg7[%c16_211, %c176_212] : memref<32x256xf32, #tpu.memory_space<vmem>>, vector<8x16xf32>
    %cst_213 = arith.constant dense<0.000000e+00> : vector<8x32xf32>
    %241 = tpu.matmul %240, %7, %cst_213 {dimension_numbers = #tpu.dot_dimension_numbers<[1], [0], [0], [1], [0, 0, 1, 1], [], []>} : vector<8x16xf32>, vector<16x32xf32>, vector<8x32xf32> -> vector<8x32xf32>
    %c24_214 = arith.constant 24 : index
    %c176_215 = arith.constant 176 : index
    %242 = vector.load %arg7[%c24_214, %c176_215] : memref<32x256xf32, #tpu.memory_space<vmem>>, vector<8x16xf32>
    %cst_216 = arith.constant dense<0.000000e+00> : vector<8x32xf32>
    %243 = tpu.matmul %242, %9, %cst_216 {dimension_numbers = #tpu.dot_dimension_numbers<[1], [0], [0], [1], [0, 0, 1, 1], [], []>} : vector<8x16xf32>, vector<16x32xf32>, vector<8x32xf32> -> vector<8x32xf32>
    %244 = arith.addf %241, %243 : vector<8x32xf32>
    %245 = vector.broadcast %5 : vector<8x1xf32> to vector<8x32xf32>
    %246 = arith.addf %244, %245 : vector<8x32xf32>
    %c0_217 = arith.constant 0 : index
    %c0_218 = arith.constant 0 : index
    %c23 = arith.constant 23 : index
    %c0_219 = arith.constant 0 : index
    %247 = vector.load %arg6[%c0_217, %c0_218, %c23, %c0_219] : memref<1x8x32x32xf32, #tpu.memory_space<vmem>>, vector<1x8x1x32xf32>
    %248 = vector.shape_cast %247 : vector<1x8x1x32xf32> to vector<8x32xf32>
    %249 = vector.shape_cast %246 : vector<8x32xf32> to vector<1x8x1x32xf32>
    tpu.vector_store %arg6[%c0_217, %c0_218, %c23, %c0_219], %249 {strides = array<i32>} : memref<1x8x32x32xf32, #tpu.memory_space<vmem>>, vector<1x8x1x32xf32>,
    %c0_220 = arith.constant 0 : index
    %c192 = arith.constant 192 : index
    %250 = vector.load %arg7[%c0_220, %c192] : memref<32x256xf32, #tpu.memory_space<vmem>>, vector<8x16xf32>
    %cst_221 = arith.constant dense<0.000000e+00> : vector<8x32xf32>
    %251 = tpu.matmul %250, %7, %cst_221 {dimension_numbers = #tpu.dot_dimension_numbers<[1], [0], [0], [1], [0, 0, 1, 1], [], []>} : vector<8x16xf32>, vector<16x32xf32>, vector<8x32xf32> -> vector<8x32xf32>
    %c8_222 = arith.constant 8 : index
    %c192_223 = arith.constant 192 : index
    %252 = vector.load %arg7[%c8_222, %c192_223] : memref<32x256xf32, #tpu.memory_space<vmem>>, vector<8x16xf32>
    %cst_224 = arith.constant dense<0.000000e+00> : vector<8x32xf32>
    %253 = tpu.matmul %252, %9, %cst_224 {dimension_numbers = #tpu.dot_dimension_numbers<[1], [0], [0], [1], [0, 0, 1, 1], [], []>} : vector<8x16xf32>, vector<16x32xf32>, vector<8x32xf32> -> vector<8x32xf32>
    %254 = arith.addf %251, %253 : vector<8x32xf32>
    %255 = vector.broadcast %5 : vector<8x1xf32> to vector<8x32xf32>
    %256 = arith.addf %254, %255 : vector<8x32xf32>
    %c0_225 = arith.constant 0 : index
    %c0_226 = arith.constant 0 : index
    %c24_227 = arith.constant 24 : index
    %c0_228 = arith.constant 0 : index
    %257 = vector.load %arg6[%c0_225, %c0_226, %c24_227, %c0_228] : memref<1x8x32x32xf32, #tpu.memory_space<vmem>>, vector<1x8x1x32xf32>
    %258 = vector.shape_cast %257 : vector<1x8x1x32xf32> to vector<8x32xf32>
    %259 = vector.shape_cast %256 : vector<8x32xf32> to vector<1x8x1x32xf32>
    tpu.vector_store %arg6[%c0_225, %c0_226, %c24_227, %c0_228], %259 {strides = array<i32>} : memref<1x8x32x32xf32, #tpu.memory_space<vmem>>, vector<1x8x1x32xf32>,
    %c16_229 = arith.constant 16 : index
    %c192_230 = arith.constant 192 : index
    %260 = vector.load %arg7[%c16_229, %c192_230] : memref<32x256xf32, #tpu.memory_space<vmem>>, vector<8x16xf32>
    %cst_231 = arith.constant dense<0.000000e+00> : vector<8x32xf32>
    %261 = tpu.matmul %260, %7, %cst_231 {dimension_numbers = #tpu.dot_dimension_numbers<[1], [0], [0], [1], [0, 0, 1, 1], [], []>} : vector<8x16xf32>, vector<16x32xf32>, vector<8x32xf32> -> vector<8x32xf32>
    %c24_232 = arith.constant 24 : index
    %c192_233 = arith.constant 192 : index
    %262 = vector.load %arg7[%c24_232, %c192_233] : memref<32x256xf32, #tpu.memory_space<vmem>>, vector<8x16xf32>
    %cst_234 = arith.constant dense<0.000000e+00> : vector<8x32xf32>
    %263 = tpu.matmul %262, %9, %cst_234 {dimension_numbers = #tpu.dot_dimension_numbers<[1], [0], [0], [1], [0, 0, 1, 1], [], []>} : vector<8x16xf32>, vector<16x32xf32>, vector<8x32xf32> -> vector<8x32xf32>
    %264 = arith.addf %261, %263 : vector<8x32xf32>
    %265 = vector.broadcast %5 : vector<8x1xf32> to vector<8x32xf32>
    %266 = arith.addf %264, %265 : vector<8x32xf32>
    %c0_235 = arith.constant 0 : index
    %c0_236 = arith.constant 0 : index
    %c25 = arith.constant 25 : index
    %c0_237 = arith.constant 0 : index
    %267 = vector.load %arg6[%c0_235, %c0_236, %c25, %c0_237] : memref<1x8x32x32xf32, #tpu.memory_space<vmem>>, vector<1x8x1x32xf32>
    %268 = vector.shape_cast %267 : vector<1x8x1x32xf32> to vector<8x32xf32>
    %269 = vector.shape_cast %266 : vector<8x32xf32> to vector<1x8x1x32xf32>
    tpu.vector_store %arg6[%c0_235, %c0_236, %c25, %c0_237], %269 {strides = array<i32>} : memref<1x8x32x32xf32, #tpu.memory_space<vmem>>, vector<1x8x1x32xf32>,
    %c0_238 = arith.constant 0 : index
    %c208 = arith.constant 208 : index
    %270 = vector.load %arg7[%c0_238, %c208] : memref<32x256xf32, #tpu.memory_space<vmem>>, vector<8x16xf32>
    %cst_239 = arith.constant dense<0.000000e+00> : vector<8x32xf32>
    %271 = tpu.matmul %270, %7, %cst_239 {dimension_numbers = #tpu.dot_dimension_numbers<[1], [0], [0], [1], [0, 0, 1, 1], [], []>} : vector<8x16xf32>, vector<16x32xf32>, vector<8x32xf32> -> vector<8x32xf32>
    %c8_240 = arith.constant 8 : index
    %c208_241 = arith.constant 208 : index
    %272 = vector.load %arg7[%c8_240, %c208_241] : memref<32x256xf32, #tpu.memory_space<vmem>>, vector<8x16xf32>
    %cst_242 = arith.constant dense<0.000000e+00> : vector<8x32xf32>
    %273 = tpu.matmul %272, %9, %cst_242 {dimension_numbers = #tpu.dot_dimension_numbers<[1], [0], [0], [1], [0, 0, 1, 1], [], []>} : vector<8x16xf32>, vector<16x32xf32>, vector<8x32xf32> -> vector<8x32xf32>
    %274 = arith.addf %271, %273 : vector<8x32xf32>
    %275 = vector.broadcast %5 : vector<8x1xf32> to vector<8x32xf32>
    %276 = arith.addf %274, %275 : vector<8x32xf32>
    %c0_243 = arith.constant 0 : index
    %c0_244 = arith.constant 0 : index
    %c26 = arith.constant 26 : index
    %c0_245 = arith.constant 0 : index
    %277 = vector.load %arg6[%c0_243, %c0_244, %c26, %c0_245] : memref<1x8x32x32xf32, #tpu.memory_space<vmem>>, vector<1x8x1x32xf32>
    %278 = vector.shape_cast %277 : vector<1x8x1x32xf32> to vector<8x32xf32>
    %279 = vector.shape_cast %276 : vector<8x32xf32> to vector<1x8x1x32xf32>
    tpu.vector_store %arg6[%c0_243, %c0_244, %c26, %c0_245], %279 {strides = array<i32>} : memref<1x8x32x32xf32, #tpu.memory_space<vmem>>, vector<1x8x1x32xf32>,
    %c16_246 = arith.constant 16 : index
    %c208_247 = arith.constant 208 : index
    %280 = vector.load %arg7[%c16_246, %c208_247] : memref<32x256xf32, #tpu.memory_space<vmem>>, vector<8x16xf32>
    %cst_248 = arith.constant dense<0.000000e+00> : vector<8x32xf32>
    %281 = tpu.matmul %280, %7, %cst_248 {dimension_numbers = #tpu.dot_dimension_numbers<[1], [0], [0], [1], [0, 0, 1, 1], [], []>} : vector<8x16xf32>, vector<16x32xf32>, vector<8x32xf32> -> vector<8x32xf32>
    %c24_249 = arith.constant 24 : index
    %c208_250 = arith.constant 208 : index
    %282 = vector.load %arg7[%c24_249, %c208_250] : memref<32x256xf32, #tpu.memory_space<vmem>>, vector<8x16xf32>
    %cst_251 = arith.constant dense<0.000000e+00> : vector<8x32xf32>
    %283 = tpu.matmul %282, %9, %cst_251 {dimension_numbers = #tpu.dot_dimension_numbers<[1], [0], [0], [1], [0, 0, 1, 1], [], []>} : vector<8x16xf32>, vector<16x32xf32>, vector<8x32xf32> -> vector<8x32xf32>
    %284 = arith.addf %281, %283 : vector<8x32xf32>
    %285 = vector.broadcast %5 : vector<8x1xf32> to vector<8x32xf32>
    %286 = arith.addf %284, %285 : vector<8x32xf32>
    %c0_252 = arith.constant 0 : index
    %c0_253 = arith.constant 0 : index
    %c27 = arith.constant 27 : index
    %c0_254 = arith.constant 0 : index
    %287 = vector.load %arg6[%c0_252, %c0_253, %c27, %c0_254] : memref<1x8x32x32xf32, #tpu.memory_space<vmem>>, vector<1x8x1x32xf32>
    %288 = vector.shape_cast %287 : vector<1x8x1x32xf32> to vector<8x32xf32>
    %289 = vector.shape_cast %286 : vector<8x32xf32> to vector<1x8x1x32xf32>
    tpu.vector_store %arg6[%c0_252, %c0_253, %c27, %c0_254], %289 {strides = array<i32>} : memref<1x8x32x32xf32, #tpu.memory_space<vmem>>, vector<1x8x1x32xf32>,
    %c0_255 = arith.constant 0 : index
    %c224 = arith.constant 224 : index
    %290 = vector.load %arg7[%c0_255, %c224] : memref<32x256xf32, #tpu.memory_space<vmem>>, vector<8x16xf32>
    %cst_256 = arith.constant dense<0.000000e+00> : vector<8x32xf32>
    %291 = tpu.matmul %290, %7, %cst_256 {dimension_numbers = #tpu.dot_dimension_numbers<[1], [0], [0], [1], [0, 0, 1, 1], [], []>} : vector<8x16xf32>, vector<16x32xf32>, vector<8x32xf32> -> vector<8x32xf32>
    %c8_257 = arith.constant 8 : index
    %c224_258 = arith.constant 224 : index
    %292 = vector.load %arg7[%c8_257, %c224_258] : memref<32x256xf32, #tpu.memory_space<vmem>>, vector<8x16xf32>
    %cst_259 = arith.constant dense<0.000000e+00> : vector<8x32xf32>
    %293 = tpu.matmul %292, %9, %cst_259 {dimension_numbers = #tpu.dot_dimension_numbers<[1], [0], [0], [1], [0, 0, 1, 1], [], []>} : vector<8x16xf32>, vector<16x32xf32>, vector<8x32xf32> -> vector<8x32xf32>
    %294 = arith.addf %291, %293 : vector<8x32xf32>
    %295 = vector.broadcast %5 : vector<8x1xf32> to vector<8x32xf32>
    %296 = arith.addf %294, %295 : vector<8x32xf32>
    %c0_260 = arith.constant 0 : index
    %c0_261 = arith.constant 0 : index
    %c28 = arith.constant 28 : index
    %c0_262 = arith.constant 0 : index
    %297 = vector.load %arg6[%c0_260, %c0_261, %c28, %c0_262] : memref<1x8x32x32xf32, #tpu.memory_space<vmem>>, vector<1x8x1x32xf32>
    %298 = vector.shape_cast %297 : vector<1x8x1x32xf32> to vector<8x32xf32>
    %299 = vector.shape_cast %296 : vector<8x32xf32> to vector<1x8x1x32xf32>
    tpu.vector_store %arg6[%c0_260, %c0_261, %c28, %c0_262], %299 {strides = array<i32>} : memref<1x8x32x32xf32, #tpu.memory_space<vmem>>, vector<1x8x1x32xf32>,
    %c16_263 = arith.constant 16 : index
    %c224_264 = arith.constant 224 : index
    %300 = vector.load %arg7[%c16_263, %c224_264] : memref<32x256xf32, #tpu.memory_space<vmem>>, vector<8x16xf32>
    %cst_265 = arith.constant dense<0.000000e+00> : vector<8x32xf32>
    %301 = tpu.matmul %300, %7, %cst_265 {dimension_numbers = #tpu.dot_dimension_numbers<[1], [0], [0], [1], [0, 0, 1, 1], [], []>} : vector<8x16xf32>, vector<16x32xf32>, vector<8x32xf32> -> vector<8x32xf32>
    %c24_266 = arith.constant 24 : index
    %c224_267 = arith.constant 224 : index
    %302 = vector.load %arg7[%c24_266, %c224_267] : memref<32x256xf32, #tpu.memory_space<vmem>>, vector<8x16xf32>
    %cst_268 = arith.constant dense<0.000000e+00> : vector<8x32xf32>
    %303 = tpu.matmul %302, %9, %cst_268 {dimension_numbers = #tpu.dot_dimension_numbers<[1], [0], [0], [1], [0, 0, 1, 1], [], []>} : vector<8x16xf32>, vector<16x32xf32>, vector<8x32xf32> -> vector<8x32xf32>
    %304 = arith.addf %301, %303 : vector<8x32xf32>
    %305 = vector.broadcast %5 : vector<8x1xf32> to vector<8x32xf32>
    %306 = arith.addf %304, %305 : vector<8x32xf32>
    %c0_269 = arith.constant 0 : index
    %c0_270 = arith.constant 0 : index
    %c29 = arith.constant 29 : index
    %c0_271 = arith.constant 0 : index
    %307 = vector.load %arg6[%c0_269, %c0_270, %c29, %c0_271] : memref<1x8x32x32xf32, #tpu.memory_space<vmem>>, vector<1x8x1x32xf32>
    %308 = vector.shape_cast %307 : vector<1x8x1x32xf32> to vector<8x32xf32>
    %309 = vector.shape_cast %306 : vector<8x32xf32> to vector<1x8x1x32xf32>
    tpu.vector_store %arg6[%c0_269, %c0_270, %c29, %c0_271], %309 {strides = array<i32>} : memref<1x8x32x32xf32, #tpu.memory_space<vmem>>, vector<1x8x1x32xf32>,
    %c0_272 = arith.constant 0 : index
    %c240 = arith.constant 240 : index
    %310 = vector.load %arg7[%c0_272, %c240] : memref<32x256xf32, #tpu.memory_space<vmem>>, vector<8x16xf32>
    %cst_273 = arith.constant dense<0.000000e+00> : vector<8x32xf32>
    %311 = tpu.matmul %310, %7, %cst_273 {dimension_numbers = #tpu.dot_dimension_numbers<[1], [0], [0], [1], [0, 0, 1, 1], [], []>} : vector<8x16xf32>, vector<16x32xf32>, vector<8x32xf32> -> vector<8x32xf32>
    %c8_274 = arith.constant 8 : index
    %c240_275 = arith.constant 240 : index
    %312 = vector.load %arg7[%c8_274, %c240_275] : memref<32x256xf32, #tpu.memory_space<vmem>>, vector<8x16xf32>
    %cst_276 = arith.constant dense<0.000000e+00> : vector<8x32xf32>
    %313 = tpu.matmul %312, %9, %cst_276 {dimension_numbers = #tpu.dot_dimension_numbers<[1], [0], [0], [1], [0, 0, 1, 1], [], []>} : vector<8x16xf32>, vector<16x32xf32>, vector<8x32xf32> -> vector<8x32xf32>
    %314 = arith.addf %311, %313 : vector<8x32xf32>
    %315 = vector.broadcast %5 : vector<8x1xf32> to vector<8x32xf32>
    %316 = arith.addf %314, %315 : vector<8x32xf32>
    %c0_277 = arith.constant 0 : index
    %c0_278 = arith.constant 0 : index
    %c30 = arith.constant 30 : index
    %c0_279 = arith.constant 0 : index
    %317 = vector.load %arg6[%c0_277, %c0_278, %c30, %c0_279] : memref<1x8x32x32xf32, #tpu.memory_space<vmem>>, vector<1x8x1x32xf32>
    %318 = vector.shape_cast %317 : vector<1x8x1x32xf32> to vector<8x32xf32>
    %319 = vector.shape_cast %316 : vector<8x32xf32> to vector<1x8x1x32xf32>
    tpu.vector_store %arg6[%c0_277, %c0_278, %c30, %c0_279], %319 {strides = array<i32>} : memref<1x8x32x32xf32, #tpu.memory_space<vmem>>, vector<1x8x1x32xf32>,
    %c16_280 = arith.constant 16 : index
    %c240_281 = arith.constant 240 : index
    %320 = vector.load %arg7[%c16_280, %c240_281] : memref<32x256xf32, #tpu.memory_space<vmem>>, vector<8x16xf32>
    %cst_282 = arith.constant dense<0.000000e+00> : vector<8x32xf32>
    %321 = tpu.matmul %320, %7, %cst_282 {dimension_numbers = #tpu.dot_dimension_numbers<[1], [0], [0], [1], [0, 0, 1, 1], [], []>} : vector<8x16xf32>, vector<16x32xf32>, vector<8x32xf32> -> vector<8x32xf32>
    %c24_283 = arith.constant 24 : index
    %c240_284 = arith.constant 240 : index
    %322 = vector.load %arg7[%c24_283, %c240_284] : memref<32x256xf32, #tpu.memory_space<vmem>>, vector<8x16xf32>
    %cst_285 = arith.constant dense<0.000000e+00> : vector<8x32xf32>
    %323 = tpu.matmul %322, %9, %cst_285 {dimension_numbers = #tpu.dot_dimension_numbers<[1], [0], [0], [1], [0, 0, 1, 1], [], []>} : vector<8x16xf32>, vector<16x32xf32>, vector<8x32xf32> -> vector<8x32xf32>
    %324 = arith.addf %321, %323 : vector<8x32xf32>
    %325 = vector.broadcast %5 : vector<8x1xf32> to vector<8x32xf32>
    %326 = arith.addf %324, %325 : vector<8x32xf32>
    %c0_286 = arith.constant 0 : index
    %c0_287 = arith.constant 0 : index
    %c31 = arith.constant 31 : index
    %c0_288 = arith.constant 0 : index
    %327 = vector.load %arg6[%c0_286, %c0_287, %c31, %c0_288] : memref<1x8x32x32xf32, #tpu.memory_space<vmem>>, vector<1x8x1x32xf32>
    %328 = vector.shape_cast %327 : vector<1x8x1x32xf32> to vector<8x32xf32>
    %329 = vector.shape_cast %326 : vector<8x32xf32> to vector<1x8x1x32xf32>
    tpu.vector_store %arg6[%c0_286, %c0_287, %c31, %c0_288], %329 {strides = array<i32>} : memref<1x8x32x32xf32, #tpu.memory_space<vmem>>, vector<1x8x1x32xf32>,
    return
  }
  func.func @transform_0(%arg0: i32, %arg1: i32) -> (i32, i32, i32) {
    %c0_i32 = arith.constant 0 : i32
    %c0_i32_0 = arith.constant 0 : i32
    return %arg0, %c0_i32, %arg1 : i32, i32, i32
  }
  func.func @transform_1(%arg0: i32, %arg1: i32) -> (i32, i32) {
    %c0_i32 = arith.constant 0 : i32
    %c0_i32_0 = arith.constant 0 : i32
    %c0_i32_1 = arith.constant 0 : i32
    return %c0_i32, %c0_i32_0 : i32, i32
  }
  func.func @transform_2(%arg0: i32, %arg1: i32) -> (i32, i32) {
    %c0_i32 = arith.constant 0 : i32
    %c0_i32_0 = arith.constant 0 : i32
    %c0_i32_1 = arith.constant 0 : i32
    return %c0_i32, %c0_i32_0 : i32, i32
  }
  func.func @transform_3(%arg0: i32, %arg1: i32) -> (i32, i32, i32) {
    %c0_i32 = arith.constant 0 : i32
    %c0_i32_0 = arith.constant 0 : i32
    %c0_i32_1 = arith.constant 0 : i32
    %c0_i32_2 = arith.constant 0 : i32
    return %c0_i32, %c0_i32_0, %c0_i32_1 : i32, i32, i32
  }
  func.func @transform_4(%arg0: i32, %arg1: i32) -> (i32, i32, i32, i32) {
    %c0_i32 = arith.constant 0 : i32
    %c0_i32_0 = arith.constant 0 : i32
    %c0_i32_1 = arith.constant 0 : i32
    return %arg0, %c0_i32, %arg1, %c0_i32_0 : i32, i32, i32, i32
  }
}

</mosaic_0001>

<llo_original>
// kernel: upsample_forward.1
$region0: #{upsample_forward.1}
  #allocation0 [shape = 'u32[]', space=smem, size = 0x4, offset = 0x4, fixed_abs, tag = 'smem constant byte address 0x4 - core index']
  #allocation1 [shape = 'u32[72,128]{1,0:T(1,128)}', space=vmem, size = 0x9000, scoped, tag = 'internal scratch']
  #allocation2 [shape = 'f32[32,256]{1,0:T(8,128)}', space=vmem, size = 0x8000, scoped, tag = 'scratch operand']
  %s0 = inlined_call_operand.vmem [shape: f32[2,4,256], index: 0, kind: input, shape index: {}]
  %s1 = inlined_call_operand.vmem [shape: f32[32,4], index: 1, kind: input, shape index: {}]
  %s2 = inlined_call_operand.vmem [shape: f32[8,1], index: 2, kind: input, shape index: {}]
  %s3 = inlined_call_operand.vmem [shape: f32[2,16,32], index: 3, kind: input, shape index: {}]
  %s4 = inlined_call_operand.hbm [shape: f32[2,8,32,32], index: 4, kind: output, shape index: {}]
  %s5 = sld [smem:[#allocation0]]
  $region49: #{upsample_forward.1} parent=0
    _
  %s7 = ssub.s32 1, %s5
  %s8 = scalar_select 0, %s7, %s5
  $region1: #{upsample_forward.1} parent=0
    #allocation3 [shape = 'u8[262144]{0}', space=vmem, size = 0x40000, scoped, tag = 'output window, operand 0']
    #allocation4 [shape = 's32[2]{0}', space=sflag, size = 0x8, scoped, tag = 'scoped memory for upsample_forward.1']
    %9 = vsyncpa [#allocation4], 0
    %s10 = scalar_lea.sflag [#allocation4], 1
    %11 = vsyncpa %s10, 0
    loop: start=0, step=1, limit=4
    $region2: #{upsample_forward.1} parent=1 // loop_pre_header
      _
    $region3: #{upsample_forward.1} parent=1 // loop_header
      %s13 = sphi 0, %s17
      %p14 = scmp.ge.s32.totalorder %s13, 4
      %s20 = sphi 0, %s32
      %s21 = sphi 0, %s28
      %s22 = sphi 0, %s20
      %s23 = sphi 0, %s21
      %s24 = sphi 0, %s22
      %s25 = sphi 0, %s23
      %s37 = sphi 0, %s39
      %s40 = sphi 0, %s37
      %s41 = sphi 0, %s40
      %s57 = sphi 0, %s41
      %s61 = sphi 0, %s61
      %s63 = sphi 0, %s61
      %s64 = sphi 0, %s63
      %s78 = sphi 0, %s64
      %s82 = sphi 0, %s82
      %s84 = sphi 0, %s82
      %s85 = sphi 0, %s84
      %s99 = sphi 0, %s85
      %s103 = sphi 0, %s103
      %s105 = sphi 0, %s103
      %s106 = sphi 0, %s105
      %s120 = sphi 0, %s106
      %s128 = sphi 0, %s130
      %s131 = sphi 0, %s128
      %s132 = sphi 0, %s131
      %s148 = sphi 0, %s132
    $region4: #{upsample_forward.1} parent=1 // loop_header_branch
      %16 = sbr.rel (%p14) target = $region8
    $region5: #{upsample_forward.1} parent=1 // loop_body
      %s18 = ssub.s32 %s13, 1
      %s19 = ssub.s32 %s13, 2
      %s26 = sadd.s32 1, %s21
      %p27 = scmp.ge.s32.totalorder %s26, 1
      %s28 = scalar_select %p27, 0, %s26
      %s29 = sadd.s32 1, %s20
      %s30 = scalar_select %p27, %s29, %s20
      %p31 = scmp.ge.s32.totalorder %s30, 2
      %s32 = scalar_select %p31, 0, %s30
      %s33 = ssub.s32 %s20, %s32
      %s34 = ssub.s32 %s21, %s28
      %s35 = sor.u32 %s33, %s34
      %p36 = scmp.eq.s32.totalorder %s35, 0
      %s38 = sadd.s32 %s37, 1
      %s39 = scalar_select %p36, %s37, %s38
      %p42 = pneg %p36
      %p43 = scmp.eq.s32.totalorder %s13, 1
      %p44 = por %p42, %p43
      %p45 = scmp.ne.s32.totalorder %s37, %s40
      %p46 = scmp.eq.s32.totalorder %s13, 0
      %p47 = por %p45, %p46
      %p48 = scmp.ne.s32.totalorder %s37, %s40
      %p49 = scmp.eq.s32.totalorder %s18, 1
      %p50 = por %p48, %p49
      %p51 = scmp.ne.s32.totalorder %s40, %s41
      %p52 = scmp.eq.s32.totalorder %s18, 0
      %p53 = por %p51, %p52
      %p54 = scmp.ne.s32.totalorder %s40, %s41
      %p55 = scmp.eq.s32.totalorder %s19, 1
      %p56 = por %p54, %p55
      %p58 = scmp.ne.s32.totalorder %s41, %s57
      %p59 = scmp.eq.s32.totalorder %s19, 0
      %p60 = por %p58, %p59
      %s62 = sadd.s32 %s61, 1
      %p65 = scmp.eq.s32.totalorder %s13, 1
      %p66 = scmp.ne.s32.totalorder %s61, %s63
      %p67 = scmp.eq.s32.totalorder %s13, 0
      %p68 = por %p66, %p67
      %p69 = scmp.ne.s32.totalorder %s61, %s63
      %p70 = scmp.eq.s32.totalorder %s18, 1
      %p71 = por %p69, %p70
      %p72 = scmp.ne.s32.totalorder %s63, %s64
      %p73 = scmp.eq.s32.totalorder %s18, 0
      %p74 = por %p72, %p73
      %p75 = scmp.ne.s32.totalorder %s63, %s64
      %p76 = scmp.eq.s32.totalorder %s19, 1
      %p77 = por %p75, %p76
      %p79 = scmp.ne.s32.totalorder %s64, %s78
      %p80 = scmp.eq.s32.totalorder %s19, 0
      %p81 = por %p79, %p80
      %s83 = sadd.s32 %s82, 1
      %p86 = scmp.eq.s32.totalorder %s13, 1
      %p87 = scmp.ne.s32.totalorder %s82, %s84
      %p88 = scmp.eq.s32.totalorder %s13, 0
      %p89 = por %p87, %p88
      %p90 = scmp.ne.s32.totalorder %s82, %s84
      %p91 = scmp.eq.s32.totalorder %s18, 1
      %p92 = por %p90, %p91
      %p93 = scmp.ne.s32.totalorder %s84, %s85
      %p94 = scmp.eq.s32.totalorder %s18, 0
      %p95 = por %p93, %p94
      %p96 = scmp.ne.s32.totalorder %s84, %s85
      %p97 = scmp.eq.s32.totalorder %s19, 1
      %p98 = por %p96, %p97
      %p100 = scmp.ne.s32.totalorder %s85, %s99
      %p101 = scmp.eq.s32.totalorder %s19, 0
      %p102 = por %p100, %p101
      %s104 = sadd.s32 %s103, 1
      %p107 = scmp.eq.s32.totalorder %s13, 1
      %p108 = scmp.ne.s32.totalorder %s103, %s105
      %p109 = scmp.eq.s32.totalorder %s13, 0
      %p110 = por %p108, %p109
      %p111 = scmp.ne.s32.totalorder %s103, %s105
      %p112 = scmp.eq.s32.totalorder %s18, 1
      %p113 = por %p111, %p112
      %p114 = scmp.ne.s32.totalorder %s105, %s106
      %p115 = scmp.eq.s32.totalorder %s18, 0
      %p116 = por %p114, %p115
      %p117 = scmp.ne.s32.totalorder %s105, %s106
      %p118 = scmp.eq.s32.totalorder %s19, 1
      %p119 = por %p117, %p118
      %p121 = scmp.ne.s32.totalorder %s106, %s120
      %p122 = scmp.eq.s32.totalorder %s19, 0
      %p123 = por %p121, %p122
      %s124 = ssub.s32 %s20, %s32
      %s125 = ssub.s32 %s21, %s28
      %s126 = sor.u32 %s124, %s125
      %p127 = scmp.eq.s32.totalorder %s126, 0
      %s129 = sadd.s32 %s128, 1
      %s130 = scalar_select %p127, %s128, %s129
      %p133 = pneg %p127
      %p134 = scmp.eq.s32.totalorder %s13, 1
      %p135 = por %p133, %p134
      %p136 = scmp.ne.s32.totalorder %s128, %s131
      %p137 = scmp.eq.s32.totalorder %s13, 0
      %p138 = por %p136, %p137
      %p139 = scmp.ne.s32.totalorder %s128, %s131
      %p140 = scmp.eq.s32.totalorder %s18, 1
      %p141 = por %p139, %p140
      %p142 = scmp.ne.s32.totalorder %s131, %s132
      %p143 = scmp.eq.s32.totalorder %s18, 0
      %p144 = por %p142, %p143
      %p145 = scmp.ne.s32.totalorder %s131, %s132
      %p146 = scmp.eq.s32.totalorder %s19, 1
      %p147 = por %p145, %p146
      %p149 = scmp.ne.s32.totalorder %s132, %s148
      %p150 = scmp.eq.s32.totalorder %s19, 0
      %p151 = por %p149, %p150
      %p152 = scmp.le.s32.totalorder 1, %s13
      %p153 = scmp.lt.s32.totalorder %s13, 3
      %p154 = pnand %p152, %p153
      %p155 = pneg %p154
      // Predicated region
      $region9: #{upsample_forward.1} parent=5 // pred_check
        _
      $region10: #{upsample_forward.1} parent=5 // pred_check_branch
        %157 = sbr.rel (%p154) target = $region12
      $region11: #{upsample_forward.1} parent=5 // pred_region
        %s158 = ssub.s32 %s13, 1
        // Predicated region
        $region13: #{upsample_forward.1} parent=11 // pred_check
          %p159 = pneg %p74
        $region14: #{upsample_forward.1} parent=11 // pred_check_branch
          %161 = sbr.rel (%p159) target = $region16
        $region15: #{upsample_forward.1} parent=11 // pred_region
          _
        $region16: #{upsample_forward.1} parent=11 // pred_fallthru
          _
        // Predicated region
        $region17: #{upsample_forward.1} parent=11 // pred_check
          %p162 = pneg %p95
        $region18: #{upsample_forward.1} parent=11 // pred_check_branch
          %164 = sbr.rel (%p162) target = $region20
        $region19: #{upsample_forward.1} parent=11 // pred_region
          _
        $region20: #{upsample_forward.1} parent=11 // pred_fallthru
          _
        // Predicated region
        $region21: #{upsample_forward.1} parent=11 // pred_check
          %p165 = pneg %p116
        $region22: #{upsample_forward.1} parent=11 // pred_check_branch
          %167 = sbr.rel (%p165) target = $region24
        $region23: #{upsample_forward.1} parent=11 // pred_region
          _
        $region24: #{upsample_forward.1} parent=11 // pred_fallthru
          _
      $region12: #{upsample_forward.1} parent=5 // pred_fallthru
        _
      %p168 = scmp.lt.s32.totalorder %s13, 2
      // Predicated region
      $region25: #{upsample_forward.1} parent=5 // pred_check
        %p169 = pneg %p168
      $region26: #{upsample_forward.1} parent=5 // pred_check_branch
        %171 = sbr.rel (%p169) target = $region28
      $region27: #{upsample_forward.1} parent=5 // pred_region
        // Predicated region
        $region29: #{upsample_forward.1} parent=27 // pred_check
          %p172 = pneg %p47
        $region30: #{upsample_forward.1} parent=27 // pred_check_branch
          %174 = sbr.rel (%p172) target = $region32
        $region31: #{upsample_forward.1} parent=27 // pred_region
          %s175 = smul.u32 2, %s21
          %p176 = scmp.lt.s32.totalorder %s20, 1
          %s177 = scalar_select %p176, %s20, 1
          %p178 = scmp.lt.s32.totalorder %s175, 1
          %s179 = scalar_select %p178, %s175, 1
          %s180 = smul.addr %s177, 2
          %s181 = sadd.s32 %s179, %s180
          %s182 = smul.addr %s181, 4
          %s183 = scalar_lea.vmem %s0, %s182
          %s184 = smul.u32 2, %s21
        $region32: #{upsample_forward.1} parent=27 // pred_fallthru
          _
      $region28: #{upsample_forward.1} parent=5 // pred_fallthru
        _
      %p185 = scmp.le.s32.totalorder 1, %s13
      %p186 = scmp.lt.s32.totalorder %s13, 3
      %p187 = pnand %p185, %p186
      %p188 = pneg %p187
      // Predicated region
      $region33: #{upsample_forward.1} parent=5 // pred_check
        _
      $region34: #{upsample_forward.1} parent=5 // pred_check_branch
        %190 = sbr.rel (%p187) target = $region36
      $region35: #{upsample_forward.1} parent=5 // pred_region
        %s191 = ssub.s32 %s13, 1
        %s192 = smul.u32 2, %s23
        %p193 = scmp.lt.s32.totalorder %s22, 1
        %s194 = scalar_select %p193, %s22, 1
        %p195 = scmp.lt.s32.totalorder %s192, 1
        %s196 = scalar_select %p195, %s192, 1
        %s197 = smul.addr %s194, 2
        %s198 = sadd.s32 %s196, %s197
        %s199 = smul.addr %s198, 4
        %s200 = scalar_lea.vmem %s0, %s199
        %p201 = pneg %p53
        %p202 = pneg %p50
        %p203 = pneg %p74
        %p204 = pneg %p71
        %p205 = pneg %p95
        %p206 = pneg %p92
        %p207 = pneg %p116
        %p208 = pneg %p113
        %p209 = pneg %p144
        %p210 = pneg %p141
        %s211 = sand.u32 %s131, 1
        %s212 = scalar_lea.sflag [#allocation4], %s211
        %s213 = sand.u32 %s131, 1
        %s214 = smul.addr %s213, 256
        %s215 = scalar_lea.vmem [#allocation3], %s214
        %s216 = smul.u32 2, %s23
        %p217 = scmp.lt.s32.totalorder %s22, 1
        %s218 = scalar_select %p217, %s22, 1
        %p219 = scmp.lt.s32.totalorder %s216, 1
        %s220 = scalar_select %p219, %s216, 1
        %s221 = smul.addr %s218, 2
        %s222 = sadd.s32 %s220, %s221
        %s223 = smul.addr %s222, 4
        %s224 = scalar_lea.vmem %s0, %s223
        %s225 = smul.u32 2, %s23
        %s226 = smul.u32 4, %s23
        %v227 = vld [vmem:[%s1] sm:$0xff]
        %v228 = vld [vmem:[%s1 + $0x8] sm:$0xff]
        %v229 = vld [vmem:[%s1 + $0x10] sm:$0xff]
        %v230 = vld [vmem:[%s1 + $0x18] sm:$0xff]
        %v231 = vld [vmem:[%s224] sm:$0xff]
        %233 = vst [vmem:[#allocation1] ss:$2 sm:$0xff] %v231
        %v234 = vld.sshfl [vmem:[#allocation1] sm:$0xff pattern:$0x75316420]
        %v235 = vld.sshfl [vmem:[#allocation1 + $0x8] sm:$0xff pattern:$0x75316420]
        %vm236 = vcmask 31744
        %v238 = vsel %vm236, %v227, 0
        %v241 = vsel %vm236, %v228, 0
        %v244 = vsel %vm236, %v229, 0
        %v247 = vsel %vm236, %v230, 0
        %vm249 = vcmask 1043456
        %v250 = vsel %vm249, %v234, 0
        %v252 = vsel %vm249, %v235, 0
        %254 = vmatpush.msra.mxu0 0.0
        %255 = vmatpush.msra.mxu0 0.0
        %256 = vmatpush.msra.mxu0 0.0
        %257 = vmatpush.msra.mxu0 0.0
        %258 = vmatpush.msra.mxu0 0.0
        %259 = vmatpush.msra.mxu0 0.0
        %260 = vmatpush.msra.mxu0 0.0
        %261 = vmatpush.msra.mxu0 0.0
        %262 = vmatpush.msra.mxu0 0.0
        %263 = vmatpush.msra.mxu0 0.0
        %264 = vmatpush.msra.mxu0 0.0
        %265 = vmatpush.msra.mxu0 0.0
        %266 = vmatpush.msra.mxu0 0.0
        %267 = vmatpush.msra.mxu0 0.0
        %268 = vmatpush.msra.mxu0 0.0
        %269 = vmatpush.msra.mxu0 %v250
        %270 = vmatmul.f32.gmra.mxu0 %v238
        %v271 = vpop.f32.mrf.mxu0
        %v272 = vadd.f32 0.0, %v271
        %273 = vmatmul.f32.gmra.mxu0 %v241
        %v274 = vpop.f32.mrf.mxu0
        %v275 = vadd.f32 0.0, %v274
        %276 = vmatmul.f32.gmra.mxu0 %v244
        %v277 = vpop.f32.mrf.mxu0
        %v278 = vadd.f32 0.0, %v277
        %279 = vmatmul.f32.gmra.mxu0 %v247
        %v280 = vpop.f32.mrf.mxu0
        %v281 = vadd.f32 0.0, %v280
        %282 = vdwg.mxu0
        %283 = vmatpush.msra.mxu0 0.0
        %284 = vmatpush.msra.mxu0 0.0
        %285 = vmatpush.msra.mxu0 0.0
        %286 = vmatpush.msra.mxu0 0.0
        %287 = vmatpush.msra.mxu0 0.0
        %288 = vmatpush.msra.mxu0 0.0
        %289 = vmatpush.msra.mxu0 0.0
        %290 = vmatpush.msra.mxu0 0.0
        %291 = vmatpush.msra.mxu0 0.0
        %292 = vmatpush.msra.mxu0 0.0
        %293 = vmatpush.msra.mxu0 0.0
        %294 = vmatpush.msra.mxu0 0.0
        %295 = vmatpush.msra.mxu0 0.0
        %296 = vmatpush.msra.mxu0 0.0
        %297 = vmatpush.msra.mxu0 0.0
        %298 = vmatpush.msra.mxu0 %v252
        %299 = vmatmul.f32.gmra.mxu0 %v238
        %v300 = vpop.f32.mrf.mxu0
        %v301 = vadd.f32 0.0, %v300
        %302 = vmatmul.f32.gmra.mxu0 %v241
        %v303 = vpop.f32.mrf.mxu0
        %v304 = vadd.f32 0.0, %v303
        %305 = vmatmul.f32.gmra.mxu0 %v244
        %v306 = vpop.f32.mrf.mxu0
        %v307 = vadd.f32 0.0, %v306
        %308 = vmatmul.f32.gmra.mxu0 %v247
        %v309 = vpop.f32.mrf.mxu0
        %v310 = vadd.f32 0.0, %v309
        %311 = vdwg.mxu0
        %312 = vst [vmem:[#allocation2] sm:$0xff] %v272
        %313 = vst [vmem:[#allocation2 + $0x8] sm:$0xff] %v301
        %314 = vst [vmem:[#allocation2 + $0x10] sm:$0xff] %v275
        %315 = vst [vmem:[#allocation2 + $0x18] sm:$0xff] %v304
        %316 = vst [vmem:[#allocation2 + $0x20] sm:$0xff] %v278
        %317 = vst [vmem:[#allocation2 + $0x28] sm:$0xff] %v307
        %318 = vst [vmem:[#allocation2 + $0x30] sm:$0xff] %v281
        %319 = vst [vmem:[#allocation2 + $0x38] sm:$0xff] %v310
        %v320 = vld [vmem:[%s2] sm:$0xff]
        %v321 = vld [vmem:[%s3] sm:$0xff]
        %v322 = vld [vmem:[%s3 + $0x8] sm:$0xff]
        %s323 = scalar_lea.vmem %s3, 16
        %v324 = vld [vmem:[%s323] sm:$0xff]
        %v325 = vld [vmem:[%s323 + $0x8] sm:$0xff]
        %v326 = vld [vmem:[#allocation2] sm:$0xff]
        %v327 = vld [vmem:[#allocation2 + $0x10] sm:$0xff]
        %vm328 = vcmask 130048
        %v330 = vsel %vm328, %v327, 0
        %332 = vmatpush.msra.mxu0 0.0
        %333 = vmatpush.msra.mxu0 0.0
        %334 = vmatpush.msra.mxu0 0.0
        %335 = vmatpush.msra.mxu0 0.0
        %336 = vmatpush.msra.mxu0 0.0
        %337 = vmatpush.msra.mxu0 0.0
        %338 = vmatpush.msra.mxu0 0.0
        %339 = vmatpush.msra.mxu0 0.0
        %340 = vmatpush.msra.mxu0 0.0
        %341 = vmatpush.msra.mxu0 0.0
        %342 = vmatpush.msra.mxu0 0.0
        %343 = vmatpush.msra.mxu0 0.0
        %344 = vmatpush.msra.mxu0 0.0
        %345 = vmatpush.msra.mxu0 0.0
        %346 = vmatpush.msra.mxu0 %v325
        %347 = vmatpush.msra.mxu0 %v324
        %348 = vmatmul.f32.gmra.mxu0 %v330
        %v349 = vpop.f32.mrf.mxu0
        %v350 = vadd.f32 0.0, %v349
        %351 = vdwg.mxu0
        %v353 = vsel %vm328, %v326, 0
        %355 = vmatpush.msra.mxu0 0.0
        %356 = vmatpush.msra.mxu0 0.0
        %357 = vmatpush.msra.mxu0 0.0
        %358 = vmatpush.msra.mxu0 0.0
        %359 = vmatpush.msra.mxu0 0.0
        %360 = vmatpush.msra.mxu0 0.0
        %361 = vmatpush.msra.mxu0 0.0
        %362 = vmatpush.msra.mxu0 0.0
        %363 = vmatpush.msra.mxu0 0.0
        %364 = vmatpush.msra.mxu0 0.0
        %365 = vmatpush.msra.mxu0 0.0
        %366 = vmatpush.msra.mxu0 0.0
        %367 = vmatpush.msra.mxu0 0.0
        %368 = vmatpush.msra.mxu0 0.0
        %369 = vmatpush.msra.mxu0 %v322
        %370 = vmatpush.msra.mxu0 %v321
        %371 = vmatmul.f32.gmra.mxu0 %v353
        %v372 = vpop.f32.mrf.mxu0
        %v373 = vadd.f32 %v350, %v372
        %374 = vdwg.mxu0
        %376 = vset.pattern.permute.xlu0 0
        %377 = vperm.xlu0 %376, %v320
        %v378 = vpop.permute.xlu0 %377
        %v380 = vadd.f32 %v373, %v378
        %v382 = vrot.slane %v380, 1
        %v383 = vrot.slane %v380, 2
        %v384 = vrot.slane %v380, 3
        %v385 = vrot.slane %v380, 4
        %v386 = vrot.slane %v380, 5
        %v387 = vrot.slane %v380, 6
        %v388 = vrot.slane %v380, 7
        %vm396 = vcmask 253952
        %397 = vst.msk [vmem:[%s215] sm:$0x1] %vm396, %v380
        %398 = vst.msk [vmem:[%s215 + $0x20] sm:$0x1] %vm396, %v382
        %399 = vst.msk [vmem:[%s215 + $0x40] sm:$0x1] %vm396, %v383
        %400 = vst.msk [vmem:[%s215 + $0x60] sm:$0x1] %vm396, %v384
        %401 = vst.msk [vmem:[%s215 + $0x80] sm:$0x1] %vm396, %v385
        %402 = vst.msk [vmem:[%s215 + $0xa0] sm:$0x1] %vm396, %v386
        %403 = vst.msk [vmem:[%s215 + $0xc0] sm:$0x1] %vm396, %v387
        %404 = vst.msk [vmem:[%s215 + $0xe0] sm:$0x1] %vm396, %v388
        %v405 = vld [vmem:[#allocation2 + $0x20] sm:$0xff]
        %v406 = vld [vmem:[#allocation2 + $0x30] sm:$0xff]
        %v408 = vsel %vm328, %v406, 0
        %410 = vmatpush.msra.mxu0 0.0
        %411 = vmatpush.msra.mxu0 0.0
        %412 = vmatpush.msra.mxu0 0.0
        %413 = vmatpush.msra.mxu0 0.0
        %414 = vmatpush.msra.mxu0 0.0
        %415 = vmatpush.msra.mxu0 0.0
        %416 = vmatpush.msra.mxu0 0.0
        %417 = vmatpush.msra.mxu0 0.0
        %418 = vmatpush.msra.mxu0 0.0
        %419 = vmatpush.msra.mxu0 0.0
        %420 = vmatpush.msra.mxu0 0.0
        %421 = vmatpush.msra.mxu0 0.0
        %422 = vmatpush.msra.mxu0 0.0
        %423 = vmatpush.msra.mxu0 0.0
        %424 = vmatpush.msra.mxu0 %v325
        %425 = vmatpush.msra.mxu0 %v324
        %426 = vmatmul.f32.gmra.mxu0 %v408
        %v427 = vpop.f32.mrf.mxu0
        %v428 = vadd.f32 0.0, %v427
        %429 = vdwg.mxu0
        %v431 = vsel %vm328, %v405, 0
        %433 = vmatpush.msra.mxu0 0.0
        %434 = vmatpush.msra.mxu0 0.0
        %435 = vmatpush.msra.mxu0 0.0
        %436 = vmatpush.msra.mxu0 0.0
        %437 = vmatpush.msra.mxu0 0.0
        %438 = vmatpush.msra.mxu0 0.0
        %439 = vmatpush.msra.mxu0 0.0
        %440 = vmatpush.msra.mxu0 0.0
        %441 = vmatpush.msra.mxu0 0.0
        %442 = vmatpush.msra.mxu0 0.0
        %443 = vmatpush.msra.mxu0 0.0
        %444 = vmatpush.msra.mxu0 0.0
        %445 = vmatpush.msra.mxu0 0.0
        %446 = vmatpush.msra.mxu0 0.0
        %447 = vmatpush.msra.mxu0 %v322
        %448 = vmatpush.msra.mxu0 %v321
        %449 = vmatmul.f32.gmra.mxu0 %v431
        %v450 = vpop.f32.mrf.mxu0
        %v451 = vadd.f32 %v428, %v450
        %452 = vdwg.mxu0
        %v453 = vadd.f32 %v451, %v378
        %v455 = vrot.slane %v453, 1
        %v456 = vrot.slane %v453, 2
        %v457 = vrot.slane %v453, 3
        %v458 = vrot.slane %v453, 4
        %v459 = vrot.slane %v453, 5
        %v460 = vrot.slane %v453, 6
        %v461 = vrot.slane %v453, 7
        %469 = vst.msk [vmem:[%s215 + $0x1] sm:$0x1] %vm396, %v453
        %470 = vst.msk [vmem:[%s215 + $0x21] sm:$0x1] %vm396, %v455
        %471 = vst.msk [vmem:[%s215 + $0x41] sm:$0x1] %vm396, %v456
        %472 = vst.msk [vmem:[%s215 + $0x61] sm:$0x1] %vm396, %v457
        %473 = vst.msk [vmem:[%s215 + $0x81] sm:$0x1] %vm396, %v458
        %474 = vst.msk [vmem:[%s215 + $0xa1] sm:$0x1] %vm396, %v459
        %475 = vst.msk [vmem:[%s215 + $0xc1] sm:$0x1] %vm396, %v460
        %476 = vst.msk [vmem:[%s215 + $0xe1] sm:$0x1] %vm396, %v461
        %v477 = vld [vmem:[#allocation2] sm:$0xff]
        %v478 = vld [vmem:[#allocation2 + $0x10] sm:$0xff]
        %480 = vrot.lane.b32.xlu0 %v478, 112
        %v481 = vpop.permute.xlu0 %480
        %v482 = vsel %vm328, %v481, 0
        %484 = vmatpush.msra.mxu0 0.0
        %485 = vmatpush.msra.mxu0 0.0
        %486 = vmatpush.msra.mxu0 0.0
        %487 = vmatpush.msra.mxu0 0.0
        %488 = vmatpush.msra.mxu0 0.0
        %489 = vmatpush.msra.mxu0 0.0
        %490 = vmatpush.msra.mxu0 0.0
        %491 = vmatpush.msra.mxu0 0.0
        %492 = vmatpush.msra.mxu0 0.0
        %493 = vmatpush.msra.mxu0 0.0
        %494 = vmatpush.msra.mxu0 0.0
        %495 = vmatpush.msra.mxu0 0.0
        %496 = vmatpush.msra.mxu0 0.0
        %497 = vmatpush.msra.mxu0 0.0
        %498 = vmatpush.msra.mxu0 %v325
        %499 = vmatpush.msra.mxu0 %v324
        %500 = vmatmul.f32.gmra.mxu0 %v482
        %v501 = vpop.f32.mrf.mxu0
        %v502 = vadd.f32 0.0, %v501
        %503 = vdwg.mxu0
        %505 = vrot.lane.b32.xlu0 %v477, 112
        %v506 = vpop.permute.xlu0 %505
        %v507 = vsel %vm328, %v506, 0
        %509 = vmatpush.msra.mxu0 0.0
        %510 = vmatpush.msra.mxu0 0.0
        %511 = vmatpush.msra.mxu0 0.0
        %512 = vmatpush.msra.mxu0 0.0
        %513 = vmatpush.msra.mxu0 0.0
        %514 = vmatpush.msra.mxu0 0.0
        %515 = vmatpush.msra.mxu0 0.0
        %516 = vmatpush.msra.mxu0 0.0
        %517 = vmatpush.msra.mxu0 0.0
        %518 = vmatpush.msra.mxu0 0.0
        %519 = vmatpush.msra.mxu0 0.0
        %520 = vmatpush.msra.mxu0 0.0
        %521 = vmatpush.msra.mxu0 0.0
        %522 = vmatpush.msra.mxu0 0.0
        %523 = vmatpush.msra.mxu0 %v322
        %524 = vmatpush.msra.mxu0 %v321
        %525 = vmatmul.f32.gmra.mxu0 %v507
        %v526 = vpop.f32.mrf.mxu0
        %v527 = vadd.f32 %v502, %v526
        %528 = vdwg.mxu0
        %v529 = vadd.f32 %v527, %v378
        %v531 = vrot.slane %v529, 1
        %v532 = vrot.slane %v529, 2
        %v533 = vrot.slane %v529, 3
        %v534 = vrot.slane %v529, 4
        %v535 = vrot.slane %v529, 5
        %v536 = vrot.slane %v529, 6
        %v537 = vrot.slane %v529, 7
        %545 = vst.msk [vmem:[%s215 + $0x2] sm:$0x1] %vm396, %v529
        %546 = vst.msk [vmem:[%s215 + $0x22] sm:$0x1] %vm396, %v531
        %547 = vst.msk [vmem:[%s215 + $0x42] sm:$0x1] %vm396, %v532
        %548 = vst.msk [vmem:[%s215 + $0x62] sm:$0x1] %vm396, %v533
        %549 = vst.msk [vmem:[%s215 + $0x82] sm:$0x1] %vm396, %v534
        %550 = vst.msk [vmem:[%s215 + $0xa2] sm:$0x1] %vm396, %v535
        %551 = vst.msk [vmem:[%s215 + $0xc2] sm:$0x1] %vm396, %v536
        %552 = vst.msk [vmem:[%s215 + $0xe2] sm:$0x1] %vm396, %v537
        %v553 = vld [vmem:[#allocation2 + $0x20] sm:$0xff]
        %v554 = vld [vmem:[#allocation2 + $0x30] sm:$0xff]
        %556 = vrot.lane.b32.xlu0 %v554, 112
        %v557 = vpop.permute.xlu0 %556
        %v558 = vsel %vm328, %v557, 0
        %560 = vmatpush.msra.mxu0 0.0
        %561 = vmatpush.msra.mxu0 0.0
        %562 = vmatpush.msra.mxu0 0.0
        %563 = vmatpush.msra.mxu0 0.0
        %564 = vmatpush.msra.mxu0 0.0
        %565 = vmatpush.msra.mxu0 0.0
        %566 = vmatpush.msra.mxu0 0.0
        %567 = vmatpush.msra.mxu0 0.0
        %568 = vmatpush.msra.mxu0 0.0
        %569 = vmatpush.msra.mxu0 0.0
        %570 = vmatpush.msra.mxu0 0.0
        %571 = vmatpush.msra.mxu0 0.0
        %572 = vmatpush.msra.mxu0 0.0
        %573 = vmatpush.msra.mxu0 0.0
        %574 = vmatpush.msra.mxu0 %v325
        %575 = vmatpush.msra.mxu0 %v324
        %576 = vmatmul.f32.gmra.mxu0 %v558
        %v577 = vpop.f32.mrf.mxu0
        %v578 = vadd.f32 0.0, %v577
        %579 = vdwg.mxu0
        %581 = vrot.lane.b32.xlu0 %v553, 112
        %v582 = vpop.permute.xlu0 %581
        %v583 = vsel %vm328, %v582, 0
        %585 = vmatpush.msra.mxu0 0.0
        %586 = vmatpush.msra.mxu0 0.0
        %587 = vmatpush.msra.mxu0 0.0
        %588 = vmatpush.msra.mxu0 0.0
        %589 = vmatpush.msra.mxu0 0.0
        %590 = vmatpush.msra.mxu0 0.0
        %591 = vmatpush.msra.mxu0 0.0
        %592 = vmatpush.msra.mxu0 0.0
        %593 = vmatpush.msra.mxu0 0.0
        %594 = vmatpush.msra.mxu0 0.0
        %595 = vmatpush.msra.mxu0 0.0
        %596 = vmatpush.msra.mxu0 0.0
        %597 = vmatpush.msra.mxu0 0.0
        %598 = vmatpush.msra.mxu0 0.0
        %599 = vmatpush.msra.mxu0 %v322
        %600 = vmatpush.msra.mxu0 %v321
        %601 = vmatmul.f32.gmra.mxu0 %v583
        %v602 = vpop.f32.mrf.mxu0
        %v603 = vadd.f32 %v578, %v602
        %604 = vdwg.mxu0
        %v605 = vadd.f32 %v603, %v378
        %v607 = vrot.slane %v605, 1
        %v608 = vrot.slane %v605, 2
        %v609 = vrot.slane %v605, 3
        %v610 = vrot.slane %v605, 4
        %v611 = vrot.slane %v605, 5
        %v612 = vrot.slane %v605, 6
        %v613 = vrot.slane %v605, 7
        %621 = vst.msk [vmem:[%s215 + $0x3] sm:$0x1] %vm396, %v605
        %622 = vst.msk [vmem:[%s215 + $0x23] sm:$0x1] %vm396, %v607
        %623 = vst.msk [vmem:[%s215 + $0x43] sm:$0x1] %vm396, %v608
        %624 = vst.msk [vmem:[%s215 + $0x63] sm:$0x1] %vm396, %v609
        %625 = vst.msk [vmem:[%s215 + $0x83] sm:$0x1] %vm396, %v610
        %626 = vst.msk [vmem:[%s215 + $0xa3] sm:$0x1] %vm396, %v611
        %627 = vst.msk [vmem:[%s215 + $0xc3] sm:$0x1] %vm396, %v612
        %628 = vst.msk [vmem:[%s215 + $0xe3] sm:$0x1] %vm396, %v613
        %v629 = vld [vmem:[#allocation2] sm:$0xff]
        %v630 = vld [vmem:[#allocation2 + $0x10] sm:$0xff]
        %632 = vrot.lane.b32.xlu0 %v630, 96
        %v633 = vpop.permute.xlu0 %632
        %v634 = vsel %vm328, %v633, 0
        %636 = vmatpush.msra.mxu0 0.0
        %637 = vmatpush.msra.mxu0 0.0
        %638 = vmatpush.msra.mxu0 0.0
        %639 = vmatpush.msra.mxu0 0.0
        %640 = vmatpush.msra.mxu0 0.0
        %641 = vmatpush.msra.mxu0 0.0
        %642 = vmatpush.msra.mxu0 0.0
        %643 = vmatpush.msra.mxu0 0.0
        %644 = vmatpush.msra.mxu0 0.0
        %645 = vmatpush.msra.mxu0 0.0
        %646 = vmatpush.msra.mxu0 0.0
        %647 = vmatpush.msra.mxu0 0.0
        %648 = vmatpush.msra.mxu0 0.0
        %649 = vmatpush.msra.mxu0 0.0
        %650 = vmatpush.msra.mxu0 %v325
        %651 = vmatpush.msra.mxu0 %v324
        %652 = vmatmul.f32.gmra.mxu0 %v634
        %v653 = vpop.f32.mrf.mxu0
        %v654 = vadd.f32 0.0, %v653
        %655 = vdwg.mxu0
        %657 = vrot.lane.b32.xlu0 %v629, 96
        %v658 = vpop.permute.xlu0 %657
        %v659 = vsel %vm328, %v658, 0
        %661 = vmatpush.msra.mxu0 0.0
        %662 = vmatpush.msra.mxu0 0.0
        %663 = vmatpush.msra.mxu0 0.0
        %664 = vmatpush.msra.mxu0 0.0
        %665 = vmatpush.msra.mxu0 0.0
        %666 = vmatpush.msra.mxu0 0.0
        %667 = vmatpush.msra.mxu0 0.0
        %668 = vmatpush.msra.mxu0 0.0
        %669 = vmatpush.msra.mxu0 0.0
        %670 = vmatpush.msra.mxu0 0.0
        %671 = vmatpush.msra.mxu0 0.0
        %672 = vmatpush.msra.mxu0 0.0
        %673 = vmatpush.msra.mxu0 0.0
        %674 = vmatpush.msra.mxu0 0.0
        %675 = vmatpush.msra.mxu0 %v322
        %676 = vmatpush.msra.mxu0 %v321
        %677 = vmatmul.f32.gmra.mxu0 %v659
        %v678 = vpop.f32.mrf.mxu0
        %v679 = vadd.f32 %v654, %v678
        %680 = vdwg.mxu0
        %v681 = vadd.f32 %v679, %v378
        %v683 = vrot.slane %v681, 1
        %v684 = vrot.slane %v681, 2
        %v685 = vrot.slane %v681, 3
        %v686 = vrot.slane %v681, 4
        %v687 = vrot.slane %v681, 5
        %v688 = vrot.slane %v681, 6
        %v689 = vrot.slane %v681, 7
        %697 = vst.msk [vmem:[%s215 + $0x4] sm:$0x1] %vm396, %v681
        %698 = vst.msk [vmem:[%s215 + $0x24] sm:$0x1] %vm396, %v683
        %699 = vst.msk [vmem:[%s215 + $0x44] sm:$0x1] %vm396, %v684
        %700 = vst.msk [vmem:[%s215 + $0x64] sm:$0x1] %vm396, %v685
        %701 = vst.msk [vmem:[%s215 + $0x84] sm:$0x1] %vm396, %v686
        %702 = vst.msk [vmem:[%s215 + $0xa4] sm:$0x1] %vm396, %v687
        %703 = vst.msk [vmem:[%s215 + $0xc4] sm:$0x1] %vm396, %v688
        %704 = vst.msk [vmem:[%s215 + $0xe4] sm:$0x1] %vm396, %v689
        %v705 = vld [vmem:[#allocation2 + $0x20] sm:$0xff]
        %v706 = vld [vmem:[#allocation2 + $0x30] sm:$0xff]
        %708 = vrot.lane.b32.xlu0 %v706, 96
        %v709 = vpop.permute.xlu0 %708
        %v710 = vsel %vm328, %v709, 0
        %712 = vmatpush.msra.mxu0 0.0
        %713 = vmatpush.msra.mxu0 0.0
        %714 = vmatpush.msra.mxu0 0.0
        %715 = vmatpush.msra.mxu0 0.0
        %716 = vmatpush.msra.mxu0 0.0
        %717 = vmatpush.msra.mxu0 0.0
        %718 = vmatpush.msra.mxu0 0.0
        %719 = vmatpush.msra.mxu0 0.0
        %720 = vmatpush.msra.mxu0 0.0
        %721 = vmatpush.msra.mxu0 0.0
        %722 = vmatpush.msra.mxu0 0.0
        %723 = vmatpush.msra.mxu0 0.0
        %724 = vmatpush.msra.mxu0 0.0
        %725 = vmatpush.msra.mxu0 0.0
        %726 = vmatpush.msra.mxu0 %v325
        %727 = vmatpush.msra.mxu0 %v324
        %728 = vmatmul.f32.gmra.mxu0 %v710
        %v729 = vpop.f32.mrf.mxu0
        %v730 = vadd.f32 0.0, %v729
        %731 = vdwg.mxu0
        %733 = vrot.lane.b32.xlu0 %v705, 96
        %v734 = vpop.permute.xlu0 %733
        %v735 = vsel %vm328, %v734, 0
        %737 = vmatpush.msra.mxu0 0.0
        %738 = vmatpush.msra.mxu0 0.0
        %739 = vmatpush.msra.mxu0 0.0
        %740 = vmatpush.msra.mxu0 0.0
        %741 = vmatpush.msra.mxu0 0.0
        %742 = vmatpush.msra.mxu0 0.0
        %743 = vmatpush.msra.mxu0 0.0
        %744 = vmatpush.msra.mxu0 0.0
        %745 = vmatpush.msra.mxu0 0.0
        %746 = vmatpush.msra.mxu0 0.0
        %747 = vmatpush.msra.mxu0 0.0
        %748 = vmatpush.msra.mxu0 0.0
        %749 = vmatpush.msra.mxu0 0.0
        %750 = vmatpush.msra.mxu0 0.0
        %751 = vmatpush.msra.mxu0 %v322
        %752 = vmatpush.msra.mxu0 %v321
        %753 = vmatmul.f32.gmra.mxu0 %v735
        %v754 = vpop.f32.mrf.mxu0
        %v755 = vadd.f32 %v730, %v754
        %756 = vdwg.mxu0
        %v757 = vadd.f32 %v755, %v378
        %v759 = vrot.slane %v757, 1
        %v760 = vrot.slane %v757, 2
        %v761 = vrot.slane %v757, 3
        %v762 = vrot.slane %v757, 4
        %v763 = vrot.slane %v757, 5
        %v764 = vrot.slane %v757, 6
        %v765 = vrot.slane %v757, 7
        %773 = vst.msk [vmem:[%s215 + $0x5] sm:$0x1] %vm396, %v757
        %774 = vst.msk [vmem:[%s215 + $0x25] sm:$0x1] %vm396, %v759
        %775 = vst.msk [vmem:[%s215 + $0x45] sm:$0x1] %vm396, %v760
        %776 = vst.msk [vmem:[%s215 + $0x65] sm:$0x1] %vm396, %v761
        %777 = vst.msk [vmem:[%s215 + $0x85] sm:$0x1] %vm396, %v762
        %778 = vst.msk [vmem:[%s215 + $0xa5] sm:$0x1] %vm396, %v763
        %779 = vst.msk [vmem:[%s215 + $0xc5] sm:$0x1] %vm396, %v764
        %780 = vst.msk [vmem:[%s215 + $0xe5] sm:$0x1] %vm396, %v765
        %v781 = vld [vmem:[#allocation2] sm:$0xff]
        %v782 = vld [vmem:[#allocation2 + $0x10] sm:$0xff]
        %784 = vrot.lane.b32.xlu0 %v782, 80
        %v785 = vpop.permute.xlu0 %784
        %v786 = vsel %vm328, %v785, 0
        %788 = vmatpush.msra.mxu0 0.0
        %789 = vmatpush.msra.mxu0 0.0
        %790 = vmatpush.msra.mxu0 0.0
        %791 = vmatpush.msra.mxu0 0.0
        %792 = vmatpush.msra.mxu0 0.0
        %793 = vmatpush.msra.mxu0 0.0
        %794 = vmatpush.msra.mxu0 0.0
        %795 = vmatpush.msra.mxu0 0.0
        %796 = vmatpush.msra.mxu0 0.0
        %797 = vmatpush.msra.mxu0 0.0
        %798 = vmatpush.msra.mxu0 0.0
        %799 = vmatpush.msra.mxu0 0.0
        %800 = vmatpush.msra.mxu0 0.0
        %801 = vmatpush.msra.mxu0 0.0
        %802 = vmatpush.msra.mxu0 %v325
        %803 = vmatpush.msra.mxu0 %v324
        %804 = vmatmul.f32.gmra.mxu0 %v786
        %v805 = vpop.f32.mrf.mxu0
        %v806 = vadd.f32 0.0, %v805
        %807 = vdwg.mxu0
        %809 = vrot.lane.b32.xlu0 %v781, 80
        %v810 = vpop.permute.xlu0 %809
        %v811 = vsel %vm328, %v810, 0
        %813 = vmatpush.msra.mxu0 0.0
        %814 = vmatpush.msra.mxu0 0.0
        %815 = vmatpush.msra.mxu0 0.0
        %816 = vmatpush.msra.mxu0 0.0
        %817 = vmatpush.msra.mxu0 0.0
        %818 = vmatpush.msra.mxu0 0.0
        %819 = vmatpush.msra.mxu0 0.0
        %820 = vmatpush.msra.mxu0 0.0
        %821 = vmatpush.msra.mxu0 0.0
        %822 = vmatpush.msra.mxu0 0.0
        %823 = vmatpush.msra.mxu0 0.0
        %824 = vmatpush.msra.mxu0 0.0
        %825 = vmatpush.msra.mxu0 0.0
        %826 = vmatpush.msra.mxu0 0.0
        %827 = vmatpush.msra.mxu0 %v322
        %828 = vmatpush.msra.mxu0 %v321
        %829 = vmatmul.f32.gmra.mxu0 %v811
        %v830 = vpop.f32.mrf.mxu0
        %v831 = vadd.f32 %v806, %v830
        %832 = vdwg.mxu0
        %v833 = vadd.f32 %v831, %v378
        %v835 = vrot.slane %v833, 1
        %v836 = vrot.slane %v833, 2
        %v837 = vrot.slane %v833, 3
        %v838 = vrot.slane %v833, 4
        %v839 = vrot.slane %v833, 5
        %v840 = vrot.slane %v833, 6
        %v841 = vrot.slane %v833, 7
        %849 = vst.msk [vmem:[%s215 + $0x6] sm:$0x1] %vm396, %v833
        %850 = vst.msk [vmem:[%s215 + $0x26] sm:$0x1] %vm396, %v835
        %851 = vst.msk [vmem:[%s215 + $0x46] sm:$0x1] %vm396, %v836
        %852 = vst.msk [vmem:[%s215 + $0x66] sm:$0x1] %vm396, %v837
        %853 = vst.msk [vmem:[%s215 + $0x86] sm:$0x1] %vm396, %v838
        %854 = vst.msk [vmem:[%s215 + $0xa6] sm:$0x1] %vm396, %v839
        %855 = vst.msk [vmem:[%s215 + $0xc6] sm:$0x1] %vm396, %v840
        %856 = vst.msk [vmem:[%s215 + $0xe6] sm:$0x1] %vm396, %v841
        %v857 = vld [vmem:[#allocation2 + $0x20] sm:$0xff]
        %v858 = vld [vmem:[#allocation2 + $0x30] sm:$0xff]
        %860 = vrot.lane.b32.xlu0 %v858, 80
        %v861 = vpop.permute.xlu0 %860
        %v862 = vsel %vm328, %v861, 0
        %864 = vmatpush.msra.mxu0 0.0
        %865 = vmatpush.msra.mxu0 0.0
        %866 = vmatpush.msra.mxu0 0.0
        %867 = vmatpush.msra.mxu0 0.0
        %868 = vmatpush.msra.mxu0 0.0
        %869 = vmatpush.msra.mxu0 0.0
        %870 = vmatpush.msra.mxu0 0.0
        %871 = vmatpush.msra.mxu0 0.0
        %872 = vmatpush.msra.mxu0 0.0
        %873 = vmatpush.msra.mxu0 0.0
        %874 = vmatpush.msra.mxu0 0.0
        %875 = vmatpush.msra.mxu0 0.0
        %876 = vmatpush.msra.mxu0 0.0
        %877 = vmatpush.msra.mxu0 0.0
        %878 = vmatpush.msra.mxu0 %v325
        %879 = vmatpush.msra.mxu0 %v324
        %880 = vmatmul.f32.gmra.mxu0 %v862
        %v881 = vpop.f32.mrf.mxu0
        %v882 = vadd.f32 0.0, %v881
        %883 = vdwg.mxu0
        %885 = vrot.lane.b32.xlu0 %v857, 80
        %v886 = vpop.permute.xlu0 %885
        %v887 = vsel %vm328, %v886, 0
        %889 = vmatpush.msra.mxu0 0.0
        %890 = vmatpush.msra.mxu0 0.0
        %891 = vmatpush.msra.mxu0 0.0
        %892 = vmatpush.msra.mxu0 0.0
        %893 = vmatpush.msra.mxu0 0.0
        %894 = vmatpush.msra.mxu0 0.0
        %895 = vmatpush.msra.mxu0 0.0
        %896 = vmatpush.msra.mxu0 0.0
        %897 = vmatpush.msra.mxu0 0.0
        %898 = vmatpush.msra.mxu0 0.0
        %899 = vmatpush.msra.mxu0 0.0
        %900 = vmatpush.msra.mxu0 0.0
        %901 = vmatpush.msra.mxu0 0.0
        %902 = vmatpush.msra.mxu0 0.0
        %903 = vmatpush.msra.mxu0 %v322
        %904 = vmatpush.msra.mxu0 %v321
        %905 = vmatmul.f32.gmra.mxu0 %v887
        %v906 = vpop.f32.mrf.mxu0
        %v907 = vadd.f32 %v882, %v906
        %908 = vdwg.mxu0
        %v909 = vadd.f32 %v907, %v378
        %v911 = vrot.slane %v909, 1
        %v912 = vrot.slane %v909, 2
        %v913 = vrot.slane %v909, 3
        %v914 = vrot.slane %v909, 4
        %v915 = vrot.slane %v909, 5
        %v916 = vrot.slane %v909, 6
        %v917 = vrot.slane %v909, 7
        %925 = vst.msk [vmem:[%s215 + $0x7] sm:$0x1] %vm396, %v909
        %926 = vst.msk [vmem:[%s215 + $0x27] sm:$0x1] %vm396, %v911
        %927 = vst.msk [vmem:[%s215 + $0x47] sm:$0x1] %vm396, %v912
        %928 = vst.msk [vmem:[%s215 + $0x67] sm:$0x1] %vm396, %v913
        %929 = vst.msk [vmem:[%s215 + $0x87] sm:$0x1] %vm396, %v914
        %930 = vst.msk [vmem:[%s215 + $0xa7] sm:$0x1] %vm396, %v915
        %931 = vst.msk [vmem:[%s215 + $0xc7] sm:$0x1] %vm396, %v916
        %932 = vst.msk [vmem:[%s215 + $0xe7] sm:$0x1] %vm396, %v917
        %v933 = vld [vmem:[#allocation2] sm:$0xff]
        %v934 = vld [vmem:[#allocation2 + $0x10] sm:$0xff]
        %936 = vrot.lane.b32.xlu0 %v934, 64
        %v937 = vpop.permute.xlu0 %936
        %v938 = vsel %vm328, %v937, 0
        %940 = vmatpush.msra.mxu0 0.0
        %941 = vmatpush.msra.mxu0 0.0
        %942 = vmatpush.msra.mxu0 0.0
        %943 = vmatpush.msra.mxu0 0.0
        %944 = vmatpush.msra.mxu0 0.0
        %945 = vmatpush.msra.mxu0 0.0
        %946 = vmatpush.msra.mxu0 0.0
        %947 = vmatpush.msra.mxu0 0.0
        %948 = vmatpush.msra.mxu0 0.0
        %949 = vmatpush.msra.mxu0 0.0
        %950 = vmatpush.msra.mxu0 0.0
        %951 = vmatpush.msra.mxu0 0.0
        %952 = vmatpush.msra.mxu0 0.0
        %953 = vmatpush.msra.mxu0 0.0
        %954 = vmatpush.msra.mxu0 %v325
        %955 = vmatpush.msra.mxu0 %v324
        %956 = vmatmul.f32.gmra.mxu0 %v938
        %v957 = vpop.f32.mrf.mxu0
        %v958 = vadd.f32 0.0, %v957
        %959 = vdwg.mxu0
        %961 = vrot.lane.b32.xlu0 %v933, 64
        %v962 = vpop.permute.xlu0 %961
        %v963 = vsel %vm328, %v962, 0
        %965 = vmatpush.msra.mxu0 0.0
        %966 = vmatpush.msra.mxu0 0.0
        %967 = vmatpush.msra.mxu0 0.0
        %968 = vmatpush.msra.mxu0 0.0
        %969 = vmatpush.msra.mxu0 0.0
        %970 = vmatpush.msra.mxu0 0.0
        %971 = vmatpush.msra.mxu0 0.0
        %972 = vmatpush.msra.mxu0 0.0
        %973 = vmatpush.msra.mxu0 0.0
        %974 = vmatpush.msra.mxu0 0.0
        %975 = vmatpush.msra.mxu0 0.0
        %976 = vmatpush.msra.mxu0 0.0
        %977 = vmatpush.msra.mxu0 0.0
        %978 = vmatpush.msra.mxu0 0.0
        %979 = vmatpush.msra.mxu0 %v322
        %980 = vmatpush.msra.mxu0 %v321
        %981 = vmatmul.f32.gmra.mxu0 %v963
        %v982 = vpop.f32.mrf.mxu0
        %v983 = vadd.f32 %v958, %v982
        %984 = vdwg.mxu0
        %v985 = vadd.f32 %v983, %v378
        %v987 = vrot.slane %v985, 1
        %v988 = vrot.slane %v985, 2
        %v989 = vrot.slane %v985, 3
        %v990 = vrot.slane %v985, 4
        %v991 = vrot.slane %v985, 5
        %v992 = vrot.slane %v985, 6
        %v993 = vrot.slane %v985, 7
        %1001 = vst.msk [vmem:[%s215 + $0x8] sm:$0x1] %vm396, %v985
        %1002 = vst.msk [vmem:[%s215 + $0x28] sm:$0x1] %vm396, %v987
        %1003 = vst.msk [vmem:[%s215 + $0x48] sm:$0x1] %vm396, %v988
        %1004 = vst.msk [vmem:[%s215 + $0x68] sm:$0x1] %vm396, %v989
        %1005 = vst.msk [vmem:[%s215 + $0x88] sm:$0x1] %vm396, %v990
        %1006 = vst.msk [vmem:[%s215 + $0xa8] sm:$0x1] %vm396, %v991
        %1007 = vst.msk [vmem:[%s215 + $0xc8] sm:$0x1] %vm396, %v992
        %1008 = vst.msk [vmem:[%s215 + $0xe8] sm:$0x1] %vm396, %v993
        %v1009 = vld [vmem:[#allocation2 + $0x20] sm:$0xff]
        %v1010 = vld [vmem:[#allocation2 + $0x30] sm:$0xff]
        %1012 = vrot.lane.b32.xlu0 %v1010, 64
        %v1013 = vpop.permute.xlu0 %1012
        %v1014 = vsel %vm328, %v1013, 0
        %1016 = vmatpush.msra.mxu0 0.0
        %1017 = vmatpush.msra.mxu0 0.0
        %1018 = vmatpush.msra.mxu0 0.0
        %1019 = vmatpush.msra.mxu0 0.0
        %1020 = vmatpush.msra.mxu0 0.0
        %1021 = vmatpush.msra.mxu0 0.0
        %1022 = vmatpush.msra.mxu0 0.0
        %1023 = vmatpush.msra.mxu0 0.0
        %1024 = vmatpush.msra.mxu0 0.0
        %1025 = vmatpush.msra.mxu0 0.0
        %1026 = vmatpush.msra.mxu0 0.0
        %1027 = vmatpush.msra.mxu0 0.0
        %1028 = vmatpush.msra.mxu0 0.0
        %1029 = vmatpush.msra.mxu0 0.0
        %1030 = vmatpush.msra.mxu0 %v325
        %1031 = vmatpush.msra.mxu0 %v324
        %1032 = vmatmul.f32.gmra.mxu0 %v1014
        %v1033 = vpop.f32.mrf.mxu0
        %v1034 = vadd.f32 0.0, %v1033
        %1035 = vdwg.mxu0
        %1037 = vrot.lane.b32.xlu0 %v1009, 64
        %v1038 = vpop.permute.xlu0 %1037
        %v1039 = vsel %vm328, %v1038, 0
        %1041 = vmatpush.msra.mxu0 0.0
        %1042 = vmatpush.msra.mxu0 0.0
        %1043 = vmatpush.msra.mxu0 0.0
        %1044 = vmatpush.msra.mxu0 0.0
        %1045 = vmatpush.msra.mxu0 0.0
        %1046 = vmatpush.msra.mxu0 0.0
        %1047 = vmatpush.msra.mxu0 0.0
        %1048 = vmatpush.msra.mxu0 0.0
        %1049 = vmatpush.msra.mxu0 0.0
        %1050 = vmatpush.msra.mxu0 0.0
        %1051 = vmatpush.msra.mxu0 0.0
        %1052 = vmatpush.msra.mxu0 0.0
        %1053 = vmatpush.msra.mxu0 0.0
        %1054 = vmatpush.msra.mxu0 0.0
        %1055 = vmatpush.msra.mxu0 %v322
        %1056 = vmatpush.msra.mxu0 %v321
        %1057 = vmatmul.f32.gmra.mxu0 %v1039
        %v1058 = vpop.f32.mrf.mxu0
        %v1059 = vadd.f32 %v1034, %v1058
        %1060 = vdwg.mxu0
        %v1061 = vadd.f32 %v1059, %v378
        %v1063 = vrot.slane %v1061, 1
        %v1064 = vrot.slane %v1061, 2
        %v1065 = vrot.slane %v1061, 3
        %v1066 = vrot.slane %v1061, 4
        %v1067 = vrot.slane %v1061, 5
        %v1068 = vrot.slane %v1061, 6
        %v1069 = vrot.slane %v1061, 7
        %1077 = vst.msk [vmem:[%s215 + $0x9] sm:$0x1] %vm396, %v1061
        %1078 = vst.msk [vmem:[%s215 + $0x29] sm:$0x1] %vm396, %v1063
        %1079 = vst.msk [vmem:[%s215 + $0x49] sm:$0x1] %vm396, %v1064
        %1080 = vst.msk [vmem:[%s215 + $0x69] sm:$0x1] %vm396, %v1065
        %1081 = vst.msk [vmem:[%s215 + $0x89] sm:$0x1] %vm396, %v1066
        %1082 = vst.msk [vmem:[%s215 + $0xa9] sm:$0x1] %vm396, %v1067
        %1083 = vst.msk [vmem:[%s215 + $0xc9] sm:$0x1] %vm396, %v1068
        %1084 = vst.msk [vmem:[%s215 + $0xe9] sm:$0x1] %vm396, %v1069
        %v1085 = vld [vmem:[#allocation2] sm:$0xff]
        %v1086 = vld [vmem:[#allocation2 + $0x10] sm:$0xff]
        %1088 = vrot.lane.b32.xlu0 %v1086, 48
        %v1089 = vpop.permute.xlu0 %1088
        %v1090 = vsel %vm328, %v1089, 0
        %1092 = vmatpush.msra.mxu0 0.0
        %1093 = vmatpush.msra.mxu0 0.0
        %1094 = vmatpush.msra.mxu0 0.0
        %1095 = vmatpush.msra.mxu0 0.0
        %1096 = vmatpush.msra.mxu0 0.0
        %1097 = vmatpush.msra.mxu0 0.0
        %1098 = vmatpush.msra.mxu0 0.0
        %1099 = vmatpush.msra.mxu0 0.0
        %1100 = vmatpush.msra.mxu0 0.0
        %1101 = vmatpush.msra.mxu0 0.0
        %1102 = vmatpush.msra.mxu0 0.0
        %1103 = vmatpush.msra.mxu0 0.0
        %1104 = vmatpush.msra.mxu0 0.0
        %1105 = vmatpush.msra.mxu0 0.0
        %1106 = vmatpush.msra.mxu0 %v325
        %1107 = vmatpush.msra.mxu0 %v324
        %1108 = vmatmul.f32.gmra.mxu0 %v1090
        %v1109 = vpop.f32.mrf.mxu0
        %v1110 = vadd.f32 0.0, %v1109
        %1111 = vdwg.mxu0
        %1113 = vrot.lane.b32.xlu0 %v1085, 48
        %v1114 = vpop.permute.xlu0 %1113
        %v1115 = vsel %vm328, %v1114, 0
        %1117 = vmatpush.msra.mxu0 0.0
        %1118 = vmatpush.msra.mxu0 0.0
        %1119 = vmatpush.msra.mxu0 0.0
        %1120 = vmatpush.msra.mxu0 0.0
        %1121 = vmatpush.msra.mxu0 0.0
        %1122 = vmatpush.msra.mxu0 0.0
        %1123 = vmatpush.msra.mxu0 0.0
        %1124 = vmatpush.msra.mxu0 0.0
        %1125 = vmatpush.msra.mxu0 0.0
        %1126 = vmatpush.msra.mxu0 0.0
        %1127 = vmatpush.msra.mxu0 0.0
        %1128 = vmatpush.msra.mxu0 0.0
        %1129 = vmatpush.msra.mxu0 0.0
        %1130 = vmatpush.msra.mxu0 0.0
        %1131 = vmatpush.msra.mxu0 %v322
        %1132 = vmatpush.msra.mxu0 %v321
        %1133 = vmatmul.f32.gmra.mxu0 %v1115
        %v1134 = vpop.f32.mrf.mxu0
        %v1135 = vadd.f32 %v1110, %v1134
        %1136 = vdwg.mxu0
        %v1137 = vadd.f32 %v1135, %v378
        %v1139 = vrot.slane %v1137, 1
        %v1140 = vrot.slane %v1137, 2
        %v1141 = vrot.slane %v1137, 3
        %v1142 = vrot.slane %v1137, 4
        %v1143 = vrot.slane %v1137, 5
        %v1144 = vrot.slane %v1137, 6
        %v1145 = vrot.slane %v1137, 7
        %1153 = vst.msk [vmem:[%s215 + $0xa] sm:$0x1] %vm396, %v1137
        %1154 = vst.msk [vmem:[%s215 + $0x2a] sm:$0x1] %vm396, %v1139
        %1155 = vst.msk [vmem:[%s215 + $0x4a] sm:$0x1] %vm396, %v1140
        %1156 = vst.msk [vmem:[%s215 + $0x6a] sm:$0x1] %vm396, %v1141
        %1157 = vst.msk [vmem:[%s215 + $0x8a] sm:$0x1] %vm396, %v1142
        %1158 = vst.msk [vmem:[%s215 + $0xaa] sm:$0x1] %vm396, %v1143
        %1159 = vst.msk [vmem:[%s215 + $0xca] sm:$0x1] %vm396, %v1144
        %1160 = vst.msk [vmem:[%s215 + $0xea] sm:$0x1] %vm396, %v1145
        %v1161 = vld [vmem:[#allocation2 + $0x20] sm:$0xff]
        %v1162 = vld [vmem:[#allocation2 + $0x30] sm:$0xff]
        %1164 = vrot.lane.b32.xlu0 %v1162, 48
        %v1165 = vpop.permute.xlu0 %1164
        %v1166 = vsel %vm328, %v1165, 0
        %1168 = vmatpush.msra.mxu0 0.0
        %1169 = vmatpush.msra.mxu0 0.0
        %1170 = vmatpush.msra.mxu0 0.0
        %1171 = vmatpush.msra.mxu0 0.0
        %1172 = vmatpush.msra.mxu0 0.0
        %1173 = vmatpush.msra.mxu0 0.0
        %1174 = vmatpush.msra.mxu0 0.0
        %1175 = vmatpush.msra.mxu0 0.0
        %1176 = vmatpush.msra.mxu0 0.0
        %1177 = vmatpush.msra.mxu0 0.0
        %1178 = vmatpush.msra.mxu0 0.0
        %1179 = vmatpush.msra.mxu0 0.0
        %1180 = vmatpush.msra.mxu0 0.0
        %1181 = vmatpush.msra.mxu0 0.0
        %1182 = vmatpush.msra.mxu0 %v325
        %1183 = vmatpush.msra.mxu0 %v324
        %1184 = vmatmul.f32.gmra.mxu0 %v1166
        %v1185 = vpop.f32.mrf.mxu0
        %v1186 = vadd.f32 0.0, %v1185
        %1187 = vdwg.mxu0
        %1189 = vrot.lane.b32.xlu0 %v1161, 48
        %v1190 = vpop.permute.xlu0 %1189
        %v1191 = vsel %vm328, %v1190, 0
        %1193 = vmatpush.msra.mxu0 0.0
        %1194 = vmatpush.msra.mxu0 0.0
        %1195 = vmatpush.msra.mxu0 0.0
        %1196 = vmatpush.msra.mxu0 0.0
        %1197 = vmatpush.msra.mxu0 0.0
        %1198 = vmatpush.msra.mxu0 0.0
        %1199 = vmatpush.msra.mxu0 0.0
        %1200 = vmatpush.msra.mxu0 0.0
        %1201 = vmatpush.msra.mxu0 0.0
        %1202 = vmatpush.msra.mxu0 0.0
        %1203 = vmatpush.msra.mxu0 0.0
        %1204 = vmatpush.msra.mxu0 0.0
        %1205 = vmatpush.msra.mxu0 0.0
        %1206 = vmatpush.msra.mxu0 0.0
        %1207 = vmatpush.msra.mxu0 %v322
        %1208 = vmatpush.msra.mxu0 %v321
        %1209 = vmatmul.f32.gmra.mxu0 %v1191
        %v1210 = vpop.f32.mrf.mxu0
        %v1211 = vadd.f32 %v1186, %v1210
        %1212 = vdwg.mxu0
        %v1213 = vadd.f32 %v1211, %v378
        %v1215 = vrot.slane %v1213, 1
        %v1216 = vrot.slane %v1213, 2
        %v1217 = vrot.slane %v1213, 3
        %v1218 = vrot.slane %v1213, 4
        %v1219 = vrot.slane %v1213, 5
        %v1220 = vrot.slane %v1213, 6
        %v1221 = vrot.slane %v1213, 7
        %1229 = vst.msk [vmem:[%s215 + $0xb] sm:$0x1] %vm396, %v1213
        %1230 = vst.msk [vmem:[%s215 + $0x2b] sm:$0x1] %vm396, %v1215
        %1231 = vst.msk [vmem:[%s215 + $0x4b] sm:$0x1] %vm396, %v1216
        %1232 = vst.msk [vmem:[%s215 + $0x6b] sm:$0x1] %vm396, %v1217
        %1233 = vst.msk [vmem:[%s215 + $0x8b] sm:$0x1] %vm396, %v1218
        %1234 = vst.msk [vmem:[%s215 + $0xab] sm:$0x1] %vm396, %v1219
        %1235 = vst.msk [vmem:[%s215 + $0xcb] sm:$0x1] %vm396, %v1220
        %1236 = vst.msk [vmem:[%s215 + $0xeb] sm:$0x1] %vm396, %v1221
        %v1237 = vld [vmem:[#allocation2] sm:$0xff]
        %v1238 = vld [vmem:[#allocation2 + $0x10] sm:$0xff]
        %1240 = vrot.lane.b32.xlu0 %v1238, 32
        %v1241 = vpop.permute.xlu0 %1240
        %v1242 = vsel %vm328, %v1241, 0
        %1244 = vmatpush.msra.mxu0 0.0
        %1245 = vmatpush.msra.mxu0 0.0
        %1246 = vmatpush.msra.mxu0 0.0
        %1247 = vmatpush.msra.mxu0 0.0
        %1248 = vmatpush.msra.mxu0 0.0
        %1249 = vmatpush.msra.mxu0 0.0
        %1250 = vmatpush.msra.mxu0 0.0
        %1251 = vmatpush.msra.mxu0 0.0
        %1252 = vmatpush.msra.mxu0 0.0
        %1253 = vmatpush.msra.mxu0 0.0
        %1254 = vmatpush.msra.mxu0 0.0
        %1255 = vmatpush.msra.mxu0 0.0
        %1256 = vmatpush.msra.mxu0 0.0
        %1257 = vmatpush.msra.mxu0 0.0
        %1258 = vmatpush.msra.mxu0 %v325
        %1259 = vmatpush.msra.mxu0 %v324
        %1260 = vmatmul.f32.gmra.mxu0 %v1242
        %v1261 = vpop.f32.mrf.mxu0
        %v1262 = vadd.f32 0.0, %v1261
        %1263 = vdwg.mxu0
        %1265 = vrot.lane.b32.xlu0 %v1237, 32
        %v1266 = vpop.permute.xlu0 %1265
        %v1267 = vsel %vm328, %v1266, 0
        %1269 = vmatpush.msra.mxu0 0.0
        %1270 = vmatpush.msra.mxu0 0.0
        %1271 = vmatpush.msra.mxu0 0.0
        %1272 = vmatpush.msra.mxu0 0.0
        %1273 = vmatpush.msra.mxu0 0.0
        %1274 = vmatpush.msra.mxu0 0.0
        %1275 = vmatpush.msra.mxu0 0.0
        %1276 = vmatpush.msra.mxu0 0.0
        %1277 = vmatpush.msra.mxu0 0.0
        %1278 = vmatpush.msra.mxu0 0.0
        %1279 = vmatpush.msra.mxu0 0.0
        %1280 = vmatpush.msra.mxu0 0.0
        %1281 = vmatpush.msra.mxu0 0.0
        %1282 = vmatpush.msra.mxu0 0.0
        %1283 = vmatpush.msra.mxu0 %v322
        %1284 = vmatpush.msra.mxu0 %v321
        %1285 = vmatmul.f32.gmra.mxu0 %v1267
        %v1286 = vpop.f32.mrf.mxu0
        %v1287 = vadd.f32 %v1262, %v1286
        %1288 = vdwg.mxu0
        %v1289 = vadd.f32 %v1287, %v378
        %v1291 = vrot.slane %v1289, 1
        %v1292 = vrot.slane %v1289, 2
        %v1293 = vrot.slane %v1289, 3
        %v1294 = vrot.slane %v1289, 4
        %v1295 = vrot.slane %v1289, 5
        %v1296 = vrot.slane %v1289, 6
        %v1297 = vrot.slane %v1289, 7
        %1305 = vst.msk [vmem:[%s215 + $0xc] sm:$0x1] %vm396, %v1289
        %1306 = vst.msk [vmem:[%s215 + $0x2c] sm:$0x1] %vm396, %v1291
        %1307 = vst.msk [vmem:[%s215 + $0x4c] sm:$0x1] %vm396, %v1292
        %1308 = vst.msk [vmem:[%s215 + $0x6c] sm:$0x1] %vm396, %v1293
        %1309 = vst.msk [vmem:[%s215 + $0x8c] sm:$0x1] %vm396, %v1294
        %1310 = vst.msk [vmem:[%s215 + $0xac] sm:$0x1] %vm396, %v1295
        %1311 = vst.msk [vmem:[%s215 + $0xcc] sm:$0x1] %vm396, %v1296
        %1312 = vst.msk [vmem:[%s215 + $0xec] sm:$0x1] %vm396, %v1297
        %v1313 = vld [vmem:[#allocation2 + $0x20] sm:$0xff]
        %v1314 = vld [vmem:[#allocation2 + $0x30] sm:$0xff]
        %1316 = vrot.lane.b32.xlu0 %v1314, 32
        %v1317 = vpop.permute.xlu0 %1316
        %v1318 = vsel %vm328, %v1317, 0
        %1320 = vmatpush.msra.mxu0 0.0
        %1321 = vmatpush.msra.mxu0 0.0
        %1322 = vmatpush.msra.mxu0 0.0
        %1323 = vmatpush.msra.mxu0 0.0
        %1324 = vmatpush.msra.mxu0 0.0
        %1325 = vmatpush.msra.mxu0 0.0
        %1326 = vmatpush.msra.mxu0 0.0
        %1327 = vmatpush.msra.mxu0 0.0
        %1328 = vmatpush.msra.mxu0 0.0
        %1329 = vmatpush.msra.mxu0 0.0
        %1330 = vmatpush.msra.mxu0 0.0
        %1331 = vmatpush.msra.mxu0 0.0
        %1332 = vmatpush.msra.mxu0 0.0
        %1333 = vmatpush.msra.mxu0 0.0
        %1334 = vmatpush.msra.mxu0 %v325
        %1335 = vmatpush.msra.mxu0 %v324
        %1336 = vmatmul.f32.gmra.mxu0 %v1318
        %v1337 = vpop.f32.mrf.mxu0
        %v1338 = vadd.f32 0.0, %v1337
        %1339 = vdwg.mxu0
        %1341 = vrot.lane.b32.xlu0 %v1313, 32
        %v1342 = vpop.permute.xlu0 %1341
        %v1343 = vsel %vm328, %v1342, 0
        %1345 = vmatpush.msra.mxu0 0.0
        %1346 = vmatpush.msra.mxu0 0.0
        %1347 = vmatpush.msra.mxu0 0.0
        %1348 = vmatpush.msra.mxu0 0.0
        %1349 = vmatpush.msra.mxu0 0.0
        %1350 = vmatpush.msra.mxu0 0.0
        %1351 = vmatpush.msra.mxu0 0.0
        %1352 = vmatpush.msra.mxu0 0.0
        %1353 = vmatpush.msra.mxu0 0.0
        %1354 = vmatpush.msra.mxu0 0.0
        %1355 = vmatpush.msra.mxu0 0.0
        %1356 = vmatpush.msra.mxu0 0.0
        %1357 = vmatpush.msra.mxu0 0.0
        %1358 = vmatpush.msra.mxu0 0.0
        %1359 = vmatpush.msra.mxu0 %v322
        %1360 = vmatpush.msra.mxu0 %v321
        %1361 = vmatmul.f32.gmra.mxu0 %v1343
        %v1362 = vpop.f32.mrf.mxu0
        %v1363 = vadd.f32 %v1338, %v1362
        %1364 = vdwg.mxu0
        %v1365 = vadd.f32 %v1363, %v378
        %v1367 = vrot.slane %v1365, 1
        %v1368 = vrot.slane %v1365, 2
        %v1369 = vrot.slane %v1365, 3
        %v1370 = vrot.slane %v1365, 4
        %v1371 = vrot.slane %v1365, 5
        %v1372 = vrot.slane %v1365, 6
        %v1373 = vrot.slane %v1365, 7
        %1381 = vst.msk [vmem:[%s215 + $0xd] sm:$0x1] %vm396, %v1365
        %1382 = vst.msk [vmem:[%s215 + $0x2d] sm:$0x1] %vm396, %v1367
        %1383 = vst.msk [vmem:[%s215 + $0x4d] sm:$0x1] %vm396, %v1368
        %1384 = vst.msk [vmem:[%s215 + $0x6d] sm:$0x1] %vm396, %v1369
        %1385 = vst.msk [vmem:[%s215 + $0x8d] sm:$0x1] %vm396, %v1370
        %1386 = vst.msk [vmem:[%s215 + $0xad] sm:$0x1] %vm396, %v1371
        %1387 = vst.msk [vmem:[%s215 + $0xcd] sm:$0x1] %vm396, %v1372
        %1388 = vst.msk [vmem:[%s215 + $0xed] sm:$0x1] %vm396, %v1373
        %v1389 = vld [vmem:[#allocation2] sm:$0xff]
        %v1390 = vld [vmem:[#allocation2 + $0x10] sm:$0xff]
        %1392 = vrot.lane.b32.xlu0 %v1390, 16
        %v1393 = vpop.permute.xlu0 %1392
        %v1394 = vsel %vm328, %v1393, 0
        %1396 = vmatpush.msra.mxu0 0.0
        %1397 = vmatpush.msra.mxu0 0.0
        %1398 = vmatpush.msra.mxu0 0.0
        %1399 = vmatpush.msra.mxu0 0.0
        %1400 = vmatpush.msra.mxu0 0.0
        %1401 = vmatpush.msra.mxu0 0.0
        %1402 = vmatpush.msra.mxu0 0.0
        %1403 = vmatpush.msra.mxu0 0.0
        %1404 = vmatpush.msra.mxu0 0.0
        %1405 = vmatpush.msra.mxu0 0.0
        %1406 = vmatpush.msra.mxu0 0.0
        %1407 = vmatpush.msra.mxu0 0.0
        %1408 = vmatpush.msra.mxu0 0.0
        %1409 = vmatpush.msra.mxu0 0.0
        %1410 = vmatpush.msra.mxu0 %v325
        %1411 = vmatpush.msra.mxu0 %v324
        %1412 = vmatmul.f32.gmra.mxu0 %v1394
        %v1413 = vpop.f32.mrf.mxu0
        %v1414 = vadd.f32 0.0, %v1413
        %1415 = vdwg.mxu0
        %1417 = vrot.lane.b32.xlu0 %v1389, 16
        %v1418 = vpop.permute.xlu0 %1417
        %v1419 = vsel %vm328, %v1418, 0
        %1421 = vmatpush.msra.mxu0 0.0
        %1422 = vmatpush.msra.mxu0 0.0
        %1423 = vmatpush.msra.mxu0 0.0
        %1424 = vmatpush.msra.mxu0 0.0
        %1425 = vmatpush.msra.mxu0 0.0
        %1426 = vmatpush.msra.mxu0 0.0
        %1427 = vmatpush.msra.mxu0 0.0
        %1428 = vmatpush.msra.mxu0 0.0
        %1429 = vmatpush.msra.mxu0 0.0
        %1430 = vmatpush.msra.mxu0 0.0
        %1431 = vmatpush.msra.mxu0 0.0
        %1432 = vmatpush.msra.mxu0 0.0
        %1433 = vmatpush.msra.mxu0 0.0
        %1434 = vmatpush.msra.mxu0 0.0
        %1435 = vmatpush.msra.mxu0 %v322
        %1436 = vmatpush.msra.mxu0 %v321
        %1437 = vmatmul.f32.gmra.mxu0 %v1419
        %v1438 = vpop.f32.mrf.mxu0
        %v1439 = vadd.f32 %v1414, %v1438
        %1440 = vdwg.mxu0
        %v1441 = vadd.f32 %v1439, %v378
        %v1443 = vrot.slane %v1441, 1
        %v1444 = vrot.slane %v1441, 2
        %v1445 = vrot.slane %v1441, 3
        %v1446 = vrot.slane %v1441, 4
        %v1447 = vrot.slane %v1441, 5
        %v1448 = vrot.slane %v1441, 6
        %v1449 = vrot.slane %v1441, 7
        %1457 = vst.msk [vmem:[%s215 + $0xe] sm:$0x1] %vm396, %v1441
        %1458 = vst.msk [vmem:[%s215 + $0x2e] sm:$0x1] %vm396, %v1443
        %1459 = vst.msk [vmem:[%s215 + $0x4e] sm:$0x1] %vm396, %v1444
        %1460 = vst.msk [vmem:[%s215 + $0x6e] sm:$0x1] %vm396, %v1445
        %1461 = vst.msk [vmem:[%s215 + $0x8e] sm:$0x1] %vm396, %v1446
        %1462 = vst.msk [vmem:[%s215 + $0xae] sm:$0x1] %vm396, %v1447
        %1463 = vst.msk [vmem:[%s215 + $0xce] sm:$0x1] %vm396, %v1448
        %1464 = vst.msk [vmem:[%s215 + $0xee] sm:$0x1] %vm396, %v1449
        %v1465 = vld [vmem:[#allocation2 + $0x20] sm:$0xff]
        %v1466 = vld [vmem:[#allocation2 + $0x30] sm:$0xff]
        %1468 = vrot.lane.b32.xlu0 %v1466, 16
        %v1469 = vpop.permute.xlu0 %1468
        %v1470 = vsel %vm328, %v1469, 0
        %1472 = vmatpush.msra.mxu0 0.0
        %1473 = vmatpush.msra.mxu0 0.0
        %1474 = vmatpush.msra.mxu0 0.0
        %1475 = vmatpush.msra.mxu0 0.0
        %1476 = vmatpush.msra.mxu0 0.0
        %1477 = vmatpush.msra.mxu0 0.0
        %1478 = vmatpush.msra.mxu0 0.0
        %1479 = vmatpush.msra.mxu0 0.0
        %1480 = vmatpush.msra.mxu0 0.0
        %1481 = vmatpush.msra.mxu0 0.0
        %1482 = vmatpush.msra.mxu0 0.0
        %1483 = vmatpush.msra.mxu0 0.0
        %1484 = vmatpush.msra.mxu0 0.0
        %1485 = vmatpush.msra.mxu0 0.0
        %1486 = vmatpush.msra.mxu0 %v325
        %1487 = vmatpush.msra.mxu0 %v324
        %1488 = vmatmul.f32.gmra.mxu0 %v1470
        %v1489 = vpop.f32.mrf.mxu0
        %v1490 = vadd.f32 0.0, %v1489
        %1491 = vdwg.mxu0
        %1493 = vrot.lane.b32.xlu0 %v1465, 16
        %v1494 = vpop.permute.xlu0 %1493
        %v1495 = vsel %vm328, %v1494, 0
        %1497 = vmatpush.msra.mxu0 0.0
        %1498 = vmatpush.msra.mxu0 0.0
        %1499 = vmatpush.msra.mxu0 0.0
        %1500 = vmatpush.msra.mxu0 0.0
        %1501 = vmatpush.msra.mxu0 0.0
        %1502 = vmatpush.msra.mxu0 0.0
        %1503 = vmatpush.msra.mxu0 0.0
        %1504 = vmatpush.msra.mxu0 0.0
        %1505 = vmatpush.msra.mxu0 0.0
        %1506 = vmatpush.msra.mxu0 0.0
        %1507 = vmatpush.msra.mxu0 0.0
        %1508 = vmatpush.msra.mxu0 0.0
        %1509 = vmatpush.msra.mxu0 0.0
        %1510 = vmatpush.msra.mxu0 0.0
        %1511 = vmatpush.msra.mxu0 %v322
        %1512 = vmatpush.msra.mxu0 %v321
        %1513 = vmatmul.f32.gmra.mxu0 %v1495
        %v1514 = vpop.f32.mrf.mxu0
        %v1515 = vadd.f32 %v1490, %v1514
        %1516 = vdwg.mxu0
        %v1517 = vadd.f32 %v1515, %v378
        %v1519 = vrot.slane %v1517, 1
        %v1520 = vrot.slane %v1517, 2
        %v1521 = vrot.slane %v1517, 3
        %v1522 = vrot.slane %v1517, 4
        %v1523 = vrot.slane %v1517, 5
        %v1524 = vrot.slane %v1517, 6
        %v1525 = vrot.slane %v1517, 7
        %1533 = vst.msk [vmem:[%s215 + $0xf] sm:$0x1] %vm396, %v1517
        %1534 = vst.msk [vmem:[%s215 + $0x2f] sm:$0x1] %vm396, %v1519
        %1535 = vst.msk [vmem:[%s215 + $0x4f] sm:$0x1] %vm396, %v1520
        %1536 = vst.msk [vmem:[%s215 + $0x6f] sm:$0x1] %vm396, %v1521
        %1537 = vst.msk [vmem:[%s215 + $0x8f] sm:$0x1] %vm396, %v1522
        %1538 = vst.msk [vmem:[%s215 + $0xaf] sm:$0x1] %vm396, %v1523
        %1539 = vst.msk [vmem:[%s215 + $0xcf] sm:$0x1] %vm396, %v1524
        %1540 = vst.msk [vmem:[%s215 + $0xef] sm:$0x1] %vm396, %v1525
        %v1541 = vld [vmem:[#allocation2 + $0x8] sm:$0xff]
        %v1542 = vld [vmem:[#allocation2 + $0x18] sm:$0xff]
        %v1544 = vsel %vm328, %v1542, 0
        %1546 = vmatpush.msra.mxu0 0.0
        %1547 = vmatpush.msra.mxu0 0.0
        %1548 = vmatpush.msra.mxu0 0.0
        %1549 = vmatpush.msra.mxu0 0.0
        %1550 = vmatpush.msra.mxu0 0.0
        %1551 = vmatpush.msra.mxu0 0.0
        %1552 = vmatpush.msra.mxu0 0.0
        %1553 = vmatpush.msra.mxu0 0.0
        %1554 = vmatpush.msra.mxu0 0.0
        %1555 = vmatpush.msra.mxu0 0.0
        %1556 = vmatpush.msra.mxu0 0.0
        %1557 = vmatpush.msra.mxu0 0.0
        %1558 = vmatpush.msra.mxu0 0.0
        %1559 = vmatpush.msra.mxu0 0.0
        %1560 = vmatpush.msra.mxu0 %v325
        %1561 = vmatpush.msra.mxu0 %v324
        %1562 = vmatmul.f32.gmra.mxu0 %v1544
        %v1563 = vpop.f32.mrf.mxu0
        %v1564 = vadd.f32 0.0, %v1563
        %1565 = vdwg.mxu0
        %v1567 = vsel %vm328, %v1541, 0
        %1569 = vmatpush.msra.mxu0 0.0
        %1570 = vmatpush.msra.mxu0 0.0
        %1571 = vmatpush.msra.mxu0 0.0
        %1572 = vmatpush.msra.mxu0 0.0
        %1573 = vmatpush.msra.mxu0 0.0
        %1574 = vmatpush.msra.mxu0 0.0
        %1575 = vmatpush.msra.mxu0 0.0
        %1576 = vmatpush.msra.mxu0 0.0
        %1577 = vmatpush.msra.mxu0 0.0
        %1578 = vmatpush.msra.mxu0 0.0
        %1579 = vmatpush.msra.mxu0 0.0
        %1580 = vmatpush.msra.mxu0 0.0
        %1581 = vmatpush.msra.mxu0 0.0
        %1582 = vmatpush.msra.mxu0 0.0
        %1583 = vmatpush.msra.mxu0 %v322
        %1584 = vmatpush.msra.mxu0 %v321
        %1585 = vmatmul.f32.gmra.mxu0 %v1567
        %v1586 = vpop.f32.mrf.mxu0
        %v1587 = vadd.f32 %v1564, %v1586
        %1588 = vdwg.mxu0
        %v1589 = vadd.f32 %v1587, %v378
        %v1591 = vrot.slane %v1589, 1
        %v1592 = vrot.slane %v1589, 2
        %v1593 = vrot.slane %v1589, 3
        %v1594 = vrot.slane %v1589, 4
        %v1595 = vrot.slane %v1589, 5
        %v1596 = vrot.slane %v1589, 6
        %v1597 = vrot.slane %v1589, 7
        %1605 = vst.msk [vmem:[%s215 + $0x10] sm:$0x1] %vm396, %v1589
        %1606 = vst.msk [vmem:[%s215 + $0x30] sm:$0x1] %vm396, %v1591
        %1607 = vst.msk [vmem:[%s215 + $0x50] sm:$0x1] %vm396, %v1592
        %1608 = vst.msk [vmem:[%s215 + $0x70] sm:$0x1] %vm396, %v1593
        %1609 = vst.msk [vmem:[%s215 + $0x90] sm:$0x1] %vm396, %v1594
        %1610 = vst.msk [vmem:[%s215 + $0xb0] sm:$0x1] %vm396, %v1595
        %1611 = vst.msk [vmem:[%s215 + $0xd0] sm:$0x1] %vm396, %v1596
        %1612 = vst.msk [vmem:[%s215 + $0xf0] sm:$0x1] %vm396, %v1597
        %v1613 = vld [vmem:[#allocation2 + $0x28] sm:$0xff]
        %v1614 = vld [vmem:[#allocation2 + $0x38] sm:$0xff]
        %v1616 = vsel %vm328, %v1614, 0
        %1618 = vmatpush.msra.mxu0 0.0
        %1619 = vmatpush.msra.mxu0 0.0
        %1620 = vmatpush.msra.mxu0 0.0
        %1621 = vmatpush.msra.mxu0 0.0
        %1622 = vmatpush.msra.mxu0 0.0
        %1623 = vmatpush.msra.mxu0 0.0
        %1624 = vmatpush.msra.mxu0 0.0
        %1625 = vmatpush.msra.mxu0 0.0
        %1626 = vmatpush.msra.mxu0 0.0
        %1627 = vmatpush.msra.mxu0 0.0
        %1628 = vmatpush.msra.mxu0 0.0
        %1629 = vmatpush.msra.mxu0 0.0
        %1630 = vmatpush.msra.mxu0 0.0
        %1631 = vmatpush.msra.mxu0 0.0
        %1632 = vmatpush.msra.mxu0 %v325
        %1633 = vmatpush.msra.mxu0 %v324
        %1634 = vmatmul.f32.gmra.mxu0 %v1616
        %v1635 = vpop.f32.mrf.mxu0
        %v1636 = vadd.f32 0.0, %v1635
        %1637 = vdwg.mxu0
        %v1639 = vsel %vm328, %v1613, 0
        %1641 = vmatpush.msra.mxu0 0.0
        %1642 = vmatpush.msra.mxu0 0.0
        %1643 = vmatpush.msra.mxu0 0.0
        %1644 = vmatpush.msra.mxu0 0.0
        %1645 = vmatpush.msra.mxu0 0.0
        %1646 = vmatpush.msra.mxu0 0.0
        %1647 = vmatpush.msra.mxu0 0.0
        %1648 = vmatpush.msra.mxu0 0.0
        %1649 = vmatpush.msra.mxu0 0.0
        %1650 = vmatpush.msra.mxu0 0.0
        %1651 = vmatpush.msra.mxu0 0.0
        %1652 = vmatpush.msra.mxu0 0.0
        %1653 = vmatpush.msra.mxu0 0.0
        %1654 = vmatpush.msra.mxu0 0.0
        %1655 = vmatpush.msra.mxu0 %v322
        %1656 = vmatpush.msra.mxu0 %v321
        %1657 = vmatmul.f32.gmra.mxu0 %v1639
        %v1658 = vpop.f32.mrf.mxu0
        %v1659 = vadd.f32 %v1636, %v1658
        %1660 = vdwg.mxu0
        %v1661 = vadd.f32 %v1659, %v378
        %v1663 = vrot.slane %v1661, 1
        %v1664 = vrot.slane %v1661, 2
        %v1665 = vrot.slane %v1661, 3
        %v1666 = vrot.slane %v1661, 4
        %v1667 = vrot.slane %v1661, 5
        %v1668 = vrot.slane %v1661, 6
        %v1669 = vrot.slane %v1661, 7
        %1677 = vst.msk [vmem:[%s215 + $0x11] sm:$0x1] %vm396, %v1661
        %1678 = vst.msk [vmem:[%s215 + $0x31] sm:$0x1] %vm396, %v1663
        %1679 = vst.msk [vmem:[%s215 + $0x51] sm:$0x1] %vm396, %v1664
        %1680 = vst.msk [vmem:[%s215 + $0x71] sm:$0x1] %vm396, %v1665
        %1681 = vst.msk [vmem:[%s215 + $0x91] sm:$0x1] %vm396, %v1666
        %1682 = vst.msk [vmem:[%s215 + $0xb1] sm:$0x1] %vm396, %v1667
        %1683 = vst.msk [vmem:[%s215 + $0xd1] sm:$0x1] %vm396, %v1668
        %1684 = vst.msk [vmem:[%s215 + $0xf1] sm:$0x1] %vm396, %v1669
        %v1685 = vld [vmem:[#allocation2 + $0x8] sm:$0xff]
        %v1686 = vld [vmem:[#allocation2 + $0x18] sm:$0xff]
        %1688 = vrot.lane.b32.xlu0 %v1686, 112
        %v1689 = vpop.permute.xlu0 %1688
        %v1690 = vsel %vm328, %v1689, 0
        %1692 = vmatpush.msra.mxu0 0.0
        %1693 = vmatpush.msra.mxu0 0.0
        %1694 = vmatpush.msra.mxu0 0.0
        %1695 = vmatpush.msra.mxu0 0.0
        %1696 = vmatpush.msra.mxu0 0.0
        %1697 = vmatpush.msra.mxu0 0.0
        %1698 = vmatpush.msra.mxu0 0.0
        %1699 = vmatpush.msra.mxu0 0.0
        %1700 = vmatpush.msra.mxu0 0.0
        %1701 = vmatpush.msra.mxu0 0.0
        %1702 = vmatpush.msra.mxu0 0.0
        %1703 = vmatpush.msra.mxu0 0.0
        %1704 = vmatpush.msra.mxu0 0.0
        %1705 = vmatpush.msra.mxu0 0.0
        %1706 = vmatpush.msra.mxu0 %v325
        %1707 = vmatpush.msra.mxu0 %v324
        %1708 = vmatmul.f32.gmra.mxu0 %v1690
        %v1709 = vpop.f32.mrf.mxu0
        %v1710 = vadd.f32 0.0, %v1709
        %1711 = vdwg.mxu0
        %1713 = vrot.lane.b32.xlu0 %v1685, 112
        %v1714 = vpop.permute.xlu0 %1713
        %v1715 = vsel %vm328, %v1714, 0
        %1717 = vmatpush.msra.mxu0 0.0
        %1718 = vmatpush.msra.mxu0 0.0
        %1719 = vmatpush.msra.mxu0 0.0
        %1720 = vmatpush.msra.mxu0 0.0
        %1721 = vmatpush.msra.mxu0 0.0
        %1722 = vmatpush.msra.mxu0 0.0
        %1723 = vmatpush.msra.mxu0 0.0
        %1724 = vmatpush.msra.mxu0 0.0
        %1725 = vmatpush.msra.mxu0 0.0
        %1726 = vmatpush.msra.mxu0 0.0
        %1727 = vmatpush.msra.mxu0 0.0
        %1728 = vmatpush.msra.mxu0 0.0
        %1729 = vmatpush.msra.mxu0 0.0
        %1730 = vmatpush.msra.mxu0 0.0
        %1731 = vmatpush.msra.mxu0 %v322
        %1732 = vmatpush.msra.mxu0 %v321
        %1733 = vmatmul.f32.gmra.mxu0 %v1715
        %v1734 = vpop.f32.mrf.mxu0
        %v1735 = vadd.f32 %v1710, %v1734
        %1736 = vdwg.mxu0
        %v1737 = vadd.f32 %v1735, %v378
        %v1739 = vrot.slane %v1737, 1
        %v1740 = vrot.slane %v1737, 2
        %v1741 = vrot.slane %v1737, 3
        %v1742 = vrot.slane %v1737, 4
        %v1743 = vrot.slane %v1737, 5
        %v1744 = vrot.slane %v1737, 6
        %v1745 = vrot.slane %v1737, 7
        %1753 = vst.msk [vmem:[%s215 + $0x12] sm:$0x1] %vm396, %v1737
        %1754 = vst.msk [vmem:[%s215 + $0x32] sm:$0x1] %vm396, %v1739
        %1755 = vst.msk [vmem:[%s215 + $0x52] sm:$0x1] %vm396, %v1740
        %1756 = vst.msk [vmem:[%s215 + $0x72] sm:$0x1] %vm396, %v1741
        %1757 = vst.msk [vmem:[%s215 + $0x92] sm:$0x1] %vm396, %v1742
        %1758 = vst.msk [vmem:[%s215 + $0xb2] sm:$0x1] %vm396, %v1743
        %1759 = vst.msk [vmem:[%s215 + $0xd2] sm:$0x1] %vm396, %v1744
        %1760 = vst.msk [vmem:[%s215 + $0xf2] sm:$0x1] %vm396, %v1745
        %v1761 = vld [vmem:[#allocation2 + $0x28] sm:$0xff]
        %v1762 = vld [vmem:[#allocation2 + $0x38] sm:$0xff]
        %1764 = vrot.lane.b32.xlu0 %v1762, 112
        %v1765 = vpop.permute.xlu0 %1764
        %v1766 = vsel %vm328, %v1765, 0
        %1768 = vmatpush.msra.mxu0 0.0
        %1769 = vmatpush.msra.mxu0 0.0
        %1770 = vmatpush.msra.mxu0 0.0
        %1771 = vmatpush.msra.mxu0 0.0
        %1772 = vmatpush.msra.mxu0 0.0
        %1773 = vmatpush.msra.mxu0 0.0
        %1774 = vmatpush.msra.mxu0 0.0
        %1775 = vmatpush.msra.mxu0 0.0
        %1776 = vmatpush.msra.mxu0 0.0
        %1777 = vmatpush.msra.mxu0 0.0
        %1778 = vmatpush.msra.mxu0 0.0
        %1779 = vmatpush.msra.mxu0 0.0
        %1780 = vmatpush.msra.mxu0 0.0
        %1781 = vmatpush.msra.mxu0 0.0
        %1782 = vmatpush.msra.mxu0 %v325
        %1783 = vmatpush.msra.mxu0 %v324
        %1784 = vmatmul.f32.gmra.mxu0 %v1766
        %v1785 = vpop.f32.mrf.mxu0
        %v1786 = vadd.f32 0.0, %v1785
        %1787 = vdwg.mxu0
        %1789 = vrot.lane.b32.xlu0 %v1761, 112
        %v1790 = vpop.permute.xlu0 %1789
        %v1791 = vsel %vm328, %v1790, 0
        %1793 = vmatpush.msra.mxu0 0.0
        %1794 = vmatpush.msra.mxu0 0.0
        %1795 = vmatpush.msra.mxu0 0.0
        %1796 = vmatpush.msra.mxu0 0.0
        %1797 = vmatpush.msra.mxu0 0.0
        %1798 = vmatpush.msra.mxu0 0.0
        %1799 = vmatpush.msra.mxu0 0.0
        %1800 = vmatpush.msra.mxu0 0.0
        %1801 = vmatpush.msra.mxu0 0.0
        %1802 = vmatpush.msra.mxu0 0.0
        %1803 = vmatpush.msra.mxu0 0.0
        %1804 = vmatpush.msra.mxu0 0.0
        %1805 = vmatpush.msra.mxu0 0.0
        %1806 = vmatpush.msra.mxu0 0.0
        %1807 = vmatpush.msra.mxu0 %v322
        %1808 = vmatpush.msra.mxu0 %v321
        %1809 = vmatmul.f32.gmra.mxu0 %v1791
        %v1810 = vpop.f32.mrf.mxu0
        %v1811 = vadd.f32 %v1786, %v1810
        %1812 = vdwg.mxu0
        %v1813 = vadd.f32 %v1811, %v378
        %v1815 = vrot.slane %v1813, 1
        %v1816 = vrot.slane %v1813, 2
        %v1817 = vrot.slane %v1813, 3
        %v1818 = vrot.slane %v1813, 4
        %v1819 = vrot.slane %v1813, 5
        %v1820 = vrot.slane %v1813, 6
        %v1821 = vrot.slane %v1813, 7
        %1829 = vst.msk [vmem:[%s215 + $0x13] sm:$0x1] %vm396, %v1813
        %1830 = vst.msk [vmem:[%s215 + $0x33] sm:$0x1] %vm396, %v1815
        %1831 = vst.msk [vmem:[%s215 + $0x53] sm:$0x1] %vm396, %v1816
        %1832 = vst.msk [vmem:[%s215 + $0x73] sm:$0x1] %vm396, %v1817
        %1833 = vst.msk [vmem:[%s215 + $0x93] sm:$0x1] %vm396, %v1818
        %1834 = vst.msk [vmem:[%s215 + $0xb3] sm:$0x1] %vm396, %v1819
        %1835 = vst.msk [vmem:[%s215 + $0xd3] sm:$0x1] %vm396, %v1820
        %1836 = vst.msk [vmem:[%s215 + $0xf3] sm:$0x1] %vm396, %v1821
        %v1837 = vld [vmem:[#allocation2 + $0x8] sm:$0xff]
        %v1838 = vld [vmem:[#allocation2 + $0x18] sm:$0xff]
        %1840 = vrot.lane.b32.xlu0 %v1838, 96
        %v1841 = vpop.permute.xlu0 %1840
        %v1842 = vsel %vm328, %v1841, 0
        %1844 = vmatpush.msra.mxu0 0.0
        %1845 = vmatpush.msra.mxu0 0.0
        %1846 = vmatpush.msra.mxu0 0.0
        %1847 = vmatpush.msra.mxu0 0.0
        %1848 = vmatpush.msra.mxu0 0.0
        %1849 = vmatpush.msra.mxu0 0.0
        %1850 = vmatpush.msra.mxu0 0.0
        %1851 = vmatpush.msra.mxu0 0.0
        %1852 = vmatpush.msra.mxu0 0.0
        %1853 = vmatpush.msra.mxu0 0.0
        %1854 = vmatpush.msra.mxu0 0.0
        %1855 = vmatpush.msra.mxu0 0.0
        %1856 = vmatpush.msra.mxu0 0.0
        %1857 = vmatpush.msra.mxu0 0.0
        %1858 = vmatpush.msra.mxu0 %v325
        %1859 = vmatpush.msra.mxu0 %v324
        %1860 = vmatmul.f32.gmra.mxu0 %v1842
        %v1861 = vpop.f32.mrf.mxu0
        %v1862 = vadd.f32 0.0, %v1861
        %1863 = vdwg.mxu0
        %1865 = vrot.lane.b32.xlu0 %v1837, 96
        %v1866 = vpop.permute.xlu0 %1865
        %v1867 = vsel %vm328, %v1866, 0
        %1869 = vmatpush.msra.mxu0 0.0
        %1870 = vmatpush.msra.mxu0 0.0
        %1871 = vmatpush.msra.mxu0 0.0
        %1872 = vmatpush.msra.mxu0 0.0
        %1873 = vmatpush.msra.mxu0 0.0
        %1874 = vmatpush.msra.mxu0 0.0
        %1875 = vmatpush.msra.mxu0 0.0
        %1876 = vmatpush.msra.mxu0 0.0
        %1877 = vmatpush.msra.mxu0 0.0
        %1878 = vmatpush.msra.mxu0 0.0
        %1879 = vmatpush.msra.mxu0 0.0
        %1880 = vmatpush.msra.mxu0 0.0
        %1881 = vmatpush.msra.mxu0 0.0
        %1882 = vmatpush.msra.mxu0 0.0
        %1883 = vmatpush.msra.mxu0 %v322
        %1884 = vmatpush.msra.mxu0 %v321
        %1885 = vmatmul.f32.gmra.mxu0 %v1867
        %v1886 = vpop.f32.mrf.mxu0
        %v1887 = vadd.f32 %v1862, %v1886
        %1888 = vdwg.mxu0
        %v1889 = vadd.f32 %v1887, %v378
        %v1891 = vrot.slane %v1889, 1
        %v1892 = vrot.slane %v1889, 2
        %v1893 = vrot.slane %v1889, 3
        %v1894 = vrot.slane %v1889, 4
        %v1895 = vrot.slane %v1889, 5
        %v1896 = vrot.slane %v1889, 6
        %v1897 = vrot.slane %v1889, 7
        %1905 = vst.msk [vmem:[%s215 + $0x14] sm:$0x1] %vm396, %v1889
        %1906 = vst.msk [vmem:[%s215 + $0x34] sm:$0x1] %vm396, %v1891
        %1907 = vst.msk [vmem:[%s215 + $0x54] sm:$0x1] %vm396, %v1892
        %1908 = vst.msk [vmem:[%s215 + $0x74] sm:$0x1] %vm396, %v1893
        %1909 = vst.msk [vmem:[%s215 + $0x94] sm:$0x1] %vm396, %v1894
        %1910 = vst.msk [vmem:[%s215 + $0xb4] sm:$0x1] %vm396, %v1895
        %1911 = vst.msk [vmem:[%s215 + $0xd4] sm:$0x1] %vm396, %v1896
        %1912 = vst.msk [vmem:[%s215 + $0xf4] sm:$0x1] %vm396, %v1897
        %v1913 = vld [vmem:[#allocation2 + $0x28] sm:$0xff]
        %v1914 = vld [vmem:[#allocation2 + $0x38] sm:$0xff]
        %1916 = vrot.lane.b32.xlu0 %v1914, 96
        %v1917 = vpop.permute.xlu0 %1916
        %v1918 = vsel %vm328, %v1917, 0
        %1920 = vmatpush.msra.mxu0 0.0
        %1921 = vmatpush.msra.mxu0 0.0
        %1922 = vmatpush.msra.mxu0 0.0
        %1923 = vmatpush.msra.mxu0 0.0
        %1924 = vmatpush.msra.mxu0 0.0
        %1925 = vmatpush.msra.mxu0 0.0
        %1926 = vmatpush.msra.mxu0 0.0
        %1927 = vmatpush.msra.mxu0 0.0
        %1928 = vmatpush.msra.mxu0 0.0
        %1929 = vmatpush.msra.mxu0 0.0
        %1930 = vmatpush.msra.mxu0 0.0
        %1931 = vmatpush.msra.mxu0 0.0
        %1932 = vmatpush.msra.mxu0 0.0
        %1933 = vmatpush.msra.mxu0 0.0
        %1934 = vmatpush.msra.mxu0 %v325
        %1935 = vmatpush.msra.mxu0 %v324
        %1936 = vmatmul.f32.gmra.mxu0 %v1918
        %v1937 = vpop.f32.mrf.mxu0
        %v1938 = vadd.f32 0.0, %v1937
        %1939 = vdwg.mxu0
        %1941 = vrot.lane.b32.xlu0 %v1913, 96
        %v1942 = vpop.permute.xlu0 %1941
        %v1943 = vsel %vm328, %v1942, 0
        %1945 = vmatpush.msra.mxu0 0.0
        %1946 = vmatpush.msra.mxu0 0.0
        %1947 = vmatpush.msra.mxu0 0.0
        %1948 = vmatpush.msra.mxu0 0.0
        %1949 = vmatpush.msra.mxu0 0.0
        %1950 = vmatpush.msra.mxu0 0.0
        %1951 = vmatpush.msra.mxu0 0.0
        %1952 = vmatpush.msra.mxu0 0.0
        %1953 = vmatpush.msra.mxu0 0.0
        %1954 = vmatpush.msra.mxu0 0.0
        %1955 = vmatpush.msra.mxu0 0.0
        %1956 = vmatpush.msra.mxu0 0.0
        %1957 = vmatpush.msra.mxu0 0.0
        %1958 = vmatpush.msra.mxu0 0.0
        %1959 = vmatpush.msra.mxu0 %v322
        %1960 = vmatpush.msra.mxu0 %v321
        %1961 = vmatmul.f32.gmra.mxu0 %v1943
        %v1962 = vpop.f32.mrf.mxu0
        %v1963 = vadd.f32 %v1938, %v1962
        %1964 = vdwg.mxu0
        %v1965 = vadd.f32 %v1963, %v378
        %v1967 = vrot.slane %v1965, 1
        %v1968 = vrot.slane %v1965, 2
        %v1969 = vrot.slane %v1965, 3
        %v1970 = vrot.slane %v1965, 4
        %v1971 = vrot.slane %v1965, 5
        %v1972 = vrot.slane %v1965, 6
        %v1973 = vrot.slane %v1965, 7
        %1981 = vst.msk [vmem:[%s215 + $0x15] sm:$0x1] %vm396, %v1965
        %1982 = vst.msk [vmem:[%s215 + $0x35] sm:$0x1] %vm396, %v1967
        %1983 = vst.msk [vmem:[%s215 + $0x55] sm:$0x1] %vm396, %v1968
        %1984 = vst.msk [vmem:[%s215 + $0x75] sm:$0x1] %vm396, %v1969
        %1985 = vst.msk [vmem:[%s215 + $0x95] sm:$0x1] %vm396, %v1970
        %1986 = vst.msk [vmem:[%s215 + $0xb5] sm:$0x1] %vm396, %v1971
        %1987 = vst.msk [vmem:[%s215 + $0xd5] sm:$0x1] %vm396, %v1972
        %1988 = vst.msk [vmem:[%s215 + $0xf5] sm:$0x1] %vm396, %v1973
        %v1989 = vld [vmem:[#allocation2 + $0x8] sm:$0xff]
        %v1990 = vld [vmem:[#allocation2 + $0x18] sm:$0xff]
        %1992 = vrot.lane.b32.xlu0 %v1990, 80
        %v1993 = vpop.permute.xlu0 %1992
        %v1994 = vsel %vm328, %v1993, 0
        %1996 = vmatpush.msra.mxu0 0.0
        %1997 = vmatpush.msra.mxu0 0.0
        %1998 = vmatpush.msra.mxu0 0.0
        %1999 = vmatpush.msra.mxu0 0.0
        %2000 = vmatpush.msra.mxu0 0.0
        %2001 = vmatpush.msra.mxu0 0.0
        %2002 = vmatpush.msra.mxu0 0.0
        %2003 = vmatpush.msra.mxu0 0.0
        %2004 = vmatpush.msra.mxu0 0.0
        %2005 = vmatpush.msra.mxu0 0.0
        %2006 = vmatpush.msra.mxu0 0.0
        %2007 = vmatpush.msra.mxu0 0.0
        %2008 = vmatpush.msra.mxu0 0.0
        %2009 = vmatpush.msra.mxu0 0.0
        %2010 = vmatpush.msra.mxu0 %v325
        %2011 = vmatpush.msra.mxu0 %v324
        %2012 = vmatmul.f32.gmra.mxu0 %v1994
        %v2013 = vpop.f32.mrf.mxu0
        %v2014 = vadd.f32 0.0, %v2013
        %2015 = vdwg.mxu0
        %2017 = vrot.lane.b32.xlu0 %v1989, 80
        %v2018 = vpop.permute.xlu0 %2017
        %v2019 = vsel %vm328, %v2018, 0
        %2021 = vmatpush.msra.mxu0 0.0
        %2022 = vmatpush.msra.mxu0 0.0
        %2023 = vmatpush.msra.mxu0 0.0
        %2024 = vmatpush.msra.mxu0 0.0
        %2025 = vmatpush.msra.mxu0 0.0
        %2026 = vmatpush.msra.mxu0 0.0
        %2027 = vmatpush.msra.mxu0 0.0
        %2028 = vmatpush.msra.mxu0 0.0
        %2029 = vmatpush.msra.mxu0 0.0
        %2030 = vmatpush.msra.mxu0 0.0
        %2031 = vmatpush.msra.mxu0 0.0
        %2032 = vmatpush.msra.mxu0 0.0
        %2033 = vmatpush.msra.mxu0 0.0
        %2034 = vmatpush.msra.mxu0 0.0
        %2035 = vmatpush.msra.mxu0 %v322
        %2036 = vmatpush.msra.mxu0 %v321
        %2037 = vmatmul.f32.gmra.mxu0 %v2019
        %v2038 = vpop.f32.mrf.mxu0
        %v2039 = vadd.f32 %v2014, %v2038
        %2040 = vdwg.mxu0
        %v2041 = vadd.f32 %v2039, %v378
        %v2043 = vrot.slane %v2041, 1
        %v2044 = vrot.slane %v2041, 2
        %v2045 = vrot.slane %v2041, 3
        %v2046 = vrot.slane %v2041, 4
        %v2047 = vrot.slane %v2041, 5
        %v2048 = vrot.slane %v2041, 6
        %v2049 = vrot.slane %v2041, 7
        %2057 = vst.msk [vmem:[%s215 + $0x16] sm:$0x1] %vm396, %v2041
        %2058 = vst.msk [vmem:[%s215 + $0x36] sm:$0x1] %vm396, %v2043
        %2059 = vst.msk [vmem:[%s215 + $0x56] sm:$0x1] %vm396, %v2044
        %2060 = vst.msk [vmem:[%s215 + $0x76] sm:$0x1] %vm396, %v2045
        %2061 = vst.msk [vmem:[%s215 + $0x96] sm:$0x1] %vm396, %v2046
        %2062 = vst.msk [vmem:[%s215 + $0xb6] sm:$0x1] %vm396, %v2047
        %2063 = vst.msk [vmem:[%s215 + $0xd6] sm:$0x1] %vm396, %v2048
        %2064 = vst.msk [vmem:[%s215 + $0xf6] sm:$0x1] %vm396, %v2049
        %v2065 = vld [vmem:[#allocation2 + $0x28] sm:$0xff]
        %v2066 = vld [vmem:[#allocation2 + $0x38] sm:$0xff]
        %2068 = vrot.lane.b32.xlu0 %v2066, 80
        %v2069 = vpop.permute.xlu0 %2068
        %v2070 = vsel %vm328, %v2069, 0
        %2072 = vmatpush.msra.mxu0 0.0
        %2073 = vmatpush.msra.mxu0 0.0
        %2074 = vmatpush.msra.mxu0 0.0
        %2075 = vmatpush.msra.mxu0 0.0
        %2076 = vmatpush.msra.mxu0 0.0
        %2077 = vmatpush.msra.mxu0 0.0
        %2078 = vmatpush.msra.mxu0 0.0
        %2079 = vmatpush.msra.mxu0 0.0
        %2080 = vmatpush.msra.mxu0 0.0
        %2081 = vmatpush.msra.mxu0 0.0
        %2082 = vmatpush.msra.mxu0 0.0
        %2083 = vmatpush.msra.mxu0 0.0
        %2084 = vmatpush.msra.mxu0 0.0
        %2085 = vmatpush.msra.mxu0 0.0
        %2086 = vmatpush.msra.mxu0 %v325
        %2087 = vmatpush.msra.mxu0 %v324
        %2088 = vmatmul.f32.gmra.mxu0 %v2070
        %v2089 = vpop.f32.mrf.mxu0
        %v2090 = vadd.f32 0.0, %v2089
        %2091 = vdwg.mxu0
        %2093 = vrot.lane.b32.xlu0 %v2065, 80
        %v2094 = vpop.permute.xlu0 %2093
        %v2095 = vsel %vm328, %v2094, 0
        %2097 = vmatpush.msra.mxu0 0.0
        %2098 = vmatpush.msra.mxu0 0.0
        %2099 = vmatpush.msra.mxu0 0.0
        %2100 = vmatpush.msra.mxu0 0.0
        %2101 = vmatpush.msra.mxu0 0.0
        %2102 = vmatpush.msra.mxu0 0.0
        %2103 = vmatpush.msra.mxu0 0.0
        %2104 = vmatpush.msra.mxu0 0.0
        %2105 = vmatpush.msra.mxu0 0.0
        %2106 = vmatpush.msra.mxu0 0.0
        %2107 = vmatpush.msra.mxu0 0.0
        %2108 = vmatpush.msra.mxu0 0.0
        %2109 = vmatpush.msra.mxu0 0.0
        %2110 = vmatpush.msra.mxu0 0.0
        %2111 = vmatpush.msra.mxu0 %v322
        %2112 = vmatpush.msra.mxu0 %v321
        %2113 = vmatmul.f32.gmra.mxu0 %v2095
        %v2114 = vpop.f32.mrf.mxu0
        %v2115 = vadd.f32 %v2090, %v2114
        %2116 = vdwg.mxu0
        %v2117 = vadd.f32 %v2115, %v378
        %v2119 = vrot.slane %v2117, 1
        %v2120 = vrot.slane %v2117, 2
        %v2121 = vrot.slane %v2117, 3
        %v2122 = vrot.slane %v2117, 4
        %v2123 = vrot.slane %v2117, 5
        %v2124 = vrot.slane %v2117, 6
        %v2125 = vrot.slane %v2117, 7
        %2133 = vst.msk [vmem:[%s215 + $0x17] sm:$0x1] %vm396, %v2117
        %2134 = vst.msk [vmem:[%s215 + $0x37] sm:$0x1] %vm396, %v2119
        %2135 = vst.msk [vmem:[%s215 + $0x57] sm:$0x1] %vm396, %v2120
        %2136 = vst.msk [vmem:[%s215 + $0x77] sm:$0x1] %vm396, %v2121
        %2137 = vst.msk [vmem:[%s215 + $0x97] sm:$0x1] %vm396, %v2122
        %2138 = vst.msk [vmem:[%s215 + $0xb7] sm:$0x1] %vm396, %v2123
        %2139 = vst.msk [vmem:[%s215 + $0xd7] sm:$0x1] %vm396, %v2124
        %2140 = vst.msk [vmem:[%s215 + $0xf7] sm:$0x1] %vm396, %v2125
        %v2141 = vld [vmem:[#allocation2 + $0x8] sm:$0xff]
        %v2142 = vld [vmem:[#allocation2 + $0x18] sm:$0xff]
        %2144 = vrot.lane.b32.xlu0 %v2142, 64
        %v2145 = vpop.permute.xlu0 %2144
        %v2146 = vsel %vm328, %v2145, 0
        %2148 = vmatpush.msra.mxu0 0.0
        %2149 = vmatpush.msra.mxu0 0.0
        %2150 = vmatpush.msra.mxu0 0.0
        %2151 = vmatpush.msra.mxu0 0.0
        %2152 = vmatpush.msra.mxu0 0.0
        %2153 = vmatpush.msra.mxu0 0.0
        %2154 = vmatpush.msra.mxu0 0.0
        %2155 = vmatpush.msra.mxu0 0.0
        %2156 = vmatpush.msra.mxu0 0.0
        %2157 = vmatpush.msra.mxu0 0.0
        %2158 = vmatpush.msra.mxu0 0.0
        %2159 = vmatpush.msra.mxu0 0.0
        %2160 = vmatpush.msra.mxu0 0.0
        %2161 = vmatpush.msra.mxu0 0.0
        %2162 = vmatpush.msra.mxu0 %v325
        %2163 = vmatpush.msra.mxu0 %v324
        %2164 = vmatmul.f32.gmra.mxu0 %v2146
        %v2165 = vpop.f32.mrf.mxu0
        %v2166 = vadd.f32 0.0, %v2165
        %2167 = vdwg.mxu0
        %2169 = vrot.lane.b32.xlu0 %v2141, 64
        %v2170 = vpop.permute.xlu0 %2169
        %v2171 = vsel %vm328, %v2170, 0
        %2173 = vmatpush.msra.mxu0 0.0
        %2174 = vmatpush.msra.mxu0 0.0
        %2175 = vmatpush.msra.mxu0 0.0
        %2176 = vmatpush.msra.mxu0 0.0
        %2177 = vmatpush.msra.mxu0 0.0
        %2178 = vmatpush.msra.mxu0 0.0
        %2179 = vmatpush.msra.mxu0 0.0
        %2180 = vmatpush.msra.mxu0 0.0
        %2181 = vmatpush.msra.mxu0 0.0
        %2182 = vmatpush.msra.mxu0 0.0
        %2183 = vmatpush.msra.mxu0 0.0
        %2184 = vmatpush.msra.mxu0 0.0
        %2185 = vmatpush.msra.mxu0 0.0
        %2186 = vmatpush.msra.mxu0 0.0
        %2187 = vmatpush.msra.mxu0 %v322
        %2188 = vmatpush.msra.mxu0 %v321
        %2189 = vmatmul.f32.gmra.mxu0 %v2171
        %v2190 = vpop.f32.mrf.mxu0
        %v2191 = vadd.f32 %v2166, %v2190
        %2192 = vdwg.mxu0
        %v2193 = vadd.f32 %v2191, %v378
        %v2195 = vrot.slane %v2193, 1
        %v2196 = vrot.slane %v2193, 2
        %v2197 = vrot.slane %v2193, 3
        %v2198 = vrot.slane %v2193, 4
        %v2199 = vrot.slane %v2193, 5
        %v2200 = vrot.slane %v2193, 6
        %v2201 = vrot.slane %v2193, 7
        %2209 = vst.msk [vmem:[%s215 + $0x18] sm:$0x1] %vm396, %v2193
        %2210 = vst.msk [vmem:[%s215 + $0x38] sm:$0x1] %vm396, %v2195
        %2211 = vst.msk [vmem:[%s215 + $0x58] sm:$0x1] %vm396, %v2196
        %2212 = vst.msk [vmem:[%s215 + $0x78] sm:$0x1] %vm396, %v2197
        %2213 = vst.msk [vmem:[%s215 + $0x98] sm:$0x1] %vm396, %v2198
        %2214 = vst.msk [vmem:[%s215 + $0xb8] sm:$0x1] %vm396, %v2199
        %2215 = vst.msk [vmem:[%s215 + $0xd8] sm:$0x1] %vm396, %v2200
        %2216 = vst.msk [vmem:[%s215 + $0xf8] sm:$0x1] %vm396, %v2201
        %v2217 = vld [vmem:[#allocation2 + $0x28] sm:$0xff]
        %v2218 = vld [vmem:[#allocation2 + $0x38] sm:$0xff]
        %2220 = vrot.lane.b32.xlu0 %v2218, 64
        %v2221 = vpop.permute.xlu0 %2220
        %v2222 = vsel %vm328, %v2221, 0
        %2224 = vmatpush.msra.mxu0 0.0
        %2225 = vmatpush.msra.mxu0 0.0
        %2226 = vmatpush.msra.mxu0 0.0
        %2227 = vmatpush.msra.mxu0 0.0
        %2228 = vmatpush.msra.mxu0 0.0
        %2229 = vmatpush.msra.mxu0 0.0
        %2230 = vmatpush.msra.mxu0 0.0
        %2231 = vmatpush.msra.mxu0 0.0
        %2232 = vmatpush.msra.mxu0 0.0
        %2233 = vmatpush.msra.mxu0 0.0
        %2234 = vmatpush.msra.mxu0 0.0
        %2235 = vmatpush.msra.mxu0 0.0
        %2236 = vmatpush.msra.mxu0 0.0
        %2237 = vmatpush.msra.mxu0 0.0
        %2238 = vmatpush.msra.mxu0 %v325
        %2239 = vmatpush.msra.mxu0 %v324
        %2240 = vmatmul.f32.gmra.mxu0 %v2222
        %v2241 = vpop.f32.mrf.mxu0
        %v2242 = vadd.f32 0.0, %v2241
        %2243 = vdwg.mxu0
        %2245 = vrot.lane.b32.xlu0 %v2217, 64
        %v2246 = vpop.permute.xlu0 %2245
        %v2247 = vsel %vm328, %v2246, 0
        %2249 = vmatpush.msra.mxu0 0.0
        %2250 = vmatpush.msra.mxu0 0.0
        %2251 = vmatpush.msra.mxu0 0.0
        %2252 = vmatpush.msra.mxu0 0.0
        %2253 = vmatpush.msra.mxu0 0.0
        %2254 = vmatpush.msra.mxu0 0.0
        %2255 = vmatpush.msra.mxu0 0.0
        %2256 = vmatpush.msra.mxu0 0.0
        %2257 = vmatpush.msra.mxu0 0.0
        %2258 = vmatpush.msra.mxu0 0.0
        %2259 = vmatpush.msra.mxu0 0.0
        %2260 = vmatpush.msra.mxu0 0.0
        %2261 = vmatpush.msra.mxu0 0.0
        %2262 = vmatpush.msra.mxu0 0.0
        %2263 = vmatpush.msra.mxu0 %v322
        %2264 = vmatpush.msra.mxu0 %v321
        %2265 = vmatmul.f32.gmra.mxu0 %v2247
        %v2266 = vpop.f32.mrf.mxu0
        %v2267 = vadd.f32 %v2242, %v2266
        %2268 = vdwg.mxu0
        %v2269 = vadd.f32 %v2267, %v378
        %v2271 = vrot.slane %v2269, 1
        %v2272 = vrot.slane %v2269, 2
        %v2273 = vrot.slane %v2269, 3
        %v2274 = vrot.slane %v2269, 4
        %v2275 = vrot.slane %v2269, 5
        %v2276 = vrot.slane %v2269, 6
        %v2277 = vrot.slane %v2269, 7
        %2285 = vst.msk [vmem:[%s215 + $0x19] sm:$0x1] %vm396, %v2269
        %2286 = vst.msk [vmem:[%s215 + $0x39] sm:$0x1] %vm396, %v2271
        %2287 = vst.msk [vmem:[%s215 + $0x59] sm:$0x1] %vm396, %v2272
        %2288 = vst.msk [vmem:[%s215 + $0x79] sm:$0x1] %vm396, %v2273
        %2289 = vst.msk [vmem:[%s215 + $0x99] sm:$0x1] %vm396, %v2274
        %2290 = vst.msk [vmem:[%s215 + $0xb9] sm:$0x1] %vm396, %v2275
        %2291 = vst.msk [vmem:[%s215 + $0xd9] sm:$0x1] %vm396, %v2276
        %2292 = vst.msk [vmem:[%s215 + $0xf9] sm:$0x1] %vm396, %v2277
        %v2293 = vld [vmem:[#allocation2 + $0x8] sm:$0xff]
        %v2294 = vld [vmem:[#allocation2 + $0x18] sm:$0xff]
        %2296 = vrot.lane.b32.xlu0 %v2294, 48
        %v2297 = vpop.permute.xlu0 %2296
        %v2298 = vsel %vm328, %v2297, 0
        %2300 = vmatpush.msra.mxu0 0.0
        %2301 = vmatpush.msra.mxu0 0.0
        %2302 = vmatpush.msra.mxu0 0.0
        %2303 = vmatpush.msra.mxu0 0.0
        %2304 = vmatpush.msra.mxu0 0.0
        %2305 = vmatpush.msra.mxu0 0.0
        %2306 = vmatpush.msra.mxu0 0.0
        %2307 = vmatpush.msra.mxu0 0.0
        %2308 = vmatpush.msra.mxu0 0.0
        %2309 = vmatpush.msra.mxu0 0.0
        %2310 = vmatpush.msra.mxu0 0.0
        %2311 = vmatpush.msra.mxu0 0.0
        %2312 = vmatpush.msra.mxu0 0.0
        %2313 = vmatpush.msra.mxu0 0.0
        %2314 = vmatpush.msra.mxu0 %v325
        %2315 = vmatpush.msra.mxu0 %v324
        %2316 = vmatmul.f32.gmra.mxu0 %v2298
        %v2317 = vpop.f32.mrf.mxu0
        %v2318 = vadd.f32 0.0, %v2317
        %2319 = vdwg.mxu0
        %2321 = vrot.lane.b32.xlu0 %v2293, 48
        %v2322 = vpop.permute.xlu0 %2321
        %v2323 = vsel %vm328, %v2322, 0
        %2325 = vmatpush.msra.mxu0 0.0
        %2326 = vmatpush.msra.mxu0 0.0
        %2327 = vmatpush.msra.mxu0 0.0
        %2328 = vmatpush.msra.mxu0 0.0
        %2329 = vmatpush.msra.mxu0 0.0
        %2330 = vmatpush.msra.mxu0 0.0
        %2331 = vmatpush.msra.mxu0 0.0
        %2332 = vmatpush.msra.mxu0 0.0
        %2333 = vmatpush.msra.mxu0 0.0
        %2334 = vmatpush.msra.mxu0 0.0
        %2335 = vmatpush.msra.mxu0 0.0
        %2336 = vmatpush.msra.mxu0 0.0
        %2337 = vmatpush.msra.mxu0 0.0
        %2338 = vmatpush.msra.mxu0 0.0
        %2339 = vmatpush.msra.mxu0 %v322
        %2340 = vmatpush.msra.mxu0 %v321
        %2341 = vmatmul.f32.gmra.mxu0 %v2323
        %v2342 = vpop.f32.mrf.mxu0
        %v2343 = vadd.f32 %v2318, %v2342
        %2344 = vdwg.mxu0
        %v2345 = vadd.f32 %v2343, %v378
        %v2347 = vrot.slane %v2345, 1
        %v2348 = vrot.slane %v2345, 2
        %v2349 = vrot.slane %v2345, 3
        %v2350 = vrot.slane %v2345, 4
        %v2351 = vrot.slane %v2345, 5
        %v2352 = vrot.slane %v2345, 6
        %v2353 = vrot.slane %v2345, 7
        %2361 = vst.msk [vmem:[%s215 + $0x1a] sm:$0x1] %vm396, %v2345
        %2362 = vst.msk [vmem:[%s215 + $0x3a] sm:$0x1] %vm396, %v2347
        %2363 = vst.msk [vmem:[%s215 + $0x5a] sm:$0x1] %vm396, %v2348
        %2364 = vst.msk [vmem:[%s215 + $0x7a] sm:$0x1] %vm396, %v2349
        %2365 = vst.msk [vmem:[%s215 + $0x9a] sm:$0x1] %vm396, %v2350
        %2366 = vst.msk [vmem:[%s215 + $0xba] sm:$0x1] %vm396, %v2351
        %2367 = vst.msk [vmem:[%s215 + $0xda] sm:$0x1] %vm396, %v2352
        %2368 = vst.msk [vmem:[%s215 + $0xfa] sm:$0x1] %vm396, %v2353
        %v2369 = vld [vmem:[#allocation2 + $0x28] sm:$0xff]
        %v2370 = vld [vmem:[#allocation2 + $0x38] sm:$0xff]
        %2372 = vrot.lane.b32.xlu0 %v2370, 48
        %v2373 = vpop.permute.xlu0 %2372
        %v2374 = vsel %vm328, %v2373, 0
        %2376 = vmatpush.msra.mxu0 0.0
        %2377 = vmatpush.msra.mxu0 0.0
        %2378 = vmatpush.msra.mxu0 0.0
        %2379 = vmatpush.msra.mxu0 0.0
        %2380 = vmatpush.msra.mxu0 0.0
        %2381 = vmatpush.msra.mxu0 0.0
        %2382 = vmatpush.msra.mxu0 0.0
        %2383 = vmatpush.msra.mxu0 0.0
        %2384 = vmatpush.msra.mxu0 0.0
        %2385 = vmatpush.msra.mxu0 0.0
        %2386 = vmatpush.msra.mxu0 0.0
        %2387 = vmatpush.msra.mxu0 0.0
        %2388 = vmatpush.msra.mxu0 0.0
        %2389 = vmatpush.msra.mxu0 0.0
        %2390 = vmatpush.msra.mxu0 %v325
        %2391 = vmatpush.msra.mxu0 %v324
        %2392 = vmatmul.f32.gmra.mxu0 %v2374
        %v2393 = vpop.f32.mrf.mxu0
        %v2394 = vadd.f32 0.0, %v2393
        %2395 = vdwg.mxu0
        %2397 = vrot.lane.b32.xlu0 %v2369, 48
        %v2398 = vpop.permute.xlu0 %2397
        %v2399 = vsel %vm328, %v2398, 0
        %2401 = vmatpush.msra.mxu0 0.0
        %2402 = vmatpush.msra.mxu0 0.0
        %2403 = vmatpush.msra.mxu0 0.0
        %2404 = vmatpush.msra.mxu0 0.0
        %2405 = vmatpush.msra.mxu0 0.0
        %2406 = vmatpush.msra.mxu0 0.0
        %2407 = vmatpush.msra.mxu0 0.0
        %2408 = vmatpush.msra.mxu0 0.0
        %2409 = vmatpush.msra.mxu0 0.0
        %2410 = vmatpush.msra.mxu0 0.0
        %2411 = vmatpush.msra.mxu0 0.0
        %2412 = vmatpush.msra.mxu0 0.0
        %2413 = vmatpush.msra.mxu0 0.0
        %2414 = vmatpush.msra.mxu0 0.0
        %2415 = vmatpush.msra.mxu0 %v322
        %2416 = vmatpush.msra.mxu0 %v321
        %2417 = vmatmul.f32.gmra.mxu0 %v2399
        %v2418 = vpop.f32.mrf.mxu0
        %v2419 = vadd.f32 %v2394, %v2418
        %2420 = vdwg.mxu0
        %v2421 = vadd.f32 %v2419, %v378
        %v2423 = vrot.slane %v2421, 1
        %v2424 = vrot.slane %v2421, 2
        %v2425 = vrot.slane %v2421, 3
        %v2426 = vrot.slane %v2421, 4
        %v2427 = vrot.slane %v2421, 5
        %v2428 = vrot.slane %v2421, 6
        %v2429 = vrot.slane %v2421, 7
        %2437 = vst.msk [vmem:[%s215 + $0x1b] sm:$0x1] %vm396, %v2421
        %2438 = vst.msk [vmem:[%s215 + $0x3b] sm:$0x1] %vm396, %v2423
        %2439 = vst.msk [vmem:[%s215 + $0x5b] sm:$0x1] %vm396, %v2424
        %2440 = vst.msk [vmem:[%s215 + $0x7b] sm:$0x1] %vm396, %v2425
        %2441 = vst.msk [vmem:[%s215 + $0x9b] sm:$0x1] %vm396, %v2426
        %2442 = vst.msk [vmem:[%s215 + $0xbb] sm:$0x1] %vm396, %v2427
        %2443 = vst.msk [vmem:[%s215 + $0xdb] sm:$0x1] %vm396, %v2428
        %2444 = vst.msk [vmem:[%s215 + $0xfb] sm:$0x1] %vm396, %v2429
        %v2445 = vld [vmem:[#allocation2 + $0x8] sm:$0xff]
        %v2446 = vld [vmem:[#allocation2 + $0x18] sm:$0xff]
        %2448 = vrot.lane.b32.xlu0 %v2446, 32
        %v2449 = vpop.permute.xlu0 %2448
        %v2450 = vsel %vm328, %v2449, 0
        %2452 = vmatpush.msra.mxu0 0.0
        %2453 = vmatpush.msra.mxu0 0.0
        %2454 = vmatpush.msra.mxu0 0.0
        %2455 = vmatpush.msra.mxu0 0.0
        %2456 = vmatpush.msra.mxu0 0.0
        %2457 = vmatpush.msra.mxu0 0.0
        %2458 = vmatpush.msra.mxu0 0.0
        %2459 = vmatpush.msra.mxu0 0.0
        %2460 = vmatpush.msra.mxu0 0.0
        %2461 = vmatpush.msra.mxu0 0.0
        %2462 = vmatpush.msra.mxu0 0.0
        %2463 = vmatpush.msra.mxu0 0.0
        %2464 = vmatpush.msra.mxu0 0.0
        %2465 = vmatpush.msra.mxu0 0.0
        %2466 = vmatpush.msra.mxu0 %v325
        %2467 = vmatpush.msra.mxu0 %v324
        %2468 = vmatmul.f32.gmra.mxu0 %v2450
        %v2469 = vpop.f32.mrf.mxu0
        %v2470 = vadd.f32 0.0, %v2469
        %2471 = vdwg.mxu0
        %2473 = vrot.lane.b32.xlu0 %v2445, 32
        %v2474 = vpop.permute.xlu0 %2473
        %v2475 = vsel %vm328, %v2474, 0
        %2477 = vmatpush.msra.mxu0 0.0
        %2478 = vmatpush.msra.mxu0 0.0
        %2479 = vmatpush.msra.mxu0 0.0
        %2480 = vmatpush.msra.mxu0 0.0
        %2481 = vmatpush.msra.mxu0 0.0
        %2482 = vmatpush.msra.mxu0 0.0
        %2483 = vmatpush.msra.mxu0 0.0
        %2484 = vmatpush.msra.mxu0 0.0
        %2485 = vmatpush.msra.mxu0 0.0
        %2486 = vmatpush.msra.mxu0 0.0
        %2487 = vmatpush.msra.mxu0 0.0
        %2488 = vmatpush.msra.mxu0 0.0
        %2489 = vmatpush.msra.mxu0 0.0
        %2490 = vmatpush.msra.mxu0 0.0
        %2491 = vmatpush.msra.mxu0 %v322
        %2492 = vmatpush.msra.mxu0 %v321
        %2493 = vmatmul.f32.gmra.mxu0 %v2475
        %v2494 = vpop.f32.mrf.mxu0
        %v2495 = vadd.f32 %v2470, %v2494
        %2496 = vdwg.mxu0
        %v2497 = vadd.f32 %v2495, %v378
        %v2499 = vrot.slane %v2497, 1
        %v2500 = vrot.slane %v2497, 2
        %v2501 = vrot.slane %v2497, 3
        %v2502 = vrot.slane %v2497, 4
        %v2503 = vrot.slane %v2497, 5
        %v2504 = vrot.slane %v2497, 6
        %v2505 = vrot.slane %v2497, 7
        %2513 = vst.msk [vmem:[%s215 + $0x1c] sm:$0x1] %vm396, %v2497
        %2514 = vst.msk [vmem:[%s215 + $0x3c] sm:$0x1] %vm396, %v2499
        %2515 = vst.msk [vmem:[%s215 + $0x5c] sm:$0x1] %vm396, %v2500
        %2516 = vst.msk [vmem:[%s215 + $0x7c] sm:$0x1] %vm396, %v2501
        %2517 = vst.msk [vmem:[%s215 + $0x9c] sm:$0x1] %vm396, %v2502
        %2518 = vst.msk [vmem:[%s215 + $0xbc] sm:$0x1] %vm396, %v2503
        %2519 = vst.msk [vmem:[%s215 + $0xdc] sm:$0x1] %vm396, %v2504
        %2520 = vst.msk [vmem:[%s215 + $0xfc] sm:$0x1] %vm396, %v2505
        %v2521 = vld [vmem:[#allocation2 + $0x28] sm:$0xff]
        %v2522 = vld [vmem:[#allocation2 + $0x38] sm:$0xff]
        %2524 = vrot.lane.b32.xlu0 %v2522, 32
        %v2525 = vpop.permute.xlu0 %2524
        %v2526 = vsel %vm328, %v2525, 0
        %2528 = vmatpush.msra.mxu0 0.0
        %2529 = vmatpush.msra.mxu0 0.0
        %2530 = vmatpush.msra.mxu0 0.0
        %2531 = vmatpush.msra.mxu0 0.0
        %2532 = vmatpush.msra.mxu0 0.0
        %2533 = vmatpush.msra.mxu0 0.0
        %2534 = vmatpush.msra.mxu0 0.0
        %2535 = vmatpush.msra.mxu0 0.0
        %2536 = vmatpush.msra.mxu0 0.0
        %2537 = vmatpush.msra.mxu0 0.0
        %2538 = vmatpush.msra.mxu0 0.0
        %2539 = vmatpush.msra.mxu0 0.0
        %2540 = vmatpush.msra.mxu0 0.0
        %2541 = vmatpush.msra.mxu0 0.0
        %2542 = vmatpush.msra.mxu0 %v325
        %2543 = vmatpush.msra.mxu0 %v324
        %2544 = vmatmul.f32.gmra.mxu0 %v2526
        %v2545 = vpop.f32.mrf.mxu0
        %v2546 = vadd.f32 0.0, %v2545
        %2547 = vdwg.mxu0
        %2549 = vrot.lane.b32.xlu0 %v2521, 32
        %v2550 = vpop.permute.xlu0 %2549
        %v2551 = vsel %vm328, %v2550, 0
        %2553 = vmatpush.msra.mxu0 0.0
        %2554 = vmatpush.msra.mxu0 0.0
        %2555 = vmatpush.msra.mxu0 0.0
        %2556 = vmatpush.msra.mxu0 0.0
        %2557 = vmatpush.msra.mxu0 0.0
        %2558 = vmatpush.msra.mxu0 0.0
        %2559 = vmatpush.msra.mxu0 0.0
        %2560 = vmatpush.msra.mxu0 0.0
        %2561 = vmatpush.msra.mxu0 0.0
        %2562 = vmatpush.msra.mxu0 0.0
        %2563 = vmatpush.msra.mxu0 0.0
        %2564 = vmatpush.msra.mxu0 0.0
        %2565 = vmatpush.msra.mxu0 0.0
        %2566 = vmatpush.msra.mxu0 0.0
        %2567 = vmatpush.msra.mxu0 %v322
        %2568 = vmatpush.msra.mxu0 %v321
        %2569 = vmatmul.f32.gmra.mxu0 %v2551
        %v2570 = vpop.f32.mrf.mxu0
        %v2571 = vadd.f32 %v2546, %v2570
        %2572 = vdwg.mxu0
        %v2573 = vadd.f32 %v2571, %v378
        %v2575 = vrot.slane %v2573, 1
        %v2576 = vrot.slane %v2573, 2
        %v2577 = vrot.slane %v2573, 3
        %v2578 = vrot.slane %v2573, 4
        %v2579 = vrot.slane %v2573, 5
        %v2580 = vrot.slane %v2573, 6
        %v2581 = vrot.slane %v2573, 7
        %2589 = vst.msk [vmem:[%s215 + $0x1d] sm:$0x1] %vm396, %v2573
        %2590 = vst.msk [vmem:[%s215 + $0x3d] sm:$0x1] %vm396, %v2575
        %2591 = vst.msk [vmem:[%s215 + $0x5d] sm:$0x1] %vm396, %v2576
        %2592 = vst.msk [vmem:[%s215 + $0x7d] sm:$0x1] %vm396, %v2577
        %2593 = vst.msk [vmem:[%s215 + $0x9d] sm:$0x1] %vm396, %v2578
        %2594 = vst.msk [vmem:[%s215 + $0xbd] sm:$0x1] %vm396, %v2579
        %2595 = vst.msk [vmem:[%s215 + $0xdd] sm:$0x1] %vm396, %v2580
        %2596 = vst.msk [vmem:[%s215 + $0xfd] sm:$0x1] %vm396, %v2581
        %v2597 = vld [vmem:[#allocation2 + $0x8] sm:$0xff]
        %v2598 = vld [vmem:[#allocation2 + $0x18] sm:$0xff]
        %2600 = vrot.lane.b32.xlu0 %v2598, 16
        %v2601 = vpop.permute.xlu0 %2600
        %v2602 = vsel %vm328, %v2601, 0
        %2604 = vmatpush.msra.mxu0 0.0
        %2605 = vmatpush.msra.mxu0 0.0
        %2606 = vmatpush.msra.mxu0 0.0
        %2607 = vmatpush.msra.mxu0 0.0
        %2608 = vmatpush.msra.mxu0 0.0
        %2609 = vmatpush.msra.mxu0 0.0
        %2610 = vmatpush.msra.mxu0 0.0
        %2611 = vmatpush.msra.mxu0 0.0
        %2612 = vmatpush.msra.mxu0 0.0
        %2613 = vmatpush.msra.mxu0 0.0
        %2614 = vmatpush.msra.mxu0 0.0
        %2615 = vmatpush.msra.mxu0 0.0
        %2616 = vmatpush.msra.mxu0 0.0
        %2617 = vmatpush.msra.mxu0 0.0
        %2618 = vmatpush.msra.mxu0 %v325
        %2619 = vmatpush.msra.mxu0 %v324
        %2620 = vmatmul.f32.gmra.mxu0 %v2602
        %v2621 = vpop.f32.mrf.mxu0
        %v2622 = vadd.f32 0.0, %v2621
        %2623 = vdwg.mxu0
        %2625 = vrot.lane.b32.xlu0 %v2597, 16
        %v2626 = vpop.permute.xlu0 %2625
        %v2627 = vsel %vm328, %v2626, 0
        %2629 = vmatpush.msra.mxu0 0.0
        %2630 = vmatpush.msra.mxu0 0.0
        %2631 = vmatpush.msra.mxu0 0.0
        %2632 = vmatpush.msra.mxu0 0.0
        %2633 = vmatpush.msra.mxu0 0.0
        %2634 = vmatpush.msra.mxu0 0.0
        %2635 = vmatpush.msra.mxu0 0.0
        %2636 = vmatpush.msra.mxu0 0.0
        %2637 = vmatpush.msra.mxu0 0.0
        %2638 = vmatpush.msra.mxu0 0.0
        %2639 = vmatpush.msra.mxu0 0.0
        %2640 = vmatpush.msra.mxu0 0.0
        %2641 = vmatpush.msra.mxu0 0.0
        %2642 = vmatpush.msra.mxu0 0.0
        %2643 = vmatpush.msra.mxu0 %v322
        %2644 = vmatpush.msra.mxu0 %v321
        %2645 = vmatmul.f32.gmra.mxu0 %v2627
        %v2646 = vpop.f32.mrf.mxu0
        %v2647 = vadd.f32 %v2622, %v2646
        %2648 = vdwg.mxu0
        %v2649 = vadd.f32 %v2647, %v378
        %v2651 = vrot.slane %v2649, 1
        %v2652 = vrot.slane %v2649, 2
        %v2653 = vrot.slane %v2649, 3
        %v2654 = vrot.slane %v2649, 4
        %v2655 = vrot.slane %v2649, 5
        %v2656 = vrot.slane %v2649, 6
        %v2657 = vrot.slane %v2649, 7
        %2665 = vst.msk [vmem:[%s215 + $0x1e] sm:$0x1] %vm396, %v2649
        %2666 = vst.msk [vmem:[%s215 + $0x3e] sm:$0x1] %vm396, %v2651
        %2667 = vst.msk [vmem:[%s215 + $0x5e] sm:$0x1] %vm396, %v2652
        %2668 = vst.msk [vmem:[%s215 + $0x7e] sm:$0x1] %vm396, %v2653
        %2669 = vst.msk [vmem:[%s215 + $0x9e] sm:$0x1] %vm396, %v2654
        %2670 = vst.msk [vmem:[%s215 + $0xbe] sm:$0x1] %vm396, %v2655
        %2671 = vst.msk [vmem:[%s215 + $0xde] sm:$0x1] %vm396, %v2656
        %2672 = vst.msk [vmem:[%s215 + $0xfe] sm:$0x1] %vm396, %v2657
        %v2673 = vld [vmem:[#allocation2 + $0x28] sm:$0xff]
        %v2674 = vld [vmem:[#allocation2 + $0x38] sm:$0xff]
        %2676 = vrot.lane.b32.xlu0 %v2674, 16
        %v2677 = vpop.permute.xlu0 %2676
        %v2678 = vsel %vm328, %v2677, 0
        %2680 = vmatpush.msra.mxu0 0.0
        %2681 = vmatpush.msra.mxu0 0.0
        %2682 = vmatpush.msra.mxu0 0.0
        %2683 = vmatpush.msra.mxu0 0.0
        %2684 = vmatpush.msra.mxu0 0.0
        %2685 = vmatpush.msra.mxu0 0.0
        %2686 = vmatpush.msra.mxu0 0.0
        %2687 = vmatpush.msra.mxu0 0.0
        %2688 = vmatpush.msra.mxu0 0.0
        %2689 = vmatpush.msra.mxu0 0.0
        %2690 = vmatpush.msra.mxu0 0.0
        %2691 = vmatpush.msra.mxu0 0.0
        %2692 = vmatpush.msra.mxu0 0.0
        %2693 = vmatpush.msra.mxu0 0.0
        %2694 = vmatpush.msra.mxu0 %v325
        %2695 = vmatpush.msra.mxu0 %v324
        %2696 = vmatmul.f32.gmra.mxu0 %v2678
        %v2697 = vpop.f32.mrf.mxu0
        %v2698 = vadd.f32 0.0, %v2697
        %2699 = vdwg.mxu0
        %2701 = vrot.lane.b32.xlu0 %v2673, 16
        %v2702 = vpop.permute.xlu0 %2701
        %v2703 = vsel %vm328, %v2702, 0
        %2705 = vmatpush.msra.mxu0 0.0
        %2706 = vmatpush.msra.mxu0 0.0
        %2707 = vmatpush.msra.mxu0 0.0
        %2708 = vmatpush.msra.mxu0 0.0
        %2709 = vmatpush.msra.mxu0 0.0
        %2710 = vmatpush.msra.mxu0 0.0
        %2711 = vmatpush.msra.mxu0 0.0
        %2712 = vmatpush.msra.mxu0 0.0
        %2713 = vmatpush.msra.mxu0 0.0
        %2714 = vmatpush.msra.mxu0 0.0
        %2715 = vmatpush.msra.mxu0 0.0
        %2716 = vmatpush.msra.mxu0 0.0
        %2717 = vmatpush.msra.mxu0 0.0
        %2718 = vmatpush.msra.mxu0 0.0
        %2719 = vmatpush.msra.mxu0 %v322
        %2720 = vmatpush.msra.mxu0 %v321
        %2721 = vmatmul.f32.gmra.mxu0 %v2703
        %v2722 = vpop.f32.mrf.mxu0
        %v2723 = vadd.f32 %v2698, %v2722
        %2724 = vdwg.mxu0
        %v2725 = vadd.f32 %v2723, %v378
        %v2727 = vrot.slane %v2725, 1
        %v2728 = vrot.slane %v2725, 2
        %v2729 = vrot.slane %v2725, 3
        %v2730 = vrot.slane %v2725, 4
        %v2731 = vrot.slane %v2725, 5
        %v2732 = vrot.slane %v2725, 6
        %v2733 = vrot.slane %v2725, 7
        %2741 = vst.msk [vmem:[%s215 + $0x1f] sm:$0x1] %vm396, %v2725
        %2742 = vst.msk [vmem:[%s215 + $0x3f] sm:$0x1] %vm396, %v2727
        %2743 = vst.msk [vmem:[%s215 + $0x5f] sm:$0x1] %vm396, %v2728
        %2744 = vst.msk [vmem:[%s215 + $0x7f] sm:$0x1] %vm396, %v2729
        %2745 = vst.msk [vmem:[%s215 + $0x9f] sm:$0x1] %vm396, %v2730
        %2746 = vst.msk [vmem:[%s215 + $0xbf] sm:$0x1] %vm396, %v2731
        %2747 = vst.msk [vmem:[%s215 + $0xdf] sm:$0x1] %vm396, %v2732
        %2748 = vst.msk [vmem:[%s215 + $0xff] sm:$0x1] %vm396, %v2733
        %s2749 = sand.u32 %s131, 1
        %s2750 = scalar_lea.sflag [#allocation4], %s2749
        %s2751 = sand.u32 %s131, 1
        %s2752 = smul.addr %s2751, 256
        %s2753 = scalar_lea.vmem [#allocation3], %s2752
        // Predicated region
        $region37: #{upsample_forward.1} parent=35 // pred_check
          %p2754 = pneg %p141
        $region38: #{upsample_forward.1} parent=35 // pred_check_branch
          %2756 = sbr.rel (%p2754) target = $region40
        $region39: #{upsample_forward.1} parent=35 // pred_region
          %s2757 = smul.u32 4, %s23
          %2759 = vsyncadd %s2750, 0
          %s2760 = smul.addr %s22, 32
          %s2761 = sadd.s32 %s2757, %s2760
          %s2762 = smul.addr %s2761, 8
          %s2763 = scalar_lea.hbm %s4, %s2762
          %s2764 = sshll.u32 %s2753, 4
          %s2765 = int_to_ptr.vmem [resolvable:$true] %s2764
          %s2766 = sshll.u32 %s2763, 4
          %s2767 = int_to_ptr.hbm [resolvable:$true] %s2766
          %2772 = dma.vmem_to_hbm [thread:$0]  %s2765, 4096, %s2767, %s2750, 128, 128, 8
        $region40: #{upsample_forward.1} parent=35 // pred_fallthru
          _
      $region36: #{upsample_forward.1} parent=5 // pred_fallthru
        _
      %p2773 = scmp.le.s32.totalorder 2, %s13
      // Predicated region
      $region41: #{upsample_forward.1} parent=5 // pred_check
        %p2774 = pneg %p2773
      $region42: #{upsample_forward.1} parent=5 // pred_check_branch
        %2776 = sbr.rel (%p2774) target = $region44
      $region43: #{upsample_forward.1} parent=5 // pred_region
        %s2777 = ssub.s32 %s13, 2
        // Predicated region
        $region45: #{upsample_forward.1} parent=43 // pred_check
          %p2778 = pneg %p147
        $region46: #{upsample_forward.1} parent=43 // pred_check_branch
          %2780 = sbr.rel (%p2778) target = $region48
        $region47: #{upsample_forward.1} parent=43 // pred_region
          %s2781 = sand.u32 %s132, 1
          %s2782 = scalar_lea.sflag [#allocation4], %s2781
          %s2783 = sand.u32 %s132, 1
          %s2784 = smul.addr %s2783, 256
          %s2785 = scalar_lea.vmem [#allocation3], %s2784
          %2787 = dma.done %s2782, 4096
        $region48: #{upsample_forward.1} parent=43 // pred_fallthru
          _
      $region44: #{upsample_forward.1} parent=5 // pred_fallthru
        _
    $region6: #{upsample_forward.1} parent=1 // loop_footer
      %s17 = sadd.s32 1, %s13
    $region7: #{upsample_forward.1} parent=1 // loop_footer_branch
      %12 = sbr.rel target = $region3
    $region8: #{upsample_forward.1} parent=1 // loop_exit
      _
    %2788 = vsyncpa [#allocation4], 1
    %s2789 = scalar_lea.sflag [#allocation4], 1
    %2790 = vsyncpa %s2789, 1

</llo_original>
